<compile_context>
chip_gen: v5e
topology: v5e:2x2
jax: 0.10.0
libtpu: 0.0.40
codegen_flags: <defaults>
</compile_context>

<pallas_src>
import functools

import jax
import jax.numpy as jnp
from jax import lax
from jax.experimental import pallas as pl
from jax.experimental.pallas import tpu as pltpu

LANE = 128


def _round_up(x, m):
    return (x + m - 1) // m * m


# ------------------------------ Pallas kernel ------------------------------ #

def _bottleneck_kernel(x_ph_ref, mask_ref, w1_ref, b1_ref, w2_ref, b2_ref,
                       w3_ref, b3_ref, wd_ref, bd_ref, o_ref, h1_scr,
                       *, s, hq, wq, ho, wo):
    """Fully-fused Bottleneck forward for one image.

    x_ph_ref : (s*s, hq, wq, Cin) bf16   stride-phase planes of the zero-padded
                                         (pad=1, plus alignment) NHWC image.
    mask_ref : (s*s, hq*wq, 1)    f32    1.0 on real pixels, 0.0 on padding.
    w*_ref   : BN-scale-folded conv weights (bf16, channels padded to 128).
    b*_ref   : folded BN shifts, f32, shape (1, C).
    o_ref    : (1, ho*wo, Cout_p) f32    output pixels in raster order.
    h1_scr   : (s*s, hq, wq, Cmid_p) bf16 VMEM scratch holding conv1 output in
               the same padded phase layout (the on-chip "im2col" source).
    """
    nph = s * s
    hwq = hq * wq
    cin = x_ph_ref.shape[-1]
    cmid = w2_ref.shape[-1]

    # ---- conv1 (1x1) + bn1 + relu, per phase plane; zero the pad border ----
    for p in range(nph):                                   # static unroll <= 4
        xp = x_ph_ref[p].reshape(hwq, cin)                 # wq % 8 == 0 -> free
        h = jnp.dot(xp, w1_ref[...], preferred_element_type=jnp.float32)
        h = jnp.maximum(h + b1_ref[...], 0.0) * mask_ref[p]
        h1_scr[p] = h.reshape(hq, wq, cmid).astype(h1_scr.dtype)

    # ---- conv2 (3x3, stride s, pad 1) + bn2 + relu: on-chip 9-tap im2col ----
    # NOTE: the (ho, wo, C) -> (ho*wo, C) collapse is layout-free when
    # wo % 8 == 0 (true here); otherwise Mosaic inserts a relayout.
    acc = jnp.zeros((ho * wo, cmid), jnp.float32)
    for ky in range(3):
        for kx in range(3):
            p = (ky % s) * s + (kx % s)
            i0, j0 = ky // s, kx // s
            tap = h1_scr[p, i0:i0 + ho, j0:j0 + wo, :].reshape(ho * wo, cmid)
            acc = acc + jnp.dot(tap, w2_ref[ky * 3 + kx],
                                preferred_element_type=jnp.float32)
    h2 = jnp.maximum(acc + b2_ref[...], 0.0).astype(jnp.bfloat16)

    # ---- conv3 (1x1) + bn3 ----
    y = jnp.dot(h2, w3_ref[...], preferred_element_type=jnp.float32)
    y = y + b3_ref[...]

    # ---- downsample (1x1, stride s) + bn_d, fused residual ----
    # The strided residual pixels are exactly one contiguous window of one
    # stride-phase plane of the input -> no XLA strided slice needed.
    p_r = (1 % s) * s + (1 % s)
    r0 = 1 // s
    xd = x_ph_ref[p_r, r0:r0 + ho, r0:r0 + wo, :].reshape(ho * wo, cin)
    res = jnp.dot(xd, wd_ref[...], preferred_element_type=jnp.float32)
    res = res + bd_ref[...]

    o_ref[0] = jnp.maximum(y + res, 0.0).astype(o_ref.dtype)


# ------------------------------ glue / module ------------------------------ #

def bottleneck_forward(x_nchw, params, *, stride, cout):
    s = stride
    x = jnp.transpose(x_nchw, (0, 2, 3, 1))                # NCHW -> NHWC
    n, h, w, cin = x.shape
    cmid_p = params["w1"].shape[1]
    cout_p = params["w3"].shape[1]

    ho = (h - 1) // s + 1
    wo = (w - 1) // s + 1
    hq = -(-(h + 2) // s)                                  # rows per phase plane
    wq = _round_up(-(-(w + 2) // s), 8)                    # cols, 8-sublane aligned
    hp, wp = s * hq, s * wq
    nph = s * s

    # Zero-pad (conv2 pad=1 plus alignment) and split into s*s stride phases so
    # every 3x3 tap inside the kernel is a contiguous slice.  ~1x input bytes,
    # replacing the 9x HBM im2col of the unfused version.
    xp = jnp.pad(x, ((0, 0), (1, hp - h - 1), (1, wp - w - 1), (0, 0)))
    x_ph = xp.reshape(n, hq, s, wq, s, cin).transpose(0, 2, 4, 1, 3, 5)
    x_ph = x_ph.reshape(n * nph, hq, wq, cin).astype(jnp.bfloat16)

    # Interior mask: zeroes out relu(shift1) produced on padded border pixels.
    pr = jnp.arange(s).reshape(s, 1, 1, 1)
    pc = jnp.arange(s).reshape(1, s, 1, 1)
    ii = jnp.arange(hq).reshape(1, 1, hq, 1)
    jj = jnp.arange(wq).reshape(1, 1, 1, wq)
    hc = s * ii + pr
    wc = s * jj + pc
    valid = (hc >= 1) & (hc <= h) & (wc >= 1) & (wc <= w)
    mask = valid.astype(jnp.float32).reshape(nph, hq * wq, 1)

    kernel = functools.partial(_bottleneck_kernel, s=s, hq=hq, wq=wq,
                               ho=ho, wo=wo)

    out = pl.pallas_call(
        kernel,
        out_shape=jax.ShapeDtypeStruct((n, ho * wo, cout_p), jnp.float32),
        grid=(n,),
        in_specs=[
            pl.BlockSpec((nph, hq, wq, cin), lambda i: (i, 0, 0, 0)),
            pl.BlockSpec((nph, hq * wq, 1), lambda i: (0, 0, 0)),
            pl.BlockSpec((cin, cmid_p), lambda i: (0, 0)),
            pl.BlockSpec((1, cmid_p), lambda i: (0, 0)),
            pl.BlockSpec((9, cmid_p, cmid_p), lambda i: (0, 0, 0)),
            pl.BlockSpec((1, cmid_p), lambda i: (0, 0)),
            pl.BlockSpec((cmid_p, cout_p), lambda i: (0, 0)),
            pl.BlockSpec((1, cout_p), lambda i: (0, 0)),
            pl.BlockSpec((cin, cout_p), lambda i: (0, 0)),
            pl.BlockSpec((1, cout_p), lambda i: (0, 0)),
        ],
        out_specs=pl.BlockSpec((1, ho * wo, cout_p), lambda i: (i, 0, 0)),
        scratch_shapes=[pltpu.VMEM((nph, hq, wq, cmid_p), jnp.bfloat16)],
        compiler_params=pltpu.CompilerParams(
            dimension_semantics=("parallel",),
            vmem_limit_bytes=32 * 1024 * 1024),
    )(x_ph, mask, params["w1"], params["b1"], params["w2"], params["b2"],
      params["w3"], params["b3"], params["wd"], params["bd"])

    out = out.reshape(n, ho, wo, cout_p)[..., :cout]
    return jnp.transpose(out, (0, 3, 1, 2))                # NHWC -> NCHW


# ----------------------- deterministic parameter init ---------------------- #

def _fold_bn(gamma, beta, mean, var, eps=1e-5):
    inv = gamma / jnp.sqrt(var + eps)
    return inv, beta - mean * inv


def init_params(key, cin, cmid, cout, stride):
    ks = jax.random.split(key, 8)

    def conv_w(k, o, i, kh, kw):
        return 0.1 * jax.random.normal(k, (o, i, kh, kw), jnp.float32)

    def bn(k, c):
        k1, k2, k3, k4 = jax.random.split(k, 4)
        gamma = jax.random.uniform(k1, (c,), jnp.float32, 0.5, 1.5)
        beta = 0.1 * jax.random.normal(k2, (c,), jnp.float32)
        mean = 0.1 * jax.random.normal(k3, (c,), jnp.float32)
        var = jax.random.uniform(k4, (c,), jnp.float32, 0.5, 1.5)
        return gamma, beta, mean, var

    raw = {
        "conv1": conv_w(ks[0], cmid, cin, 1, 1), "bn1": bn(ks[1], cmid),
        "conv2": conv_w(ks[2], cmid, cmid, 3, 3), "bn2": bn(ks[3], cmid),
        "conv3": conv_w(ks[4], cout, cmid, 1, 1), "bn3": bn(ks[5], cout),
    }
    has_down = stride != 1 or cin != cout
    if has_down:
        raw["convd"] = conv_w(ks[6], cout, cin, 1, 1)
        raw["bnd"] = bn(ks[7], cout)

    cmid_p = _round_up(cmid, LANE)
    cout_p = _round_up(cout, LANE)

    def pad_cols(a, ncols):
        return jnp.pad(a, [(0, 0)] * (a.ndim - 1) + [(0, ncols - a.shape[-1])])

    p = {}
    s1, b1 = _fold_bn(*raw["bn1"])
    p["w1"] = pad_cols(raw["conv1"][:, :, 0, 0].T * s1[None, :],
                       cmid_p).astype(jnp.bfloat16)
    p["b1"] = pad_cols(b1.reshape(1, cmid), cmid_p)

    s2, b2 = _fold_bn(*raw["bn2"])
    w2 = jnp.transpose(raw["conv2"], (2, 3, 1, 0)) * s2    # (3,3,I,O), scale folded
    w2 = w2.reshape(9, cmid, cmid)
    w2 = jnp.pad(w2, ((0, 0), (0, cmid_p - cmid), (0, cmid_p - cmid)))
    p["w2"] = w2.astype(jnp.bfloat16)
    p["b2"] = pad_cols(b2.reshape(1, cmid), cmid_p)

    s3, b3 = _fold_bn(*raw["bn3"])
    w3 = raw["conv3"][:, :, 0, 0].T * s3[None, :]
    w3 = jnp.pad(w3, ((0, cmid_p - cmid), (0, cout_p - cout)))
    p["w3"] = w3.astype(jnp.bfloat16)
    p["b3"] = pad_cols(b3.reshape(1, cout), cout_p)

    if has_down:
        sd, bd = _fold_bn(*raw["bnd"])
        p["wd"] = pad_cols(raw["convd"][:, :, 0, 0].T * sd[None, :],
                           cout_p).astype(jnp.bfloat16)
        p["bd"] = pad_cols(bd.reshape(1, cout), cout_p)
    else:
        # Identity residual expressed as an identity "downsample" matmul.
        # TODO(synk): special-case the identity residual to skip this matmul
        #             at large channel counts.
        p["wd"] = jnp.eye(cin, cout_p, dtype=jnp.bfloat16)
        p["bd"] = jnp.zeros((1, cout_p), jnp.float32)
    return raw, p


# ------------------------------- JAX reference ------------------------------ #

def _conv_ref(x, w_oihw, stride, padding):
    return lax.conv_general_dilated(
        x, w_oihw, (stride, stride), [(padding, padding)] * 2,
        dimension_numbers=("NCHW", "OIHW", "NCHW"))


def _bn_ref(x, bn, eps=1e-5):
    gamma, beta, mean, var = bn
    inv = gamma / jnp.sqrt(var + eps)
    return x * inv[None, :, None, None] + (beta - mean * inv)[None, :, None, None]


def bottleneck_ref(x, raw, stride, cin, cout):
    out = jnp.maximum(_bn_ref(_conv_ref(x, raw["conv1"], 1, 0), raw["bn1"]), 0.0)
    out = jnp.maximum(_bn_ref(_conv_ref(out, raw["conv2"], stride, 1), raw["bn2"]), 0.0)
    out = _bn_ref(_conv_ref(out, raw["conv3"], 1, 0), raw["bn3"])
    if stride != 1 or cin != cout:
        res = _bn_ref(_conv_ref(x, raw["convd"], stride, 0), raw["bnd"])
    else:
        res = x
    return jnp.maximum(out + res, 0.0)


# ----------------------------------- main ----------------------------------- #

if __name__ == "__main__":
    N, Cin, H, W = 2, 8, 16, 16
    Cmid, Cout, stride = 8, 16, 2

    key = jax.random.PRNGKey(0)
    k_x, k_p = jax.random.split(key)
    x = jax.random.normal(k_x, (N, Cin, H, W), jnp.float32)

    raw, params = init_params(k_p, Cin, Cmid, Cout, stride)

    fwd = jax.jit(functools.partial(bottleneck_forward, stride=stride, cout=Cout))
    out = jax.block_until_ready(fwd(x, params))

    ref = bottleneck_ref(x, raw, stride, Cin, Cout)
    assert out.shape == ref.shape, (out.shape, ref.shape)
    max_err = float(jnp.max(jnp.abs(out - ref)))
    assert jnp.allclose(out, ref, atol=5e-2, rtol=5e-2), max_err  # bf16 matmuls

    print("KERNEL_OK")
</pallas_src>

<mosaic_0001>
module attributes {stable_mosaic.version = 11 : i64} {
  func.func @_bottleneck_kernel(%arg0: i32, %arg1: memref<4x9x16x8xbf16, #tpu.memory_space<vmem>>, %arg2: memref<4x144x1xf32, #tpu.memory_space<vmem>>, %arg3: memref<8x128xbf16, #tpu.memory_space<vmem>>, %arg4: memref<1x128xf32, #tpu.memory_space<vmem>>, %arg5: memref<9x128x128xbf16, #tpu.memory_space<vmem>>, %arg6: memref<1x128xf32, #tpu.memory_space<vmem>>, %arg7: memref<128x128xbf16, #tpu.memory_space<vmem>>, %arg8: memref<1x128xf32, #tpu.memory_space<vmem>>, %arg9: memref<8x128xbf16, #tpu.memory_space<vmem>>, %arg10: memref<1x128xf32, #tpu.memory_space<vmem>>, %arg11: memref<1x64x128xf32, #tpu.memory_space<vmem>>, %arg12: memref<4x9x16x128xbf16, #tpu.memory_space<vmem>>) attributes {dimension_semantics = [#tpu.dimension_semantics<parallel>], iteration_bounds = array<i64: 2>, scalar_prefetch = 0 : i64, scratch_operands = 1 : i64, tpu.core_type = #tpu.core_type<tc>, window_params = [{transform_indices = @transform_0, window_bounds = array<i64: 4, 9, 16, 8>}, {pipeline_mode = #tpu.pipeline_mode<synchronous>, transform_indices = @transform_1, window_bounds = array<i64: 4, 144, 1>}, {pipeline_mode = #tpu.pipeline_mode<synchronous>, transform_indices = @transform_2, window_bounds = array<i64: 8, 128>}, {pipeline_mode = #tpu.pipeline_mode<synchronous>, transform_indices = @transform_3, window_bounds = array<i64: 1, 128>}, {pipeline_mode = #tpu.pipeline_mode<synchronous>, transform_indices = @transform_4, window_bounds = array<i64: 9, 128, 128>}, {pipeline_mode = #tpu.pipeline_mode<synchronous>, transform_indices = @transform_5, window_bounds = array<i64: 1, 128>}, {pipeline_mode = #tpu.pipeline_mode<synchronous>, transform_indices = @transform_6, window_bounds = array<i64: 128, 128>}, {pipeline_mode = #tpu.pipeline_mode<synchronous>, transform_indices = @transform_7, window_bounds = array<i64: 1, 128>}, {pipeline_mode = #tpu.pipeline_mode<synchronous>, transform_indices = @transform_8, window_bounds = array<i64: 8, 128>}, {pipeline_mode = #tpu.pipeline_mode<synchronous>, transform_indices = @transform_9, window_bounds = array<i64: 1, 128>}, {transform_indices = @transform_10, window_bounds = array<i64: 1, 64, 128>}]} {
    %c0 = arith.constant 0 : index
    %c0_0 = arith.constant 0 : index
    %c0_1 = arith.constant 0 : index
    %c0_2 = arith.constant 0 : index
    %0 = vector.load %arg1[%c0, %c0_0, %c0_1, %c0_2] : memref<4x9x16x8xbf16, #tpu.memory_space<vmem>>, vector<1x9x16x8xbf16>
    %1 = vector.shape_cast %0 : vector<1x9x16x8xbf16> to vector<9x16x8xbf16>
    %2 = vector.shape_cast %1 : vector<9x16x8xbf16> to vector<144x8xbf16>
    %c0_3 = arith.constant 0 : index
    %c0_4 = arith.constant 0 : index
    %3 = vector.load %arg3[%c0_3, %c0_4] : memref<8x128xbf16, #tpu.memory_space<vmem>>, vector<8x128xbf16>
    %cst = arith.constant dense<0.000000e+00> : vector<144x128xf32>
    %4 = tpu.matmul %2, %3, %cst {dimension_numbers = #tpu.dot_dimension_numbers<[1], [0], [0], [1], [0, 0, 1, 1], [], []>} : vector<144x8xbf16>, vector<8x128xbf16>, vector<144x128xf32> -> vector<144x128xf32>
    %c0_5 = arith.constant 0 : index
    %c0_6 = arith.constant 0 : index
    %5 = vector.load %arg4[%c0_5, %c0_6] : memref<1x128xf32, #tpu.memory_space<vmem>>, vector<1x128xf32>
    %6 = vector.broadcast %5 : vector<1x128xf32> to vector<144x128xf32>
    %7 = arith.addf %4, %6 : vector<144x128xf32>
    %cst_7 = arith.constant 0.000000e+00 : f32
    %8 = vector.broadcast %cst_7 : f32 to vector<144x128xf32>
    %9 = arith.maximumf %7, %8 : vector<144x128xf32>
    %c0_8 = arith.constant 0 : index
    %c0_9 = arith.constant 0 : index
    %c0_10 = arith.constant 0 : index
    %10 = vector.load %arg2[%c0_8, %c0_9, %c0_10] : memref<4x144x1xf32, #tpu.memory_space<vmem>>, vector<1x144x1xf32>
    %11 = vector.shape_cast %10 : vector<1x144x1xf32> to vector<144x1xf32>
    %12 = vector.broadcast %11 : vector<144x1xf32> to vector<144x128xf32>
    %13 = arith.mulf %9, %12 : vector<144x128xf32>
    %14 = vector.shape_cast %13 : vector<144x128xf32> to vector<9x16x128xf32>
    %15 = arith.truncf %14 : vector<9x16x128xf32> to vector<9x16x128xbf16>
    %c0_11 = arith.constant 0 : index
    %c0_12 = arith.constant 0 : index
    %c0_13 = arith.constant 0 : index
    %c0_14 = arith.constant 0 : index
    %16 = vector.load %arg12[%c0_11, %c0_12, %c0_13, %c0_14] : memref<4x9x16x128xbf16, #tpu.memory_space<vmem>>, vector<1x9x16x128xbf16>
    %17 = vector.shape_cast %16 : vector<1x9x16x128xbf16> to vector<9x16x128xbf16>
    %18 = vector.shape_cast %15 : vector<9x16x128xbf16> to vector<1x9x16x128xbf16>
    tpu.vector_store %arg12[%c0_11, %c0_12, %c0_13, %c0_14], %18 {strides = array<i32>} : memref<4x9x16x128xbf16, #tpu.memory_space<vmem>>, vector<1x9x16x128xbf16>,
    %c1 = arith.constant 1 : index
    %c0_15 = arith.constant 0 : index
    %c0_16 = arith.constant 0 : index
    %c0_17 = arith.constant 0 : index
    %19 = vector.load %arg1[%c1, %c0_15, %c0_16, %c0_17] : memref<4x9x16x8xbf16, #tpu.memory_space<vmem>>, vector<1x9x16x8xbf16>
    %20 = vector.shape_cast %19 : vector<1x9x16x8xbf16> to vector<9x16x8xbf16>
    %21 = vector.shape_cast %20 : vector<9x16x8xbf16> to vector<144x8xbf16>
    %c0_18 = arith.constant 0 : index
    %c0_19 = arith.constant 0 : index
    %22 = vector.load %arg3[%c0_18, %c0_19] : memref<8x128xbf16, #tpu.memory_space<vmem>>, vector<8x128xbf16>
    %cst_20 = arith.constant dense<0.000000e+00> : vector<144x128xf32>
    %23 = tpu.matmul %21, %22, %cst_20 {dimension_numbers = #tpu.dot_dimension_numbers<[1], [0], [0], [1], [0, 0, 1, 1], [], []>} : vector<144x8xbf16>, vector<8x128xbf16>, vector<144x128xf32> -> vector<144x128xf32>
    %c0_21 = arith.constant 0 : index
    %c0_22 = arith.constant 0 : index
    %24 = vector.load %arg4[%c0_21, %c0_22] : memref<1x128xf32, #tpu.memory_space<vmem>>, vector<1x128xf32>
    %25 = vector.broadcast %24 : vector<1x128xf32> to vector<144x128xf32>
    %26 = arith.addf %23, %25 : vector<144x128xf32>
    %cst_23 = arith.constant 0.000000e+00 : f32
    %27 = vector.broadcast %cst_23 : f32 to vector<144x128xf32>
    %28 = arith.maximumf %26, %27 : vector<144x128xf32>
    %c1_24 = arith.constant 1 : index
    %c0_25 = arith.constant 0 : index
    %c0_26 = arith.constant 0 : index
    %29 = vector.load %arg2[%c1_24, %c0_25, %c0_26] : memref<4x144x1xf32, #tpu.memory_space<vmem>>, vector<1x144x1xf32>
    %30 = vector.shape_cast %29 : vector<1x144x1xf32> to vector<144x1xf32>
    %31 = vector.broadcast %30 : vector<144x1xf32> to vector<144x128xf32>
    %32 = arith.mulf %28, %31 : vector<144x128xf32>
    %33 = vector.shape_cast %32 : vector<144x128xf32> to vector<9x16x128xf32>
    %34 = arith.truncf %33 : vector<9x16x128xf32> to vector<9x16x128xbf16>
    %c1_27 = arith.constant 1 : index
    %c0_28 = arith.constant 0 : index
    %c0_29 = arith.constant 0 : index
    %c0_30 = arith.constant 0 : index
    %35 = vector.load %arg12[%c1_27, %c0_28, %c0_29, %c0_30] : memref<4x9x16x128xbf16, #tpu.memory_space<vmem>>, vector<1x9x16x128xbf16>
    %36 = vector.shape_cast %35 : vector<1x9x16x128xbf16> to vector<9x16x128xbf16>
    %37 = vector.shape_cast %34 : vector<9x16x128xbf16> to vector<1x9x16x128xbf16>
    tpu.vector_store %arg12[%c1_27, %c0_28, %c0_29, %c0_30], %37 {strides = array<i32>} : memref<4x9x16x128xbf16, #tpu.memory_space<vmem>>, vector<1x9x16x128xbf16>,
    %c2 = arith.constant 2 : index
    %c0_31 = arith.constant 0 : index
    %c0_32 = arith.constant 0 : index
    %c0_33 = arith.constant 0 : index
    %38 = vector.load %arg1[%c2, %c0_31, %c0_32, %c0_33] : memref<4x9x16x8xbf16, #tpu.memory_space<vmem>>, vector<1x9x16x8xbf16>
    %39 = vector.shape_cast %38 : vector<1x9x16x8xbf16> to vector<9x16x8xbf16>
    %40 = vector.shape_cast %39 : vector<9x16x8xbf16> to vector<144x8xbf16>
    %c0_34 = arith.constant 0 : index
    %c0_35 = arith.constant 0 : index
    %41 = vector.load %arg3[%c0_34, %c0_35] : memref<8x128xbf16, #tpu.memory_space<vmem>>, vector<8x128xbf16>
    %cst_36 = arith.constant dense<0.000000e+00> : vector<144x128xf32>
    %42 = tpu.matmul %40, %41, %cst_36 {dimension_numbers = #tpu.dot_dimension_numbers<[1], [0], [0], [1], [0, 0, 1, 1], [], []>} : vector<144x8xbf16>, vector<8x128xbf16>, vector<144x128xf32> -> vector<144x128xf32>
    %c0_37 = arith.constant 0 : index
    %c0_38 = arith.constant 0 : index
    %43 = vector.load %arg4[%c0_37, %c0_38] : memref<1x128xf32, #tpu.memory_space<vmem>>, vector<1x128xf32>
    %44 = vector.broadcast %43 : vector<1x128xf32> to vector<144x128xf32>
    %45 = arith.addf %42, %44 : vector<144x128xf32>
    %cst_39 = arith.constant 0.000000e+00 : f32
    %46 = vector.broadcast %cst_39 : f32 to vector<144x128xf32>
    %47 = arith.maximumf %45, %46 : vector<144x128xf32>
    %c2_40 = arith.constant 2 : index
    %c0_41 = arith.constant 0 : index
    %c0_42 = arith.constant 0 : index
    %48 = vector.load %arg2[%c2_40, %c0_41, %c0_42] : memref<4x144x1xf32, #tpu.memory_space<vmem>>, vector<1x144x1xf32>
    %49 = vector.shape_cast %48 : vector<1x144x1xf32> to vector<144x1xf32>
    %50 = vector.broadcast %49 : vector<144x1xf32> to vector<144x128xf32>
    %51 = arith.mulf %47, %50 : vector<144x128xf32>
    %52 = vector.shape_cast %51 : vector<144x128xf32> to vector<9x16x128xf32>
    %53 = arith.truncf %52 : vector<9x16x128xf32> to vector<9x16x128xbf16>
    %c2_43 = arith.constant 2 : index
    %c0_44 = arith.constant 0 : index
    %c0_45 = arith.constant 0 : index
    %c0_46 = arith.constant 0 : index
    %54 = vector.load %arg12[%c2_43, %c0_44, %c0_45, %c0_46] : memref<4x9x16x128xbf16, #tpu.memory_space<vmem>>, vector<1x9x16x128xbf16>
    %55 = vector.shape_cast %54 : vector<1x9x16x128xbf16> to vector<9x16x128xbf16>
    %56 = vector.shape_cast %53 : vector<9x16x128xbf16> to vector<1x9x16x128xbf16>
    tpu.vector_store %arg12[%c2_43, %c0_44, %c0_45, %c0_46], %56 {strides = array<i32>} : memref<4x9x16x128xbf16, #tpu.memory_space<vmem>>, vector<1x9x16x128xbf16>,
    %c3 = arith.constant 3 : index
    %c0_47 = arith.constant 0 : index
    %c0_48 = arith.constant 0 : index
    %c0_49 = arith.constant 0 : index
    %57 = vector.load %arg1[%c3, %c0_47, %c0_48, %c0_49] : memref<4x9x16x8xbf16, #tpu.memory_space<vmem>>, vector<1x9x16x8xbf16>
    %58 = vector.shape_cast %57 : vector<1x9x16x8xbf16> to vector<9x16x8xbf16>
    %59 = vector.shape_cast %58 : vector<9x16x8xbf16> to vector<144x8xbf16>
    %c0_50 = arith.constant 0 : index
    %c0_51 = arith.constant 0 : index
    %60 = vector.load %arg3[%c0_50, %c0_51] : memref<8x128xbf16, #tpu.memory_space<vmem>>, vector<8x128xbf16>
    %cst_52 = arith.constant dense<0.000000e+00> : vector<144x128xf32>
    %61 = tpu.matmul %59, %60, %cst_52 {dimension_numbers = #tpu.dot_dimension_numbers<[1], [0], [0], [1], [0, 0, 1, 1], [], []>} : vector<144x8xbf16>, vector<8x128xbf16>, vector<144x128xf32> -> vector<144x128xf32>
    %c0_53 = arith.constant 0 : index
    %c0_54 = arith.constant 0 : index
    %62 = vector.load %arg4[%c0_53, %c0_54] : memref<1x128xf32, #tpu.memory_space<vmem>>, vector<1x128xf32>
    %63 = vector.broadcast %62 : vector<1x128xf32> to vector<144x128xf32>
    %64 = arith.addf %61, %63 : vector<144x128xf32>
    %cst_55 = arith.constant 0.000000e+00 : f32
    %65 = vector.broadcast %cst_55 : f32 to vector<144x128xf32>
    %66 = arith.maximumf %64, %65 : vector<144x128xf32>
    %c3_56 = arith.constant 3 : index
    %c0_57 = arith.constant 0 : index
    %c0_58 = arith.constant 0 : index
    %67 = vector.load %arg2[%c3_56, %c0_57, %c0_58] : memref<4x144x1xf32, #tpu.memory_space<vmem>>, vector<1x144x1xf32>
    %68 = vector.shape_cast %67 : vector<1x144x1xf32> to vector<144x1xf32>
    %69 = vector.broadcast %68 : vector<144x1xf32> to vector<144x128xf32>
    %70 = arith.mulf %66, %69 : vector<144x128xf32>
    %71 = vector.shape_cast %70 : vector<144x128xf32> to vector<9x16x128xf32>
    %72 = arith.truncf %71 : vector<9x16x128xf32> to vector<9x16x128xbf16>
    %c3_59 = arith.constant 3 : index
    %c0_60 = arith.constant 0 : index
    %c0_61 = arith.constant 0 : index
    %c0_62 = arith.constant 0 : index
    %73 = vector.load %arg12[%c3_59, %c0_60, %c0_61, %c0_62] : memref<4x9x16x128xbf16, #tpu.memory_space<vmem>>, vector<1x9x16x128xbf16>
    %74 = vector.shape_cast %73 : vector<1x9x16x128xbf16> to vector<9x16x128xbf16>
    %75 = vector.shape_cast %72 : vector<9x16x128xbf16> to vector<1x9x16x128xbf16>
    tpu.vector_store %arg12[%c3_59, %c0_60, %c0_61, %c0_62], %75 {strides = array<i32>} : memref<4x9x16x128xbf16, #tpu.memory_space<vmem>>, vector<1x9x16x128xbf16>,
    %cst_63 = arith.constant 0.000000e+00 : f32
    %76 = vector.broadcast %cst_63 : f32 to vector<64x128xf32>
    %c0_64 = arith.constant 0 : index
    %c0_65 = arith.constant 0 : index
    %c0_66 = arith.constant 0 : index
    %c0_67 = arith.constant 0 : index
    %77 = vector.load %arg12[%c0_64, %c0_65, %c0_66, %c0_67] : memref<4x9x16x128xbf16, #tpu.memory_space<vmem>>, vector<1x8x8x128xbf16>
    %78 = vector.shape_cast %77 : vector<1x8x8x128xbf16> to vector<8x8x128xbf16>
    %79 = vector.shape_cast %78 : vector<8x8x128xbf16> to vector<64x128xbf16>
    %c0_68 = arith.constant 0 : index
    %c0_69 = arith.constant 0 : index
    %c0_70 = arith.constant 0 : index
    %80 = vector.load %arg5[%c0_68, %c0_69, %c0_70] : memref<9x128x128xbf16, #tpu.memory_space<vmem>>, vector<1x128x128xbf16>
    %81 = vector.shape_cast %80 : vector<1x128x128xbf16> to vector<128x128xbf16>
    %cst_71 = arith.constant dense<0.000000e+00> : vector<64x128xf32>
    %82 = tpu.matmul %79, %81, %cst_71 {dimension_numbers = #tpu.dot_dimension_numbers<[1], [0], [0], [1], [0, 0, 1, 1], [], []>} : vector<64x128xbf16>, vector<128x128xbf16>, vector<64x128xf32> -> vector<64x128xf32>
    %83 = arith.addf %76, %82 : vector<64x128xf32>
    %c1_72 = arith.constant 1 : index
    %c0_73 = arith.constant 0 : index
    %c0_74 = arith.constant 0 : index
    %c0_75 = arith.constant 0 : index
    %84 = vector.load %arg12[%c1_72, %c0_73, %c0_74, %c0_75] : memref<4x9x16x128xbf16, #tpu.memory_space<vmem>>, vector<1x8x8x128xbf16>
    %85 = vector.shape_cast %84 : vector<1x8x8x128xbf16> to vector<8x8x128xbf16>
    %86 = vector.shape_cast %85 : vector<8x8x128xbf16> to vector<64x128xbf16>
    %c1_76 = arith.constant 1 : index
    %c0_77 = arith.constant 0 : index
    %c0_78 = arith.constant 0 : index
    %87 = vector.load %arg5[%c1_76, %c0_77, %c0_78] : memref<9x128x128xbf16, #tpu.memory_space<vmem>>, vector<1x128x128xbf16>
    %88 = vector.shape_cast %87 : vector<1x128x128xbf16> to vector<128x128xbf16>
    %cst_79 = arith.constant dense<0.000000e+00> : vector<64x128xf32>
    %89 = tpu.matmul %86, %88, %cst_79 {dimension_numbers = #tpu.dot_dimension_numbers<[1], [0], [0], [1], [0, 0, 1, 1], [], []>} : vector<64x128xbf16>, vector<128x128xbf16>, vector<64x128xf32> -> vector<64x128xf32>
    %90 = arith.addf %83, %89 : vector<64x128xf32>
    %c0_80 = arith.constant 0 : index
    %c0_81 = arith.constant 0 : index
    %c1_82 = arith.constant 1 : index
    %c0_83 = arith.constant 0 : index
    %91 = vector.load %arg12[%c0_80, %c0_81, %c1_82, %c0_83] : memref<4x9x16x128xbf16, #tpu.memory_space<vmem>>, vector<1x8x8x128xbf16>
    %92 = vector.shape_cast %91 : vector<1x8x8x128xbf16> to vector<8x8x128xbf16>
    %93 = vector.shape_cast %92 : vector<8x8x128xbf16> to vector<64x128xbf16>
    %c2_84 = arith.constant 2 : index
    %c0_85 = arith.constant 0 : index
    %c0_86 = arith.constant 0 : index
    %94 = vector.load %arg5[%c2_84, %c0_85, %c0_86] : memref<9x128x128xbf16, #tpu.memory_space<vmem>>, vector<1x128x128xbf16>
    %95 = vector.shape_cast %94 : vector<1x128x128xbf16> to vector<128x128xbf16>
    %cst_87 = arith.constant dense<0.000000e+00> : vector<64x128xf32>
    %96 = tpu.matmul %93, %95, %cst_87 {dimension_numbers = #tpu.dot_dimension_numbers<[1], [0], [0], [1], [0, 0, 1, 1], [], []>} : vector<64x128xbf16>, vector<128x128xbf16>, vector<64x128xf32> -> vector<64x128xf32>
    %97 = arith.addf %90, %96 : vector<64x128xf32>
    %c2_88 = arith.constant 2 : index
    %c0_89 = arith.constant 0 : index
    %c0_90 = arith.constant 0 : index
    %c0_91 = arith.constant 0 : index
    %98 = vector.load %arg12[%c2_88, %c0_89, %c0_90, %c0_91] : memref<4x9x16x128xbf16, #tpu.memory_space<vmem>>, vector<1x8x8x128xbf16>
    %99 = vector.shape_cast %98 : vector<1x8x8x128xbf16> to vector<8x8x128xbf16>
    %100 = vector.shape_cast %99 : vector<8x8x128xbf16> to vector<64x128xbf16>
    %c3_92 = arith.constant 3 : index
    %c0_93 = arith.constant 0 : index
    %c0_94 = arith.constant 0 : index
    %101 = vector.load %arg5[%c3_92, %c0_93, %c0_94] : memref<9x128x128xbf16, #tpu.memory_space<vmem>>, vector<1x128x128xbf16>
    %102 = vector.shape_cast %101 : vector<1x128x128xbf16> to vector<128x128xbf16>
    %cst_95 = arith.constant dense<0.000000e+00> : vector<64x128xf32>
    %103 = tpu.matmul %100, %102, %cst_95 {dimension_numbers = #tpu.dot_dimension_numbers<[1], [0], [0], [1], [0, 0, 1, 1], [], []>} : vector<64x128xbf16>, vector<128x128xbf16>, vector<64x128xf32> -> vector<64x128xf32>
    %104 = arith.addf %97, %103 : vector<64x128xf32>
    %c3_96 = arith.constant 3 : index
    %c0_97 = arith.constant 0 : index
    %c0_98 = arith.constant 0 : index
    %c0_99 = arith.constant 0 : index
    %105 = vector.load %arg12[%c3_96, %c0_97, %c0_98, %c0_99] : memref<4x9x16x128xbf16, #tpu.memory_space<vmem>>, vector<1x8x8x128xbf16>
    %106 = vector.shape_cast %105 : vector<1x8x8x128xbf16> to vector<8x8x128xbf16>
    %107 = vector.shape_cast %106 : vector<8x8x128xbf16> to vector<64x128xbf16>
    %c4 = arith.constant 4 : index
    %c0_100 = arith.constant 0 : index
    %c0_101 = arith.constant 0 : index
    %108 = vector.load %arg5[%c4, %c0_100, %c0_101] : memref<9x128x128xbf16, #tpu.memory_space<vmem>>, vector<1x128x128xbf16>
    %109 = vector.shape_cast %108 : vector<1x128x128xbf16> to vector<128x128xbf16>
    %cst_102 = arith.constant dense<0.000000e+00> : vector<64x128xf32>
    %110 = tpu.matmul %107, %109, %cst_102 {dimension_numbers = #tpu.dot_dimension_numbers<[1], [0], [0], [1], [0, 0, 1, 1], [], []>} : vector<64x128xbf16>, vector<128x128xbf16>, vector<64x128xf32> -> vector<64x128xf32>
    %111 = arith.addf %104, %110 : vector<64x128xf32>
    %c2_103 = arith.constant 2 : index
    %c0_104 = arith.constant 0 : index
    %c1_105 = arith.constant 1 : index
    %c0_106 = arith.constant 0 : index
    %112 = vector.load %arg12[%c2_103, %c0_104, %c1_105, %c0_106] : memref<4x9x16x128xbf16, #tpu.memory_space<vmem>>, vector<1x8x8x128xbf16>
    %113 = vector.shape_cast %112 : vector<1x8x8x128xbf16> to vector<8x8x128xbf16>
    %114 = vector.shape_cast %113 : vector<8x8x128xbf16> to vector<64x128xbf16>
    %c5 = arith.constant 5 : index
    %c0_107 = arith.constant 0 : index
    %c0_108 = arith.constant 0 : index
    %115 = vector.load %arg5[%c5, %c0_107, %c0_108] : memref<9x128x128xbf16, #tpu.memory_space<vmem>>, vector<1x128x128xbf16>
    %116 = vector.shape_cast %115 : vector<1x128x128xbf16> to vector<128x128xbf16>
    %cst_109 = arith.constant dense<0.000000e+00> : vector<64x128xf32>
    %117 = tpu.matmul %114, %116, %cst_109 {dimension_numbers = #tpu.dot_dimension_numbers<[1], [0], [0], [1], [0, 0, 1, 1], [], []>} : vector<64x128xbf16>, vector<128x128xbf16>, vector<64x128xf32> -> vector<64x128xf32>
    %118 = arith.addf %111, %117 : vector<64x128xf32>
    %c0_110 = arith.constant 0 : index
    %c1_111 = arith.constant 1 : index
    %c0_112 = arith.constant 0 : index
    %c0_113 = arith.constant 0 : index
    %119 = vector.load %arg12[%c0_110, %c1_111, %c0_112, %c0_113] : memref<4x9x16x128xbf16, #tpu.memory_space<vmem>>, vector<1x8x8x128xbf16>
    %120 = vector.shape_cast %119 : vector<1x8x8x128xbf16> to vector<8x8x128xbf16>
    %121 = vector.shape_cast %120 : vector<8x8x128xbf16> to vector<64x128xbf16>
    %c6 = arith.constant 6 : index
    %c0_114 = arith.constant 0 : index
    %c0_115 = arith.constant 0 : index
    %122 = vector.load %arg5[%c6, %c0_114, %c0_115] : memref<9x128x128xbf16, #tpu.memory_space<vmem>>, vector<1x128x128xbf16>
    %123 = vector.shape_cast %122 : vector<1x128x128xbf16> to vector<128x128xbf16>
    %cst_116 = arith.constant dense<0.000000e+00> : vector<64x128xf32>
    %124 = tpu.matmul %121, %123, %cst_116 {dimension_numbers = #tpu.dot_dimension_numbers<[1], [0], [0], [1], [0, 0, 1, 1], [], []>} : vector<64x128xbf16>, vector<128x128xbf16>, vector<64x128xf32> -> vector<64x128xf32>
    %125 = arith.addf %118, %124 : vector<64x128xf32>
    %c1_117 = arith.constant 1 : index
    %c1_118 = arith.constant 1 : index
    %c0_119 = arith.constant 0 : index
    %c0_120 = arith.constant 0 : index
    %126 = vector.load %arg12[%c1_117, %c1_118, %c0_119, %c0_120] : memref<4x9x16x128xbf16, #tpu.memory_space<vmem>>, vector<1x8x8x128xbf16>
    %127 = vector.shape_cast %126 : vector<1x8x8x128xbf16> to vector<8x8x128xbf16>
    %128 = vector.shape_cast %127 : vector<8x8x128xbf16> to vector<64x128xbf16>
    %c7 = arith.constant 7 : index
    %c0_121 = arith.constant 0 : index
    %c0_122 = arith.constant 0 : index
    %129 = vector.load %arg5[%c7, %c0_121, %c0_122] : memref<9x128x128xbf16, #tpu.memory_space<vmem>>, vector<1x128x128xbf16>
    %130 = vector.shape_cast %129 : vector<1x128x128xbf16> to vector<128x128xbf16>
    %cst_123 = arith.constant dense<0.000000e+00> : vector<64x128xf32>
    %131 = tpu.matmul %128, %130, %cst_123 {dimension_numbers = #tpu.dot_dimension_numbers<[1], [0], [0], [1], [0, 0, 1, 1], [], []>} : vector<64x128xbf16>, vector<128x128xbf16>, vector<64x128xf32> -> vector<64x128xf32>
    %132 = arith.addf %125, %131 : vector<64x128xf32>
    %c0_124 = arith.constant 0 : index
    %c1_125 = arith.constant 1 : index
    %c1_126 = arith.constant 1 : index
    %c0_127 = arith.constant 0 : index
    %133 = vector.load %arg12[%c0_124, %c1_125, %c1_126, %c0_127] : memref<4x9x16x128xbf16, #tpu.memory_space<vmem>>, vector<1x8x8x128xbf16>
    %134 = vector.shape_cast %133 : vector<1x8x8x128xbf16> to vector<8x8x128xbf16>
    %135 = vector.shape_cast %134 : vector<8x8x128xbf16> to vector<64x128xbf16>
    %c8 = arith.constant 8 : index
    %c0_128 = arith.constant 0 : index
    %c0_129 = arith.constant 0 : index
    %136 = vector.load %arg5[%c8, %c0_128, %c0_129] : memref<9x128x128xbf16, #tpu.memory_space<vmem>>, vector<1x128x128xbf16>
    %137 = vector.shape_cast %136 : vector<1x128x128xbf16> to vector<128x128xbf16>
    %cst_130 = arith.constant dense<0.000000e+00> : vector<64x128xf32>
    %138 = tpu.matmul %135, %137, %cst_130 {dimension_numbers = #tpu.dot_dimension_numbers<[1], [0], [0], [1], [0, 0, 1, 1], [], []>} : vector<64x128xbf16>, vector<128x128xbf16>, vector<64x128xf32> -> vector<64x128xf32>
    %139 = arith.addf %132, %138 : vector<64x128xf32>
    %c0_131 = arith.constant 0 : index
    %c0_132 = arith.constant 0 : index
    %140 = vector.load %arg6[%c0_131, %c0_132] : memref<1x128xf32, #tpu.memory_space<vmem>>, vector<1x128xf32>
    %141 = vector.broadcast %140 : vector<1x128xf32> to vector<64x128xf32>
    %142 = arith.addf %139, %141 : vector<64x128xf32>
    %cst_133 = arith.constant 0.000000e+00 : f32
    %143 = vector.broadcast %cst_133 : f32 to vector<64x128xf32>
    %144 = arith.maximumf %142, %143 : vector<64x128xf32>
    %145 = arith.truncf %144 : vector<64x128xf32> to vector<64x128xbf16>
    %c0_134 = arith.constant 0 : index
    %c0_135 = arith.constant 0 : index
    %146 = vector.load %arg7[%c0_134, %c0_135] : memref<128x128xbf16, #tpu.memory_space<vmem>>, vector<128x128xbf16>
    %cst_136 = arith.constant dense<0.000000e+00> : vector<64x128xf32>
    %147 = tpu.matmul %145, %146, %cst_136 {dimension_numbers = #tpu.dot_dimension_numbers<[1], [0], [0], [1], [0, 0, 1, 1], [], []>} : vector<64x128xbf16>, vector<128x128xbf16>, vector<64x128xf32> -> vector<64x128xf32>
    %c0_137 = arith.constant 0 : index
    %c0_138 = arith.constant 0 : index
    %148 = vector.load %arg8[%c0_137, %c0_138] : memref<1x128xf32, #tpu.memory_space<vmem>>, vector<1x128xf32>
    %149 = vector.broadcast %148 : vector<1x128xf32> to vector<64x128xf32>
    %150 = arith.addf %147, %149 : vector<64x128xf32>
    %c3_139 = arith.constant 3 : index
    %c0_140 = arith.constant 0 : index
    %c0_141 = arith.constant 0 : index
    %c0_142 = arith.constant 0 : index
    %151 = vector.load %arg1[%c3_139, %c0_140, %c0_141, %c0_142] : memref<4x9x16x8xbf16, #tpu.memory_space<vmem>>, vector<1x8x8x8xbf16>
    %152 = vector.shape_cast %151 : vector<1x8x8x8xbf16> to vector<8x8x8xbf16>
    %153 = vector.shape_cast %152 : vector<8x8x8xbf16> to vector<64x8xbf16>
    %c0_143 = arith.constant 0 : index
    %c0_144 = arith.constant 0 : index
    %154 = vector.load %arg9[%c0_143, %c0_144] : memref<8x128xbf16, #tpu.memory_space<vmem>>, vector<8x128xbf16>
    %cst_145 = arith.constant dense<0.000000e+00> : vector<64x128xf32>
    %155 = tpu.matmul %153, %154, %cst_145 {dimension_numbers = #tpu.dot_dimension_numbers<[1], [0], [0], [1], [0, 0, 1, 1], [], []>} : vector<64x8xbf16>, vector<8x128xbf16>, vector<64x128xf32> -> vector<64x128xf32>
    %c0_146 = arith.constant 0 : index
    %c0_147 = arith.constant 0 : index
    %156 = vector.load %arg10[%c0_146, %c0_147] : memref<1x128xf32, #tpu.memory_space<vmem>>, vector<1x128xf32>
    %157 = vector.broadcast %156 : vector<1x128xf32> to vector<64x128xf32>
    %158 = arith.addf %155, %157 : vector<64x128xf32>
    %159 = arith.addf %150, %158 : vector<64x128xf32>
    %cst_148 = arith.constant 0.000000e+00 : f32
    %160 = vector.broadcast %cst_148 : f32 to vector<64x128xf32>
    %161 = arith.maximumf %159, %160 : vector<64x128xf32>
    %c0_149 = arith.constant 0 : index
    %c0_150 = arith.constant 0 : index
    %c0_151 = arith.constant 0 : index
    %162 = vector.load %arg11[%c0_149, %c0_150, %c0_151] : memref<1x64x128xf32, #tpu.memory_space<vmem>>, vector<1x64x128xf32>
    %163 = vector.shape_cast %162 : vector<1x64x128xf32> to vector<64x128xf32>
    %164 = vector.shape_cast %161 : vector<64x128xf32> to vector<1x64x128xf32>
    tpu.vector_store %arg11[%c0_149, %c0_150, %c0_151], %164 {strides = array<i32>} : memref<1x64x128xf32, #tpu.memory_space<vmem>>, vector<1x64x128xf32>,
    return
  }
  func.func @transform_0(%arg0: i32) -> (i32, i32, i32, i32) {
    %c0_i32 = arith.constant 0 : i32
    %c0_i32_0 = arith.constant 0 : i32
    %c0_i32_1 = arith.constant 0 : i32
    %c0_i32_2 = arith.constant 0 : i32
    return %arg0, %c0_i32, %c0_i32_0, %c0_i32_1 : i32, i32, i32, i32
  }
  func.func @transform_1(%arg0: i32) -> (i32, i32, i32) {
    %c0_i32 = arith.constant 0 : i32
    %c0_i32_0 = arith.constant 0 : i32
    %c0_i32_1 = arith.constant 0 : i32
    %c0_i32_2 = arith.constant 0 : i32
    return %c0_i32, %c0_i32_0, %c0_i32_1 : i32, i32, i32
  }
  func.func @transform_2(%arg0: i32) -> (i32, i32) {
    %c0_i32 = arith.constant 0 : i32
    %c0_i32_0 = arith.constant 0 : i32
    %c0_i32_1 = arith.constant 0 : i32
    return %c0_i32, %c0_i32_0 : i32, i32
  }
  func.func @transform_3(%arg0: i32) -> (i32, i32) {
    %c0_i32 = arith.constant 0 : i32
    %c0_i32_0 = arith.constant 0 : i32
    %c0_i32_1 = arith.constant 0 : i32
    return %c0_i32, %c0_i32_0 : i32, i32
  }
  func.func @transform_4(%arg0: i32) -> (i32, i32, i32) {
    %c0_i32 = arith.constant 0 : i32
    %c0_i32_0 = arith.constant 0 : i32
    %c0_i32_1 = arith.constant 0 : i32
    %c0_i32_2 = arith.constant 0 : i32
    return %c0_i32, %c0_i32_0, %c0_i32_1 : i32, i32, i32
  }
  func.func @transform_5(%arg0: i32) -> (i32, i32) {
    %c0_i32 = arith.constant 0 : i32
    %c0_i32_0 = arith.constant 0 : i32
    %c0_i32_1 = arith.constant 0 : i32
    return %c0_i32, %c0_i32_0 : i32, i32
  }
  func.func @transform_6(%arg0: i32) -> (i32, i32) {
    %c0_i32 = arith.constant 0 : i32
    %c0_i32_0 = arith.constant 0 : i32
    %c0_i32_1 = arith.constant 0 : i32
    return %c0_i32, %c0_i32_0 : i32, i32
  }
  func.func @transform_7(%arg0: i32) -> (i32, i32) {
    %c0_i32 = arith.constant 0 : i32
    %c0_i32_0 = arith.constant 0 : i32
    %c0_i32_1 = arith.constant 0 : i32
    return %c0_i32, %c0_i32_0 : i32, i32
  }
  func.func @transform_8(%arg0: i32) -> (i32, i32) {
    %c0_i32 = arith.constant 0 : i32
    %c0_i32_0 = arith.constant 0 : i32
    %c0_i32_1 = arith.constant 0 : i32
    return %c0_i32, %c0_i32_0 : i32, i32
  }
  func.func @transform_9(%arg0: i32) -> (i32, i32) {
    %c0_i32 = arith.constant 0 : i32
    %c0_i32_0 = arith.constant 0 : i32
    %c0_i32_1 = arith.constant 0 : i32
    return %c0_i32, %c0_i32_0 : i32, i32
  }
  func.func @transform_10(%arg0: i32) -> (i32, i32, i32) {
    %c0_i32 = arith.constant 0 : i32
    %c0_i32_0 = arith.constant 0 : i32
    %c0_i32_1 = arith.constant 0 : i32
    return %arg0, %c0_i32, %c0_i32_0 : i32, i32, i32
  }
}

</mosaic_0001>

<llo_original>
// kernel: bottleneck_forward.1
$region0: #{bottleneck_forward.1}
  #allocation0 [shape = 'u32[]', space=smem, size = 0x4, offset = 0x4, fixed_abs, tag = 'smem constant byte address 0x4 - core index']
  #allocation1 [shape = 'u32[72,128]{1,0:T(1,128)}', space=vmem, size = 0x9000, scoped, tag = 'internal scratch']
  #allocation2 [shape = 'bf16[4,9,16,128]{3,2,1,0:T(8,128)(2,1)}', space=vmem, size = 0x24000, scoped, tag = 'scratch operand']
  %s0 = inlined_call_operand.vmem [shape: bf16[8,9,16,8], index: 0, kind: input, shape index: {}]
  %s1 = inlined_call_operand.vmem [shape: f32[4,144,1], index: 1, kind: input, shape index: {}]
  %s2 = inlined_call_operand.vmem [shape: bf16[8,128], index: 2, kind: input, shape index: {}]
  %s3 = inlined_call_operand.vmem [shape: f32[1,128], index: 3, kind: input, shape index: {}]
  %s4 = inlined_call_operand.vmem [shape: bf16[9,128,128], index: 4, kind: input, shape index: {}]
  %s5 = inlined_call_operand.vmem [shape: f32[1,128], index: 5, kind: input, shape index: {}]
  %s6 = inlined_call_operand.vmem [shape: bf16[128,128], index: 6, kind: input, shape index: {}]
  %s7 = inlined_call_operand.vmem [shape: f32[1,128], index: 7, kind: input, shape index: {}]
  %s8 = inlined_call_operand.vmem [shape: bf16[8,128], index: 8, kind: input, shape index: {}]
  %s9 = inlined_call_operand.vmem [shape: f32[1,128], index: 9, kind: input, shape index: {}]
  %s10 = inlined_call_operand.vmem [shape: f32[2,64,128], index: 10, kind: output, shape index: {}]
  %s11 = sld [smem:[#allocation0]]
  $region73: #{bottleneck_forward.1} parent=0
    _
  %s13 = ssub.s32 1, %s11
  %s14 = scalar_select 0, %s13, %s11
  loop: start=0, step=1, limit=4
  $region2: #{bottleneck_forward.1} parent=0 // loop_pre_header
    _
  $region3: #{bottleneck_forward.1} parent=0 // loop_header
    %s16 = sphi 0, %s20
    %p17 = scmp.ge.s32.totalorder %s16, 4
    %s26 = sphi 0, %s28
    %s29 = sphi 0, %s26
    %s30 = sphi 0, %s29
    %s46 = sphi 0, %s30
    %s50 = sphi 0, %s50
    %s52 = sphi 0, %s50
    %s53 = sphi 0, %s52
    %s67 = sphi 0, %s53
    %s71 = sphi 0, %s71
    %s73 = sphi 0, %s71
    %s74 = sphi 0, %s73
    %s88 = sphi 0, %s74
    %s92 = sphi 0, %s92
    %s94 = sphi 0, %s92
    %s95 = sphi 0, %s94
    %s109 = sphi 0, %s95
    %s113 = sphi 0, %s113
    %s115 = sphi 0, %s113
    %s116 = sphi 0, %s115
    %s130 = sphi 0, %s116
    %s134 = sphi 0, %s134
    %s136 = sphi 0, %s134
    %s137 = sphi 0, %s136
    %s151 = sphi 0, %s137
    %s155 = sphi 0, %s155
    %s157 = sphi 0, %s155
    %s158 = sphi 0, %s157
    %s172 = sphi 0, %s158
    %s176 = sphi 0, %s176
    %s178 = sphi 0, %s176
    %s179 = sphi 0, %s178
    %s193 = sphi 0, %s179
    %s197 = sphi 0, %s197
    %s199 = sphi 0, %s197
    %s200 = sphi 0, %s199
    %s214 = sphi 0, %s200
    %s218 = sphi 0, %s218
    %s220 = sphi 0, %s218
    %s221 = sphi 0, %s220
    %s235 = sphi 0, %s221
    %s241 = sphi 0, %s243
    %s244 = sphi 0, %s241
    %s245 = sphi 0, %s244
    %s261 = sphi 0, %s245
  $region4: #{bottleneck_forward.1} parent=0 // loop_header_branch
    %19 = sbr.rel (%p17) target = $region8
  $region5: #{bottleneck_forward.1} parent=0 // loop_body
    %s21 = ssub.s32 %s16, 1
    %s22 = ssub.s32 %s16, 2
    %s23 = sadd.s32 %s16, 1
    %s24 = ssub.s32 %s16, %s23
    %p25 = scmp.eq.s32.totalorder %s24, 0
    %s27 = sadd.s32 %s26, 1
    %s28 = scalar_select %p25, %s26, %s27
    %p31 = pneg %p25
    %p32 = scmp.eq.s32.totalorder %s16, 1
    %p33 = por %p31, %p32
    %p34 = scmp.ne.s32.totalorder %s26, %s29
    %p35 = scmp.eq.s32.totalorder %s16, 0
    %p36 = por %p34, %p35
    %p37 = scmp.ne.s32.totalorder %s26, %s29
    %p38 = scmp.eq.s32.totalorder %s21, 1
    %p39 = por %p37, %p38
    %p40 = scmp.ne.s32.totalorder %s29, %s30
    %p41 = scmp.eq.s32.totalorder %s21, 0
    %p42 = por %p40, %p41
    %p43 = scmp.ne.s32.totalorder %s29, %s30
    %p44 = scmp.eq.s32.totalorder %s22, 1
    %p45 = por %p43, %p44
    %p47 = scmp.ne.s32.totalorder %s30, %s46
    %p48 = scmp.eq.s32.totalorder %s22, 0
    %p49 = por %p47, %p48
    %s51 = sadd.s32 %s50, 1
    %p54 = scmp.eq.s32.totalorder %s16, 1
    %p55 = scmp.ne.s32.totalorder %s50, %s52
    %p56 = scmp.eq.s32.totalorder %s16, 0
    %p57 = por %p55, %p56
    %p58 = scmp.ne.s32.totalorder %s50, %s52
    %p59 = scmp.eq.s32.totalorder %s21, 1
    %p60 = por %p58, %p59
    %p61 = scmp.ne.s32.totalorder %s52, %s53
    %p62 = scmp.eq.s32.totalorder %s21, 0
    %p63 = por %p61, %p62
    %p64 = scmp.ne.s32.totalorder %s52, %s53
    %p65 = scmp.eq.s32.totalorder %s22, 1
    %p66 = por %p64, %p65
    %p68 = scmp.ne.s32.totalorder %s53, %s67
    %p69 = scmp.eq.s32.totalorder %s22, 0
    %p70 = por %p68, %p69
    %s72 = sadd.s32 %s71, 1
    %p75 = scmp.eq.s32.totalorder %s16, 1
    %p76 = scmp.ne.s32.totalorder %s71, %s73
    %p77 = scmp.eq.s32.totalorder %s16, 0
    %p78 = por %p76, %p77
    %p79 = scmp.ne.s32.totalorder %s71, %s73
    %p80 = scmp.eq.s32.totalorder %s21, 1
    %p81 = por %p79, %p80
    %p82 = scmp.ne.s32.totalorder %s73, %s74
    %p83 = scmp.eq.s32.totalorder %s21, 0
    %p84 = por %p82, %p83
    %p85 = scmp.ne.s32.totalorder %s73, %s74
    %p86 = scmp.eq.s32.totalorder %s22, 1
    %p87 = por %p85, %p86
    %p89 = scmp.ne.s32.totalorder %s74, %s88
    %p90 = scmp.eq.s32.totalorder %s22, 0
    %p91 = por %p89, %p90
    %s93 = sadd.s32 %s92, 1
    %p96 = scmp.eq.s32.totalorder %s16, 1
    %p97 = scmp.ne.s32.totalorder %s92, %s94
    %p98 = scmp.eq.s32.totalorder %s16, 0
    %p99 = por %p97, %p98
    %p100 = scmp.ne.s32.totalorder %s92, %s94
    %p101 = scmp.eq.s32.totalorder %s21, 1
    %p102 = por %p100, %p101
    %p103 = scmp.ne.s32.totalorder %s94, %s95
    %p104 = scmp.eq.s32.totalorder %s21, 0
    %p105 = por %p103, %p104
    %p106 = scmp.ne.s32.totalorder %s94, %s95
    %p107 = scmp.eq.s32.totalorder %s22, 1
    %p108 = por %p106, %p107
    %p110 = scmp.ne.s32.totalorder %s95, %s109
    %p111 = scmp.eq.s32.totalorder %s22, 0
    %p112 = por %p110, %p111
    %s114 = sadd.s32 %s113, 1
    %p117 = scmp.eq.s32.totalorder %s16, 1
    %p118 = scmp.ne.s32.totalorder %s113, %s115
    %p119 = scmp.eq.s32.totalorder %s16, 0
    %p120 = por %p118, %p119
    %p121 = scmp.ne.s32.totalorder %s113, %s115
    %p122 = scmp.eq.s32.totalorder %s21, 1
    %p123 = por %p121, %p122
    %p124 = scmp.ne.s32.totalorder %s115, %s116
    %p125 = scmp.eq.s32.totalorder %s21, 0
    %p126 = por %p124, %p125
    %p127 = scmp.ne.s32.totalorder %s115, %s116
    %p128 = scmp.eq.s32.totalorder %s22, 1
    %p129 = por %p127, %p128
    %p131 = scmp.ne.s32.totalorder %s116, %s130
    %p132 = scmp.eq.s32.totalorder %s22, 0
    %p133 = por %p131, %p132
    %s135 = sadd.s32 %s134, 1
    %p138 = scmp.eq.s32.totalorder %s16, 1
    %p139 = scmp.ne.s32.totalorder %s134, %s136
    %p140 = scmp.eq.s32.totalorder %s16, 0
    %p141 = por %p139, %p140
    %p142 = scmp.ne.s32.totalorder %s134, %s136
    %p143 = scmp.eq.s32.totalorder %s21, 1
    %p144 = por %p142, %p143
    %p145 = scmp.ne.s32.totalorder %s136, %s137
    %p146 = scmp.eq.s32.totalorder %s21, 0
    %p147 = por %p145, %p146
    %p148 = scmp.ne.s32.totalorder %s136, %s137
    %p149 = scmp.eq.s32.totalorder %s22, 1
    %p150 = por %p148, %p149
    %p152 = scmp.ne.s32.totalorder %s137, %s151
    %p153 = scmp.eq.s32.totalorder %s22, 0
    %p154 = por %p152, %p153
    %s156 = sadd.s32 %s155, 1
    %p159 = scmp.eq.s32.totalorder %s16, 1
    %p160 = scmp.ne.s32.totalorder %s155, %s157
    %p161 = scmp.eq.s32.totalorder %s16, 0
    %p162 = por %p160, %p161
    %p163 = scmp.ne.s32.totalorder %s155, %s157
    %p164 = scmp.eq.s32.totalorder %s21, 1
    %p165 = por %p163, %p164
    %p166 = scmp.ne.s32.totalorder %s157, %s158
    %p167 = scmp.eq.s32.totalorder %s21, 0
    %p168 = por %p166, %p167
    %p169 = scmp.ne.s32.totalorder %s157, %s158
    %p170 = scmp.eq.s32.totalorder %s22, 1
    %p171 = por %p169, %p170
    %p173 = scmp.ne.s32.totalorder %s158, %s172
    %p174 = scmp.eq.s32.totalorder %s22, 0
    %p175 = por %p173, %p174
    %s177 = sadd.s32 %s176, 1
    %p180 = scmp.eq.s32.totalorder %s16, 1
    %p181 = scmp.ne.s32.totalorder %s176, %s178
    %p182 = scmp.eq.s32.totalorder %s16, 0
    %p183 = por %p181, %p182
    %p184 = scmp.ne.s32.totalorder %s176, %s178
    %p185 = scmp.eq.s32.totalorder %s21, 1
    %p186 = por %p184, %p185
    %p187 = scmp.ne.s32.totalorder %s178, %s179
    %p188 = scmp.eq.s32.totalorder %s21, 0
    %p189 = por %p187, %p188
    %p190 = scmp.ne.s32.totalorder %s178, %s179
    %p191 = scmp.eq.s32.totalorder %s22, 1
    %p192 = por %p190, %p191
    %p194 = scmp.ne.s32.totalorder %s179, %s193
    %p195 = scmp.eq.s32.totalorder %s22, 0
    %p196 = por %p194, %p195
    %s198 = sadd.s32 %s197, 1
    %p201 = scmp.eq.s32.totalorder %s16, 1
    %p202 = scmp.ne.s32.totalorder %s197, %s199
    %p203 = scmp.eq.s32.totalorder %s16, 0
    %p204 = por %p202, %p203
    %p205 = scmp.ne.s32.totalorder %s197, %s199
    %p206 = scmp.eq.s32.totalorder %s21, 1
    %p207 = por %p205, %p206
    %p208 = scmp.ne.s32.totalorder %s199, %s200
    %p209 = scmp.eq.s32.totalorder %s21, 0
    %p210 = por %p208, %p209
    %p211 = scmp.ne.s32.totalorder %s199, %s200
    %p212 = scmp.eq.s32.totalorder %s22, 1
    %p213 = por %p211, %p212
    %p215 = scmp.ne.s32.totalorder %s200, %s214
    %p216 = scmp.eq.s32.totalorder %s22, 0
    %p217 = por %p215, %p216
    %s219 = sadd.s32 %s218, 1
    %p222 = scmp.eq.s32.totalorder %s16, 1
    %p223 = scmp.ne.s32.totalorder %s218, %s220
    %p224 = scmp.eq.s32.totalorder %s16, 0
    %p225 = por %p223, %p224
    %p226 = scmp.ne.s32.totalorder %s218, %s220
    %p227 = scmp.eq.s32.totalorder %s21, 1
    %p228 = por %p226, %p227
    %p229 = scmp.ne.s32.totalorder %s220, %s221
    %p230 = scmp.eq.s32.totalorder %s21, 0
    %p231 = por %p229, %p230
    %p232 = scmp.ne.s32.totalorder %s220, %s221
    %p233 = scmp.eq.s32.totalorder %s22, 1
    %p234 = por %p232, %p233
    %p236 = scmp.ne.s32.totalorder %s221, %s235
    %p237 = scmp.eq.s32.totalorder %s22, 0
    %p238 = por %p236, %p237
    %s239 = ssub.s32 %s16, %s23
    %p240 = scmp.eq.s32.totalorder %s239, 0
    %s242 = sadd.s32 %s241, 1
    %s243 = scalar_select %p240, %s241, %s242
    %p246 = pneg %p240
    %p247 = scmp.eq.s32.totalorder %s16, 1
    %p248 = por %p246, %p247
    %p249 = scmp.ne.s32.totalorder %s241, %s244
    %p250 = scmp.eq.s32.totalorder %s16, 0
    %p251 = por %p249, %p250
    %p252 = scmp.ne.s32.totalorder %s241, %s244
    %p253 = scmp.eq.s32.totalorder %s21, 1
    %p254 = por %p252, %p253
    %p255 = scmp.ne.s32.totalorder %s244, %s245
    %p256 = scmp.eq.s32.totalorder %s21, 0
    %p257 = por %p255, %p256
    %p258 = scmp.ne.s32.totalorder %s244, %s245
    %p259 = scmp.eq.s32.totalorder %s22, 1
    %p260 = por %p258, %p259
    %p262 = scmp.ne.s32.totalorder %s245, %s261
    %p263 = scmp.eq.s32.totalorder %s22, 0
    %p264 = por %p262, %p263
    %p265 = scmp.le.s32.totalorder 1, %s16
    %p266 = scmp.lt.s32.totalorder %s16, 3
    %p267 = pnand %p265, %p266
    %p268 = pneg %p267
    // Predicated region
    $region9: #{bottleneck_forward.1} parent=5 // pred_check
      _
    $region10: #{bottleneck_forward.1} parent=5 // pred_check_branch
      %270 = sbr.rel (%p267) target = $region12
    $region11: #{bottleneck_forward.1} parent=5 // pred_region
      %s271 = ssub.s32 %s16, 1
      // Predicated region
      $region13: #{bottleneck_forward.1} parent=11 // pred_check
        %p272 = pneg %p63
      $region14: #{bottleneck_forward.1} parent=11 // pred_check_branch
        %274 = sbr.rel (%p272) target = $region16
      $region15: #{bottleneck_forward.1} parent=11 // pred_region
        _
      $region16: #{bottleneck_forward.1} parent=11 // pred_fallthru
        _
      // Predicated region
      $region17: #{bottleneck_forward.1} parent=11 // pred_check
        %p275 = pneg %p84
      $region18: #{bottleneck_forward.1} parent=11 // pred_check_branch
        %277 = sbr.rel (%p275) target = $region20
      $region19: #{bottleneck_forward.1} parent=11 // pred_region
        _
      $region20: #{bottleneck_forward.1} parent=11 // pred_fallthru
        _
      // Predicated region
      $region21: #{bottleneck_forward.1} parent=11 // pred_check
        %p278 = pneg %p105
      $region22: #{bottleneck_forward.1} parent=11 // pred_check_branch
        %280 = sbr.rel (%p278) target = $region24
      $region23: #{bottleneck_forward.1} parent=11 // pred_region
        _
      $region24: #{bottleneck_forward.1} parent=11 // pred_fallthru
        _
      // Predicated region
      $region25: #{bottleneck_forward.1} parent=11 // pred_check
        %p281 = pneg %p126
      $region26: #{bottleneck_forward.1} parent=11 // pred_check_branch
        %283 = sbr.rel (%p281) target = $region28
      $region27: #{bottleneck_forward.1} parent=11 // pred_region
        _
      $region28: #{bottleneck_forward.1} parent=11 // pred_fallthru
        _
      // Predicated region
      $region29: #{bottleneck_forward.1} parent=11 // pred_check
        %p284 = pneg %p147
      $region30: #{bottleneck_forward.1} parent=11 // pred_check_branch
        %286 = sbr.rel (%p284) target = $region32
      $region31: #{bottleneck_forward.1} parent=11 // pred_region
        _
      $region32: #{bottleneck_forward.1} parent=11 // pred_fallthru
        _
      // Predicated region
      $region33: #{bottleneck_forward.1} parent=11 // pred_check
        %p287 = pneg %p168
      $region34: #{bottleneck_forward.1} parent=11 // pred_check_branch
        %289 = sbr.rel (%p287) target = $region36
      $region35: #{bottleneck_forward.1} parent=11 // pred_region
        _
      $region36: #{bottleneck_forward.1} parent=11 // pred_fallthru
        _
      // Predicated region
      $region37: #{bottleneck_forward.1} parent=11 // pred_check
        %p290 = pneg %p189
      $region38: #{bottleneck_forward.1} parent=11 // pred_check_branch
        %292 = sbr.rel (%p290) target = $region40
      $region39: #{bottleneck_forward.1} parent=11 // pred_region
        _
      $region40: #{bottleneck_forward.1} parent=11 // pred_fallthru
        _
      // Predicated region
      $region41: #{bottleneck_forward.1} parent=11 // pred_check
        %p293 = pneg %p210
      $region42: #{bottleneck_forward.1} parent=11 // pred_check_branch
        %295 = sbr.rel (%p293) target = $region44
      $region43: #{bottleneck_forward.1} parent=11 // pred_region
        _
      $region44: #{bottleneck_forward.1} parent=11 // pred_fallthru
        _
      // Predicated region
      $region45: #{bottleneck_forward.1} parent=11 // pred_check
        %p296 = pneg %p231
      $region46: #{bottleneck_forward.1} parent=11 // pred_check_branch
        %298 = sbr.rel (%p296) target = $region48
      $region47: #{bottleneck_forward.1} parent=11 // pred_region
        _
      $region48: #{bottleneck_forward.1} parent=11 // pred_fallthru
        _
    $region12: #{bottleneck_forward.1} parent=5 // pred_fallthru
      _
    %p299 = scmp.lt.s32.totalorder %s16, 2
    // Predicated region
    $region49: #{bottleneck_forward.1} parent=5 // pred_check
      %p300 = pneg %p299
    $region50: #{bottleneck_forward.1} parent=5 // pred_check_branch
      %302 = sbr.rel (%p300) target = $region52
    $region51: #{bottleneck_forward.1} parent=5 // pred_region
      // Predicated region
      $region53: #{bottleneck_forward.1} parent=51 // pred_check
        %p303 = pneg %p36
      $region54: #{bottleneck_forward.1} parent=51 // pred_check_branch
        %305 = sbr.rel (%p303) target = $region56
      $region55: #{bottleneck_forward.1} parent=51 // pred_region
        %s306 = smul.u32 4, %s16
        %p307 = scmp.lt.s32.totalorder %s306, 7
        %s308 = scalar_select %p307, %s306, 7
        %s309 = smul.addr %s308, 18
        %s310 = smul.addr %s309, 4
        %s311 = scalar_lea.vmem %s0, %s310
        %s312 = smul.u32 4, %s16
      $region56: #{bottleneck_forward.1} parent=51 // pred_fallthru
        _
    $region52: #{bottleneck_forward.1} parent=5 // pred_fallthru
      _
    %p313 = scmp.le.s32.totalorder 1, %s16
    %p314 = scmp.lt.s32.totalorder %s16, 3
    %p315 = pnand %p313, %p314
    %p316 = pneg %p315
    // Predicated region
    $region57: #{bottleneck_forward.1} parent=5 // pred_check
      _
    $region58: #{bottleneck_forward.1} parent=5 // pred_check_branch
      %318 = sbr.rel (%p315) target = $region60
    $region59: #{bottleneck_forward.1} parent=5 // pred_region
      %s319 = ssub.s32 %s16, 1
      %s320 = smul.u32 4, %s21
      %p321 = scmp.lt.s32.totalorder %s320, 7
      %s322 = scalar_select %p321, %s320, 7
      %s323 = smul.addr %s322, 18
      %s324 = smul.addr %s323, 4
      %s325 = scalar_lea.vmem %s0, %s324
      %p326 = pneg %p42
      %p327 = pneg %p39
      %p328 = pneg %p63
      %p329 = pneg %p60
      %p330 = pneg %p84
      %p331 = pneg %p81
      %p332 = pneg %p105
      %p333 = pneg %p102
      %p334 = pneg %p126
      %p335 = pneg %p123
      %p336 = pneg %p147
      %p337 = pneg %p144
      %p338 = pneg %p168
      %p339 = pneg %p165
      %p340 = pneg %p189
      %p341 = pneg %p186
      %p342 = pneg %p210
      %p343 = pneg %p207
      %p344 = pneg %p231
      %p345 = pneg %p228
      %p346 = pneg %p257
      %p347 = pneg %p254
      %p348 = scmp.lt.s32.totalorder %s21, 1
      %s349 = scalar_select %p348, %s21, 1
      %s350 = smul.addr %s349, 8
      %s351 = smul.addr %s350, 8
      %s352 = scalar_lea.vmem %s10, %s351
      %s353 = smul.u32 4, %s21
      %p354 = scmp.lt.s32.totalorder %s353, 7
      %s355 = scalar_select %p354, %s353, 7
      %s356 = smul.addr %s355, 18
      %s357 = smul.addr %s356, 4
      %s358 = scalar_lea.vmem %s0, %s357
      %s359 = smul.u32 4, %s21
      %p360 = scmp.lt.s32.totalorder %s21, 1
      %s361 = scalar_select %p360, %s21, 1
      %s362 = smul.addr %s361, 8
      %s363 = smul.addr %s362, 8
      %s364 = scalar_lea.vmem %s10, %s363
      %v366 = vld [vmem:[%s358] sm:$0xf]
      %v367 = vld [vmem:[%s358 + $0x4] sm:$0xf]
      %v368 = vld [vmem:[%s358 + $0x8] sm:$0xf]
      %v369 = vld [vmem:[%s358 + $0xc] sm:$0xf]
      %v370 = vld [vmem:[%s358 + $0x10] sm:$0xf]
      %v371 = vld [vmem:[%s358 + $0x14] sm:$0xf]
      %v372 = vld [vmem:[%s358 + $0x18] sm:$0xf]
      %v373 = vld [vmem:[%s358 + $0x1c] sm:$0xf]
      %v374 = vld [vmem:[%s358 + $0x20] sm:$0xf]
      %v375 = vld [vmem:[%s358 + $0x24] sm:$0xf]
      %v376 = vld [vmem:[%s358 + $0x28] sm:$0xf]
      %v377 = vld [vmem:[%s358 + $0x2c] sm:$0xf]
      %v378 = vld [vmem:[%s358 + $0x30] sm:$0xf]
      %v379 = vld [vmem:[%s358 + $0x34] sm:$0xf]
      %v380 = vld [vmem:[%s358 + $0x38] sm:$0xf]
      %v381 = vld [vmem:[%s358 + $0x3c] sm:$0xf]
      %v382 = vld [vmem:[%s358 + $0x40] sm:$0xf]
      %v383 = vld [vmem:[%s358 + $0x44] sm:$0xf]
      %v384 = vld [vmem:[%s2] sm:$0xf]
      %v385 = vld [vmem:[%s3] sm:$0x1]
      %v387 = vperm.slane %v385, 0
      %v407 = vunpack.c.l.b16 %v366
      %v408 = vunpack.c.l.b16 %v367
      %v409 = vunpack.c.l.b16 %v368
      %v410 = vunpack.c.l.b16 %v369
      %v411 = vunpack.c.l.b16 %v370
      %v412 = vunpack.c.l.b16 %v371
      %v413 = vunpack.c.l.b16 %v372
      %v414 = vunpack.c.l.b16 %v373
      %v415 = vunpack.c.l.b16 %v374
      %v416 = vunpack.c.l.b16 %v375
      %v417 = vunpack.c.l.b16 %v376
      %v418 = vunpack.c.l.b16 %v377
      %v419 = vunpack.c.l.b16 %v378
      %v420 = vunpack.c.l.b16 %v379
      %v421 = vunpack.c.l.b16 %v380
      %v422 = vunpack.c.l.b16 %v381
      %v423 = vunpack.c.l.b16 %v382
      %v424 = vunpack.c.l.b16 %v383
      %v425 = vpack.c.b16 %v408, %v407
      %v426 = vpack.c.b16 %v410, %v409
      %v427 = vpack.c.b16 %v412, %v411
      %v428 = vpack.c.b16 %v414, %v413
      %v429 = vpack.c.b16 %v416, %v415
      %v430 = vpack.c.b16 %v418, %v417
      %v431 = vpack.c.b16 %v420, %v419
      %v432 = vpack.c.b16 %v422, %v421
      %v433 = vpack.c.b16 %v424, %v423
      %vm434 = vcmask 64512
      %v436 = vsel %vm434, %v425, 0
      %v439 = vsel %vm434, %v426, 0
      %v442 = vsel %vm434, %v427, 0
      %v445 = vsel %vm434, %v428, 0
      %v448 = vsel %vm434, %v429, 0
      %v451 = vsel %vm434, %v430, 0
      %v454 = vsel %vm434, %v431, 0
      %v457 = vsel %vm434, %v432, 0
      %v460 = vsel %vm434, %v433, 0
      %vm462 = vcmask 1043456
      %v464 = vsel %vm462, %v384, 0
      %466 = vmatpush.bf16.msra.mxu0 0
      %467 = vmatpush.bf16.msra.mxu0 0
      %468 = vmatpush.bf16.msra.mxu0 0
      %469 = vmatpush.bf16.msra.mxu0 0
      %470 = vmatpush.bf16.msra.mxu0 0
      %471 = vmatpush.bf16.msra.mxu0 0
      %472 = vmatpush.bf16.msra.mxu0 0
      %473 = vmatpush.bf16.msra.mxu0 %v464
      %474 = vmatmul.bf16.gmra.mxu0 %v436
      %v475 = vpop.f32.mrf.mxu0
      %v476 = vadd.f32 %v387, %v475
      %v477 = vpop.f32.mrf.mxu0
      %v478 = vadd.f32 %v387, %v477
      %479 = vmatmul.bf16.gmra.mxu0 %v439
      %v480 = vpop.f32.mrf.mxu0
      %v481 = vadd.f32 %v387, %v480
      %v482 = vpop.f32.mrf.mxu0
      %v483 = vadd.f32 %v387, %v482
      %484 = vmatmul.bf16.gmra.mxu0 %v442
      %v485 = vpop.f32.mrf.mxu0
      %v486 = vadd.f32 %v387, %v485
      %v487 = vpop.f32.mrf.mxu0
      %v488 = vadd.f32 %v387, %v487
      %489 = vmatmul.bf16.gmra.mxu0 %v445
      %v490 = vpop.f32.mrf.mxu0
      %v491 = vadd.f32 %v387, %v490
      %v492 = vpop.f32.mrf.mxu0
      %v493 = vadd.f32 %v387, %v492
      %494 = vmatmul.bf16.gmra.mxu0 %v448
      %v495 = vpop.f32.mrf.mxu0
      %v496 = vadd.f32 %v387, %v495
      %v497 = vpop.f32.mrf.mxu0
      %v498 = vadd.f32 %v387, %v497
      %499 = vmatmul.bf16.gmra.mxu0 %v451
      %v500 = vpop.f32.mrf.mxu0
      %v501 = vadd.f32 %v387, %v500
      %v502 = vpop.f32.mrf.mxu0
      %v503 = vadd.f32 %v387, %v502
      %504 = vmatmul.bf16.gmra.mxu0 %v454
      %v505 = vpop.f32.mrf.mxu0
      %v506 = vadd.f32 %v387, %v505
      %v507 = vpop.f32.mrf.mxu0
      %v508 = vadd.f32 %v387, %v507
      %509 = vmatmul.bf16.gmra.mxu0 %v457
      %v510 = vpop.f32.mrf.mxu0
      %v511 = vadd.f32 %v387, %v510
      %v512 = vpop.f32.mrf.mxu0
      %v513 = vadd.f32 %v387, %v512
      %514 = vmatmul.bf16.gmra.mxu0 %v460
      %v515 = vpop.f32.mrf.mxu0
      %v516 = vadd.f32 %v387, %v515
      %v517 = vpop.f32.mrf.mxu0
      %v518 = vadd.f32 %v387, %v517
      %519 = vdwg.mxu0
      %v520 = vmax.f32 %v476, 0.0
      %v521 = vmax.f32 %v478, 0.0
      %v522 = vmax.f32 %v481, 0.0
      %v523 = vmax.f32 %v483, 0.0
      %v524 = vmax.f32 %v486, 0.0
      %v525 = vmax.f32 %v488, 0.0
      %v526 = vmax.f32 %v491, 0.0
      %v527 = vmax.f32 %v493, 0.0
      %v528 = vmax.f32 %v496, 0.0
      %v529 = vmax.f32 %v498, 0.0
      %v530 = vmax.f32 %v501, 0.0
      %v531 = vmax.f32 %v503, 0.0
      %v532 = vmax.f32 %v506, 0.0
      %v533 = vmax.f32 %v508, 0.0
      %v534 = vmax.f32 %v511, 0.0
      %v535 = vmax.f32 %v513, 0.0
      %v536 = vmax.f32 %v516, 0.0
      %v537 = vmax.f32 %v518, 0.0
      %v538 = vld [vmem:[%s1] sm:$0xff]
      %v539 = vld [vmem:[%s1 + $0x8] sm:$0xff]
      %v540 = vld [vmem:[%s1 + $0x10] sm:$0xff]
      %v541 = vld [vmem:[%s1 + $0x18] sm:$0xff]
      %v542 = vld [vmem:[%s1 + $0x20] sm:$0xff]
      %v543 = vld [vmem:[%s1 + $0x28] sm:$0xff]
      %v544 = vld [vmem:[%s1 + $0x30] sm:$0xff]
      %v545 = vld [vmem:[%s1 + $0x38] sm:$0xff]
      %v546 = vld [vmem:[%s1 + $0x40] sm:$0xff]
      %v547 = vld [vmem:[%s1 + $0x48] sm:$0xff]
      %v548 = vld [vmem:[%s1 + $0x50] sm:$0xff]
      %v549 = vld [vmem:[%s1 + $0x58] sm:$0xff]
      %v550 = vld [vmem:[%s1 + $0x60] sm:$0xff]
      %v551 = vld [vmem:[%s1 + $0x68] sm:$0xff]
      %v552 = vld [vmem:[%s1 + $0x70] sm:$0xff]
      %v553 = vld [vmem:[%s1 + $0x78] sm:$0xff]
      %v554 = vld [vmem:[%s1 + $0x80] sm:$0xff]
      %v555 = vld [vmem:[%s1 + $0x88] sm:$0xff]
      %557 = vset.pattern.permute.xlu0 0
      %558 = vperm.xlu0 %557, %v538
      %v559 = vpop.permute.xlu0 %558
      %562 = vset.pattern.permute.xlu0 0
      %563 = vperm.xlu0 %562, %v539
      %v564 = vpop.permute.xlu0 %563
      %567 = vset.pattern.permute.xlu0 0
      %568 = vperm.xlu0 %567, %v540
      %v569 = vpop.permute.xlu0 %568
      %572 = vset.pattern.permute.xlu0 0
      %573 = vperm.xlu0 %572, %v541
      %v574 = vpop.permute.xlu0 %573
      %577 = vset.pattern.permute.xlu0 0
      %578 = vperm.xlu0 %577, %v542
      %v579 = vpop.permute.xlu0 %578
      %582 = vset.pattern.permute.xlu0 0
      %583 = vperm.xlu0 %582, %v543
      %v584 = vpop.permute.xlu0 %583
      %587 = vset.pattern.permute.xlu0 0
      %588 = vperm.xlu0 %587, %v544
      %v589 = vpop.permute.xlu0 %588
      %592 = vset.pattern.permute.xlu0 0
      %593 = vperm.xlu0 %592, %v545
      %v594 = vpop.permute.xlu0 %593
      %597 = vset.pattern.permute.xlu0 0
      %598 = vperm.xlu0 %597, %v546
      %v599 = vpop.permute.xlu0 %598
      %602 = vset.pattern.permute.xlu0 0
      %603 = vperm.xlu0 %602, %v547
      %v604 = vpop.permute.xlu0 %603
      %607 = vset.pattern.permute.xlu0 0
      %608 = vperm.xlu0 %607, %v548
      %v609 = vpop.permute.xlu0 %608
      %612 = vset.pattern.permute.xlu0 0
      %613 = vperm.xlu0 %612, %v549
      %v614 = vpop.permute.xlu0 %613
      %617 = vset.pattern.permute.xlu0 0
      %618 = vperm.xlu0 %617, %v550
      %v619 = vpop.permute.xlu0 %618
      %622 = vset.pattern.permute.xlu0 0
      %623 = vperm.xlu0 %622, %v551
      %v624 = vpop.permute.xlu0 %623
      %627 = vset.pattern.permute.xlu0 0
      %628 = vperm.xlu0 %627, %v552
      %v629 = vpop.permute.xlu0 %628
      %632 = vset.pattern.permute.xlu0 0
      %633 = vperm.xlu0 %632, %v553
      %v634 = vpop.permute.xlu0 %633
      %637 = vset.pattern.permute.xlu0 0
      %638 = vperm.xlu0 %637, %v554
      %v639 = vpop.permute.xlu0 %638
      %642 = vset.pattern.permute.xlu0 0
      %643 = vperm.xlu0 %642, %v555
      %v644 = vpop.permute.xlu0 %643
      %v646 = vmul.f32 %v520, %v559
      %v647 = vmul.f32 %v521, %v564
      %v648 = vmul.f32 %v522, %v569
      %v649 = vmul.f32 %v523, %v574
      %v650 = vmul.f32 %v524, %v579
      %v651 = vmul.f32 %v525, %v584
      %v652 = vmul.f32 %v526, %v589
      %v653 = vmul.f32 %v527, %v594
      %v654 = vmul.f32 %v528, %v599
      %v655 = vmul.f32 %v529, %v604
      %v656 = vmul.f32 %v530, %v609
      %v657 = vmul.f32 %v531, %v614
      %v658 = vmul.f32 %v532, %v619
      %v659 = vmul.f32 %v533, %v624
      %v660 = vmul.f32 %v534, %v629
      %v661 = vmul.f32 %v535, %v634
      %v662 = vmul.f32 %v536, %v639
      %v663 = vmul.f32 %v537, %v644
      %v664 = vpack.c.bf16 %v646, %v646
      %v665 = vpack.c.bf16 %v647, %v647
      %v666 = vpack.c.bf16 %v648, %v648
      %v667 = vpack.c.bf16 %v649, %v649
      %v668 = vpack.c.bf16 %v650, %v650
      %v669 = vpack.c.bf16 %v651, %v651
      %v670 = vpack.c.bf16 %v652, %v652
      %v671 = vpack.c.bf16 %v653, %v653
      %v672 = vpack.c.bf16 %v654, %v654
      %v673 = vpack.c.bf16 %v655, %v655
      %v674 = vpack.c.bf16 %v656, %v656
      %v675 = vpack.c.bf16 %v657, %v657
      %v676 = vpack.c.bf16 %v658, %v658
      %v677 = vpack.c.bf16 %v659, %v659
      %v678 = vpack.c.bf16 %v660, %v660
      %v679 = vpack.c.bf16 %v661, %v661
      %v680 = vpack.c.bf16 %v662, %v662
      %v681 = vpack.c.bf16 %v663, %v663
      %682 = vst [vmem:[#allocation2] sm:$0xf] %v664
      %683 = vst [vmem:[#allocation2 + $0x4] sm:$0xf] %v665
      %684 = vst [vmem:[#allocation2 + $0x8] sm:$0xf] %v666
      %685 = vst [vmem:[#allocation2 + $0xc] sm:$0xf] %v667
      %686 = vst [vmem:[#allocation2 + $0x10] sm:$0xf] %v668
      %687 = vst [vmem:[#allocation2 + $0x14] sm:$0xf] %v669
      %688 = vst [vmem:[#allocation2 + $0x18] sm:$0xf] %v670
      %689 = vst [vmem:[#allocation2 + $0x1c] sm:$0xf] %v671
      %690 = vst [vmem:[#allocation2 + $0x20] sm:$0xf] %v672
      %691 = vst [vmem:[#allocation2 + $0x24] sm:$0xf] %v673
      %692 = vst [vmem:[#allocation2 + $0x28] sm:$0xf] %v674
      %693 = vst [vmem:[#allocation2 + $0x2c] sm:$0xf] %v675
      %694 = vst [vmem:[#allocation2 + $0x30] sm:$0xf] %v676
      %695 = vst [vmem:[#allocation2 + $0x34] sm:$0xf] %v677
      %696 = vst [vmem:[#allocation2 + $0x38] sm:$0xf] %v678
      %697 = vst [vmem:[#allocation2 + $0x3c] sm:$0xf] %v679
      %698 = vst [vmem:[#allocation2 + $0x40] sm:$0xf] %v680
      %699 = vst [vmem:[#allocation2 + $0x44] sm:$0xf] %v681
      %s700 = scalar_lea.vmem %s358, 72
      %v701 = vld [vmem:[%s700] sm:$0xf]
      %v702 = vld [vmem:[%s700 + $0x4] sm:$0xf]
      %v703 = vld [vmem:[%s700 + $0x8] sm:$0xf]
      %v704 = vld [vmem:[%s700 + $0xc] sm:$0xf]
      %v705 = vld [vmem:[%s700 + $0x10] sm:$0xf]
      %v706 = vld [vmem:[%s700 + $0x14] sm:$0xf]
      %v707 = vld [vmem:[%s700 + $0x18] sm:$0xf]
      %v708 = vld [vmem:[%s700 + $0x1c] sm:$0xf]
      %v709 = vld [vmem:[%s700 + $0x20] sm:$0xf]
      %v710 = vld [vmem:[%s700 + $0x24] sm:$0xf]
      %v711 = vld [vmem:[%s700 + $0x28] sm:$0xf]
      %v712 = vld [vmem:[%s700 + $0x2c] sm:$0xf]
      %v713 = vld [vmem:[%s700 + $0x30] sm:$0xf]
      %v714 = vld [vmem:[%s700 + $0x34] sm:$0xf]
      %v715 = vld [vmem:[%s700 + $0x38] sm:$0xf]
      %v716 = vld [vmem:[%s700 + $0x3c] sm:$0xf]
      %v717 = vld [vmem:[%s700 + $0x40] sm:$0xf]
      %v718 = vld [vmem:[%s700 + $0x44] sm:$0xf]
      %v719 = vld [vmem:[%s2] sm:$0xf]
      %v720 = vld [vmem:[%s3] sm:$0x1]
      %v722 = vperm.slane %v720, 0
      %v742 = vunpack.c.l.b16 %v701
      %v743 = vunpack.c.l.b16 %v702
      %v744 = vunpack.c.l.b16 %v703
      %v745 = vunpack.c.l.b16 %v704
      %v746 = vunpack.c.l.b16 %v705
      %v747 = vunpack.c.l.b16 %v706
      %v748 = vunpack.c.l.b16 %v707
      %v749 = vunpack.c.l.b16 %v708
      %v750 = vunpack.c.l.b16 %v709
      %v751 = vunpack.c.l.b16 %v710
      %v752 = vunpack.c.l.b16 %v711
      %v753 = vunpack.c.l.b16 %v712
      %v754 = vunpack.c.l.b16 %v713
      %v755 = vunpack.c.l.b16 %v714
      %v756 = vunpack.c.l.b16 %v715
      %v757 = vunpack.c.l.b16 %v716
      %v758 = vunpack.c.l.b16 %v717
      %v759 = vunpack.c.l.b16 %v718
      %v760 = vpack.c.b16 %v743, %v742
      %v761 = vpack.c.b16 %v745, %v744
      %v762 = vpack.c.b16 %v747, %v746
      %v763 = vpack.c.b16 %v749, %v748
      %v764 = vpack.c.b16 %v751, %v750
      %v765 = vpack.c.b16 %v753, %v752
      %v766 = vpack.c.b16 %v755, %v754
      %v767 = vpack.c.b16 %v757, %v756
      %v768 = vpack.c.b16 %v759, %v758
      %v770 = vsel %vm434, %v760, 0
      %v773 = vsel %vm434, %v761, 0
      %v776 = vsel %vm434, %v762, 0
      %v779 = vsel %vm434, %v763, 0
      %v782 = vsel %vm434, %v764, 0
      %v785 = vsel %vm434, %v765, 0
      %v788 = vsel %vm434, %v766, 0
      %v791 = vsel %vm434, %v767, 0
      %v794 = vsel %vm434, %v768, 0
      %v797 = vsel %vm462, %v719, 0
      %799 = vmatpush.bf16.msra.mxu0 0
      %800 = vmatpush.bf16.msra.mxu0 0
      %801 = vmatpush.bf16.msra.mxu0 0
      %802 = vmatpush.bf16.msra.mxu0 0
      %803 = vmatpush.bf16.msra.mxu0 0
      %804 = vmatpush.bf16.msra.mxu0 0
      %805 = vmatpush.bf16.msra.mxu0 0
      %806 = vmatpush.bf16.msra.mxu0 %v797
      %807 = vmatmul.bf16.gmra.mxu0 %v770
      %v808 = vpop.f32.mrf.mxu0
      %v809 = vadd.f32 %v722, %v808
      %v810 = vpop.f32.mrf.mxu0
      %v811 = vadd.f32 %v722, %v810
      %812 = vmatmul.bf16.gmra.mxu0 %v773
      %v813 = vpop.f32.mrf.mxu0
      %v814 = vadd.f32 %v722, %v813
      %v815 = vpop.f32.mrf.mxu0
      %v816 = vadd.f32 %v722, %v815
      %817 = vmatmul.bf16.gmra.mxu0 %v776
      %v818 = vpop.f32.mrf.mxu0
      %v819 = vadd.f32 %v722, %v818
      %v820 = vpop.f32.mrf.mxu0
      %v821 = vadd.f32 %v722, %v820
      %822 = vmatmul.bf16.gmra.mxu0 %v779
      %v823 = vpop.f32.mrf.mxu0
      %v824 = vadd.f32 %v722, %v823
      %v825 = vpop.f32.mrf.mxu0
      %v826 = vadd.f32 %v722, %v825
      %827 = vmatmul.bf16.gmra.mxu0 %v782
      %v828 = vpop.f32.mrf.mxu0
      %v829 = vadd.f32 %v722, %v828
      %v830 = vpop.f32.mrf.mxu0
      %v831 = vadd.f32 %v722, %v830
      %832 = vmatmul.bf16.gmra.mxu0 %v785
      %v833 = vpop.f32.mrf.mxu0
      %v834 = vadd.f32 %v722, %v833
      %v835 = vpop.f32.mrf.mxu0
      %v836 = vadd.f32 %v722, %v835
      %837 = vmatmul.bf16.gmra.mxu0 %v788
      %v838 = vpop.f32.mrf.mxu0
      %v839 = vadd.f32 %v722, %v838
      %v840 = vpop.f32.mrf.mxu0
      %v841 = vadd.f32 %v722, %v840
      %842 = vmatmul.bf16.gmra.mxu0 %v791
      %v843 = vpop.f32.mrf.mxu0
      %v844 = vadd.f32 %v722, %v843
      %v845 = vpop.f32.mrf.mxu0
      %v846 = vadd.f32 %v722, %v845
      %847 = vmatmul.bf16.gmra.mxu0 %v794
      %v848 = vpop.f32.mrf.mxu0
      %v849 = vadd.f32 %v722, %v848
      %v850 = vpop.f32.mrf.mxu0
      %v851 = vadd.f32 %v722, %v850
      %852 = vdwg.mxu0
      %v853 = vmax.f32 %v809, 0.0
      %v854 = vmax.f32 %v811, 0.0
      %v855 = vmax.f32 %v814, 0.0
      %v856 = vmax.f32 %v816, 0.0
      %v857 = vmax.f32 %v819, 0.0
      %v858 = vmax.f32 %v821, 0.0
      %v859 = vmax.f32 %v824, 0.0
      %v860 = vmax.f32 %v826, 0.0
      %v861 = vmax.f32 %v829, 0.0
      %v862 = vmax.f32 %v831, 0.0
      %v863 = vmax.f32 %v834, 0.0
      %v864 = vmax.f32 %v836, 0.0
      %v865 = vmax.f32 %v839, 0.0
      %v866 = vmax.f32 %v841, 0.0
      %v867 = vmax.f32 %v844, 0.0
      %v868 = vmax.f32 %v846, 0.0
      %v869 = vmax.f32 %v849, 0.0
      %v870 = vmax.f32 %v851, 0.0
      %s871 = scalar_lea.vmem %s1, 144
      %v872 = vld [vmem:[%s871] sm:$0xff]
      %v873 = vld [vmem:[%s871 + $0x8] sm:$0xff]
      %v874 = vld [vmem:[%s871 + $0x10] sm:$0xff]
      %v875 = vld [vmem:[%s871 + $0x18] sm:$0xff]
      %v876 = vld [vmem:[%s871 + $0x20] sm:$0xff]
      %v877 = vld [vmem:[%s871 + $0x28] sm:$0xff]
      %v878 = vld [vmem:[%s871 + $0x30] sm:$0xff]
      %v879 = vld [vmem:[%s871 + $0x38] sm:$0xff]
      %v880 = vld [vmem:[%s871 + $0x40] sm:$0xff]
      %v881 = vld [vmem:[%s871 + $0x48] sm:$0xff]
      %v882 = vld [vmem:[%s871 + $0x50] sm:$0xff]
      %v883 = vld [vmem:[%s871 + $0x58] sm:$0xff]
      %v884 = vld [vmem:[%s871 + $0x60] sm:$0xff]
      %v885 = vld [vmem:[%s871 + $0x68] sm:$0xff]
      %v886 = vld [vmem:[%s871 + $0x70] sm:$0xff]
      %v887 = vld [vmem:[%s871 + $0x78] sm:$0xff]
      %v888 = vld [vmem:[%s871 + $0x80] sm:$0xff]
      %v889 = vld [vmem:[%s871 + $0x88] sm:$0xff]
      %891 = vset.pattern.permute.xlu0 0
      %892 = vperm.xlu0 %891, %v872
      %v893 = vpop.permute.xlu0 %892
      %896 = vset.pattern.permute.xlu0 0
      %897 = vperm.xlu0 %896, %v873
      %v898 = vpop.permute.xlu0 %897
      %901 = vset.pattern.permute.xlu0 0
      %902 = vperm.xlu0 %901, %v874
      %v903 = vpop.permute.xlu0 %902
      %906 = vset.pattern.permute.xlu0 0
      %907 = vperm.xlu0 %906, %v875
      %v908 = vpop.permute.xlu0 %907
      %911 = vset.pattern.permute.xlu0 0
      %912 = vperm.xlu0 %911, %v876
      %v913 = vpop.permute.xlu0 %912
      %916 = vset.pattern.permute.xlu0 0
      %917 = vperm.xlu0 %916, %v877
      %v918 = vpop.permute.xlu0 %917
      %921 = vset.pattern.permute.xlu0 0
      %922 = vperm.xlu0 %921, %v878
      %v923 = vpop.permute.xlu0 %922
      %926 = vset.pattern.permute.xlu0 0
      %927 = vperm.xlu0 %926, %v879
      %v928 = vpop.permute.xlu0 %927
      %931 = vset.pattern.permute.xlu0 0
      %932 = vperm.xlu0 %931, %v880
      %v933 = vpop.permute.xlu0 %932
      %936 = vset.pattern.permute.xlu0 0
      %937 = vperm.xlu0 %936, %v881
      %v938 = vpop.permute.xlu0 %937
      %941 = vset.pattern.permute.xlu0 0
      %942 = vperm.xlu0 %941, %v882
      %v943 = vpop.permute.xlu0 %942
      %946 = vset.pattern.permute.xlu0 0
      %947 = vperm.xlu0 %946, %v883
      %v948 = vpop.permute.xlu0 %947
      %951 = vset.pattern.permute.xlu0 0
      %952 = vperm.xlu0 %951, %v884
      %v953 = vpop.permute.xlu0 %952
      %956 = vset.pattern.permute.xlu0 0
      %957 = vperm.xlu0 %956, %v885
      %v958 = vpop.permute.xlu0 %957
      %961 = vset.pattern.permute.xlu0 0
      %962 = vperm.xlu0 %961, %v886
      %v963 = vpop.permute.xlu0 %962
      %966 = vset.pattern.permute.xlu0 0
      %967 = vperm.xlu0 %966, %v887
      %v968 = vpop.permute.xlu0 %967
      %971 = vset.pattern.permute.xlu0 0
      %972 = vperm.xlu0 %971, %v888
      %v973 = vpop.permute.xlu0 %972
      %976 = vset.pattern.permute.xlu0 0
      %977 = vperm.xlu0 %976, %v889
      %v978 = vpop.permute.xlu0 %977
      %v980 = vmul.f32 %v853, %v893
      %v981 = vmul.f32 %v854, %v898
      %v982 = vmul.f32 %v855, %v903
      %v983 = vmul.f32 %v856, %v908
      %v984 = vmul.f32 %v857, %v913
      %v985 = vmul.f32 %v858, %v918
      %v986 = vmul.f32 %v859, %v923
      %v987 = vmul.f32 %v860, %v928
      %v988 = vmul.f32 %v861, %v933
      %v989 = vmul.f32 %v862, %v938
      %v990 = vmul.f32 %v863, %v943
      %v991 = vmul.f32 %v864, %v948
      %v992 = vmul.f32 %v865, %v953
      %v993 = vmul.f32 %v866, %v958
      %v994 = vmul.f32 %v867, %v963
      %v995 = vmul.f32 %v868, %v968
      %v996 = vmul.f32 %v869, %v973
      %v997 = vmul.f32 %v870, %v978
      %v998 = vpack.c.bf16 %v980, %v980
      %v999 = vpack.c.bf16 %v981, %v981
      %v1000 = vpack.c.bf16 %v982, %v982
      %v1001 = vpack.c.bf16 %v983, %v983
      %v1002 = vpack.c.bf16 %v984, %v984
      %v1003 = vpack.c.bf16 %v985, %v985
      %v1004 = vpack.c.bf16 %v986, %v986
      %v1005 = vpack.c.bf16 %v987, %v987
      %v1006 = vpack.c.bf16 %v988, %v988
      %v1007 = vpack.c.bf16 %v989, %v989
      %v1008 = vpack.c.bf16 %v990, %v990
      %v1009 = vpack.c.bf16 %v991, %v991
      %v1010 = vpack.c.bf16 %v992, %v992
      %v1011 = vpack.c.bf16 %v993, %v993
      %v1012 = vpack.c.bf16 %v994, %v994
      %v1013 = vpack.c.bf16 %v995, %v995
      %v1014 = vpack.c.bf16 %v996, %v996
      %v1015 = vpack.c.bf16 %v997, %v997
      %s1016 = scalar_lea.vmem [#allocation2], 72
      %1017 = vst [vmem:[%s1016] sm:$0xf] %v998
      %1018 = vst [vmem:[%s1016 + $0x4] sm:$0xf] %v999
      %1019 = vst [vmem:[%s1016 + $0x8] sm:$0xf] %v1000
      %1020 = vst [vmem:[%s1016 + $0xc] sm:$0xf] %v1001
      %1021 = vst [vmem:[%s1016 + $0x10] sm:$0xf] %v1002
      %1022 = vst [vmem:[%s1016 + $0x14] sm:$0xf] %v1003
      %1023 = vst [vmem:[%s1016 + $0x18] sm:$0xf] %v1004
      %1024 = vst [vmem:[%s1016 + $0x1c] sm:$0xf] %v1005
      %1025 = vst [vmem:[%s1016 + $0x20] sm:$0xf] %v1006
      %1026 = vst [vmem:[%s1016 + $0x24] sm:$0xf] %v1007
      %1027 = vst [vmem:[%s1016 + $0x28] sm:$0xf] %v1008
      %1028 = vst [vmem:[%s1016 + $0x2c] sm:$0xf] %v1009
      %1029 = vst [vmem:[%s1016 + $0x30] sm:$0xf] %v1010
      %1030 = vst [vmem:[%s1016 + $0x34] sm:$0xf] %v1011
      %1031 = vst [vmem:[%s1016 + $0x38] sm:$0xf] %v1012
      %1032 = vst [vmem:[%s1016 + $0x3c] sm:$0xf] %v1013
      %1033 = vst [vmem:[%s1016 + $0x40] sm:$0xf] %v1014
      %1034 = vst [vmem:[%s1016 + $0x44] sm:$0xf] %v1015
      %s1035 = scalar_lea.vmem %s358, 144
      %v1036 = vld [vmem:[%s1035] sm:$0xf]
      %v1037 = vld [vmem:[%s1035 + $0x4] sm:$0xf]
      %v1038 = vld [vmem:[%s1035 + $0x8] sm:$0xf]
      %v1039 = vld [vmem:[%s1035 + $0xc] sm:$0xf]
      %v1040 = vld [vmem:[%s1035 + $0x10] sm:$0xf]
      %v1041 = vld [vmem:[%s1035 + $0x14] sm:$0xf]
      %v1042 = vld [vmem:[%s1035 + $0x18] sm:$0xf]
      %v1043 = vld [vmem:[%s1035 + $0x1c] sm:$0xf]
      %v1044 = vld [vmem:[%s1035 + $0x20] sm:$0xf]
      %v1045 = vld [vmem:[%s1035 + $0x24] sm:$0xf]
      %v1046 = vld [vmem:[%s1035 + $0x28] sm:$0xf]
      %v1047 = vld [vmem:[%s1035 + $0x2c] sm:$0xf]
      %v1048 = vld [vmem:[%s1035 + $0x30] sm:$0xf]
      %v1049 = vld [vmem:[%s1035 + $0x34] sm:$0xf]
      %v1050 = vld [vmem:[%s1035 + $0x38] sm:$0xf]
      %v1051 = vld [vmem:[%s1035 + $0x3c] sm:$0xf]
      %v1052 = vld [vmem:[%s1035 + $0x40] sm:$0xf]
      %v1053 = vld [vmem:[%s1035 + $0x44] sm:$0xf]
      %v1054 = vld [vmem:[%s2] sm:$0xf]
      %v1055 = vld [vmem:[%s3] sm:$0x1]
      %v1057 = vperm.slane %v1055, 0
      %v1077 = vunpack.c.l.b16 %v1036
      %v1078 = vunpack.c.l.b16 %v1037
      %v1079 = vunpack.c.l.b16 %v1038
      %v1080 = vunpack.c.l.b16 %v1039
      %v1081 = vunpack.c.l.b16 %v1040
      %v1082 = vunpack.c.l.b16 %v1041
      %v1083 = vunpack.c.l.b16 %v1042
      %v1084 = vunpack.c.l.b16 %v1043
      %v1085 = vunpack.c.l.b16 %v1044
      %v1086 = vunpack.c.l.b16 %v1045
      %v1087 = vunpack.c.l.b16 %v1046
      %v1088 = vunpack.c.l.b16 %v1047
      %v1089 = vunpack.c.l.b16 %v1048
      %v1090 = vunpack.c.l.b16 %v1049
      %v1091 = vunpack.c.l.b16 %v1050
      %v1092 = vunpack.c.l.b16 %v1051
      %v1093 = vunpack.c.l.b16 %v1052
      %v1094 = vunpack.c.l.b16 %v1053
      %v1095 = vpack.c.b16 %v1078, %v1077
      %v1096 = vpack.c.b16 %v1080, %v1079
      %v1097 = vpack.c.b16 %v1082, %v1081
      %v1098 = vpack.c.b16 %v1084, %v1083
      %v1099 = vpack.c.b16 %v1086, %v1085
      %v1100 = vpack.c.b16 %v1088, %v1087
      %v1101 = vpack.c.b16 %v1090, %v1089
      %v1102 = vpack.c.b16 %v1092, %v1091
      %v1103 = vpack.c.b16 %v1094, %v1093
      %v1105 = vsel %vm434, %v1095, 0
      %v1108 = vsel %vm434, %v1096, 0
      %v1111 = vsel %vm434, %v1097, 0
      %v1114 = vsel %vm434, %v1098, 0
      %v1117 = vsel %vm434, %v1099, 0
      %v1120 = vsel %vm434, %v1100, 0
      %v1123 = vsel %vm434, %v1101, 0
      %v1126 = vsel %vm434, %v1102, 0
      %v1129 = vsel %vm434, %v1103, 0
      %v1132 = vsel %vm462, %v1054, 0
      %1134 = vmatpush.bf16.msra.mxu0 0
      %1135 = vmatpush.bf16.msra.mxu0 0
      %1136 = vmatpush.bf16.msra.mxu0 0
      %1137 = vmatpush.bf16.msra.mxu0 0
      %1138 = vmatpush.bf16.msra.mxu0 0
      %1139 = vmatpush.bf16.msra.mxu0 0
      %1140 = vmatpush.bf16.msra.mxu0 0
      %1141 = vmatpush.bf16.msra.mxu0 %v1132
      %1142 = vmatmul.bf16.gmra.mxu0 %v1105
      %v1143 = vpop.f32.mrf.mxu0
      %v1144 = vadd.f32 %v1057, %v1143
      %v1145 = vpop.f32.mrf.mxu0
      %v1146 = vadd.f32 %v1057, %v1145
      %1147 = vmatmul.bf16.gmra.mxu0 %v1108
      %v1148 = vpop.f32.mrf.mxu0
      %v1149 = vadd.f32 %v1057, %v1148
      %v1150 = vpop.f32.mrf.mxu0
      %v1151 = vadd.f32 %v1057, %v1150
      %1152 = vmatmul.bf16.gmra.mxu0 %v1111
      %v1153 = vpop.f32.mrf.mxu0
      %v1154 = vadd.f32 %v1057, %v1153
      %v1155 = vpop.f32.mrf.mxu0
      %v1156 = vadd.f32 %v1057, %v1155
      %1157 = vmatmul.bf16.gmra.mxu0 %v1114
      %v1158 = vpop.f32.mrf.mxu0
      %v1159 = vadd.f32 %v1057, %v1158
      %v1160 = vpop.f32.mrf.mxu0
      %v1161 = vadd.f32 %v1057, %v1160
      %1162 = vmatmul.bf16.gmra.mxu0 %v1117
      %v1163 = vpop.f32.mrf.mxu0
      %v1164 = vadd.f32 %v1057, %v1163
      %v1165 = vpop.f32.mrf.mxu0
      %v1166 = vadd.f32 %v1057, %v1165
      %1167 = vmatmul.bf16.gmra.mxu0 %v1120
      %v1168 = vpop.f32.mrf.mxu0
      %v1169 = vadd.f32 %v1057, %v1168
      %v1170 = vpop.f32.mrf.mxu0
      %v1171 = vadd.f32 %v1057, %v1170
      %1172 = vmatmul.bf16.gmra.mxu0 %v1123
      %v1173 = vpop.f32.mrf.mxu0
      %v1174 = vadd.f32 %v1057, %v1173
      %v1175 = vpop.f32.mrf.mxu0
      %v1176 = vadd.f32 %v1057, %v1175
      %1177 = vmatmul.bf16.gmra.mxu0 %v1126
      %v1178 = vpop.f32.mrf.mxu0
      %v1179 = vadd.f32 %v1057, %v1178
      %v1180 = vpop.f32.mrf.mxu0
      %v1181 = vadd.f32 %v1057, %v1180
      %1182 = vmatmul.bf16.gmra.mxu0 %v1129
      %v1183 = vpop.f32.mrf.mxu0
      %v1184 = vadd.f32 %v1057, %v1183
      %v1185 = vpop.f32.mrf.mxu0
      %v1186 = vadd.f32 %v1057, %v1185
      %1187 = vdwg.mxu0
      %v1188 = vmax.f32 %v1144, 0.0
      %v1189 = vmax.f32 %v1146, 0.0
      %v1190 = vmax.f32 %v1149, 0.0
      %v1191 = vmax.f32 %v1151, 0.0
      %v1192 = vmax.f32 %v1154, 0.0
      %v1193 = vmax.f32 %v1156, 0.0
      %v1194 = vmax.f32 %v1159, 0.0
      %v1195 = vmax.f32 %v1161, 0.0
      %v1196 = vmax.f32 %v1164, 0.0
      %v1197 = vmax.f32 %v1166, 0.0
      %v1198 = vmax.f32 %v1169, 0.0
      %v1199 = vmax.f32 %v1171, 0.0
      %v1200 = vmax.f32 %v1174, 0.0
      %v1201 = vmax.f32 %v1176, 0.0
      %v1202 = vmax.f32 %v1179, 0.0
      %v1203 = vmax.f32 %v1181, 0.0
      %v1204 = vmax.f32 %v1184, 0.0
      %v1205 = vmax.f32 %v1186, 0.0
      %s1206 = scalar_lea.vmem %s1, 288
      %v1207 = vld [vmem:[%s1206] sm:$0xff]
      %v1208 = vld [vmem:[%s1206 + $0x8] sm:$0xff]
      %v1209 = vld [vmem:[%s1206 + $0x10] sm:$0xff]
      %v1210 = vld [vmem:[%s1206 + $0x18] sm:$0xff]
      %v1211 = vld [vmem:[%s1206 + $0x20] sm:$0xff]
      %v1212 = vld [vmem:[%s1206 + $0x28] sm:$0xff]
      %v1213 = vld [vmem:[%s1206 + $0x30] sm:$0xff]
      %v1214 = vld [vmem:[%s1206 + $0x38] sm:$0xff]
      %v1215 = vld [vmem:[%s1206 + $0x40] sm:$0xff]
      %v1216 = vld [vmem:[%s1206 + $0x48] sm:$0xff]
      %v1217 = vld [vmem:[%s1206 + $0x50] sm:$0xff]
      %v1218 = vld [vmem:[%s1206 + $0x58] sm:$0xff]
      %v1219 = vld [vmem:[%s1206 + $0x60] sm:$0xff]
      %v1220 = vld [vmem:[%s1206 + $0x68] sm:$0xff]
      %v1221 = vld [vmem:[%s1206 + $0x70] sm:$0xff]
      %v1222 = vld [vmem:[%s1206 + $0x78] sm:$0xff]
      %v1223 = vld [vmem:[%s1206 + $0x80] sm:$0xff]
      %v1224 = vld [vmem:[%s1206 + $0x88] sm:$0xff]
      %1226 = vset.pattern.permute.xlu0 0
      %1227 = vperm.xlu0 %1226, %v1207
      %v1228 = vpop.permute.xlu0 %1227
      %1231 = vset.pattern.permute.xlu0 0
      %1232 = vperm.xlu0 %1231, %v1208
      %v1233 = vpop.permute.xlu0 %1232
      %1236 = vset.pattern.permute.xlu0 0
      %1237 = vperm.xlu0 %1236, %v1209
      %v1238 = vpop.permute.xlu0 %1237
      %1241 = vset.pattern.permute.xlu0 0
      %1242 = vperm.xlu0 %1241, %v1210
      %v1243 = vpop.permute.xlu0 %1242
      %1246 = vset.pattern.permute.xlu0 0
      %1247 = vperm.xlu0 %1246, %v1211
      %v1248 = vpop.permute.xlu0 %1247
      %1251 = vset.pattern.permute.xlu0 0
      %1252 = vperm.xlu0 %1251, %v1212
      %v1253 = vpop.permute.xlu0 %1252
      %1256 = vset.pattern.permute.xlu0 0
      %1257 = vperm.xlu0 %1256, %v1213
      %v1258 = vpop.permute.xlu0 %1257
      %1261 = vset.pattern.permute.xlu0 0
      %1262 = vperm.xlu0 %1261, %v1214
      %v1263 = vpop.permute.xlu0 %1262
      %1266 = vset.pattern.permute.xlu0 0
      %1267 = vperm.xlu0 %1266, %v1215
      %v1268 = vpop.permute.xlu0 %1267
      %1271 = vset.pattern.permute.xlu0 0
      %1272 = vperm.xlu0 %1271, %v1216
      %v1273 = vpop.permute.xlu0 %1272
      %1276 = vset.pattern.permute.xlu0 0
      %1277 = vperm.xlu0 %1276, %v1217
      %v1278 = vpop.permute.xlu0 %1277
      %1281 = vset.pattern.permute.xlu0 0
      %1282 = vperm.xlu0 %1281, %v1218
      %v1283 = vpop.permute.xlu0 %1282
      %1286 = vset.pattern.permute.xlu0 0
      %1287 = vperm.xlu0 %1286, %v1219
      %v1288 = vpop.permute.xlu0 %1287
      %1291 = vset.pattern.permute.xlu0 0
      %1292 = vperm.xlu0 %1291, %v1220
      %v1293 = vpop.permute.xlu0 %1292
      %1296 = vset.pattern.permute.xlu0 0
      %1297 = vperm.xlu0 %1296, %v1221
      %v1298 = vpop.permute.xlu0 %1297
      %1301 = vset.pattern.permute.xlu0 0
      %1302 = vperm.xlu0 %1301, %v1222
      %v1303 = vpop.permute.xlu0 %1302
      %1306 = vset.pattern.permute.xlu0 0
      %1307 = vperm.xlu0 %1306, %v1223
      %v1308 = vpop.permute.xlu0 %1307
      %1311 = vset.pattern.permute.xlu0 0
      %1312 = vperm.xlu0 %1311, %v1224
      %v1313 = vpop.permute.xlu0 %1312
      %v1315 = vmul.f32 %v1188, %v1228
      %v1316 = vmul.f32 %v1189, %v1233
      %v1317 = vmul.f32 %v1190, %v1238
      %v1318 = vmul.f32 %v1191, %v1243
      %v1319 = vmul.f32 %v1192, %v1248
      %v1320 = vmul.f32 %v1193, %v1253
      %v1321 = vmul.f32 %v1194, %v1258
      %v1322 = vmul.f32 %v1195, %v1263
      %v1323 = vmul.f32 %v1196, %v1268
      %v1324 = vmul.f32 %v1197, %v1273
      %v1325 = vmul.f32 %v1198, %v1278
      %v1326 = vmul.f32 %v1199, %v1283
      %v1327 = vmul.f32 %v1200, %v1288
      %v1328 = vmul.f32 %v1201, %v1293
      %v1329 = vmul.f32 %v1202, %v1298
      %v1330 = vmul.f32 %v1203, %v1303
      %v1331 = vmul.f32 %v1204, %v1308
      %v1332 = vmul.f32 %v1205, %v1313
      %v1333 = vpack.c.bf16 %v1315, %v1315
      %v1334 = vpack.c.bf16 %v1316, %v1316
      %v1335 = vpack.c.bf16 %v1317, %v1317
      %v1336 = vpack.c.bf16 %v1318, %v1318
      %v1337 = vpack.c.bf16 %v1319, %v1319
      %v1338 = vpack.c.bf16 %v1320, %v1320
      %v1339 = vpack.c.bf16 %v1321, %v1321
      %v1340 = vpack.c.bf16 %v1322, %v1322
      %v1341 = vpack.c.bf16 %v1323, %v1323
      %v1342 = vpack.c.bf16 %v1324, %v1324
      %v1343 = vpack.c.bf16 %v1325, %v1325
      %v1344 = vpack.c.bf16 %v1326, %v1326
      %v1345 = vpack.c.bf16 %v1327, %v1327
      %v1346 = vpack.c.bf16 %v1328, %v1328
      %v1347 = vpack.c.bf16 %v1329, %v1329
      %v1348 = vpack.c.bf16 %v1330, %v1330
      %v1349 = vpack.c.bf16 %v1331, %v1331
      %v1350 = vpack.c.bf16 %v1332, %v1332
      %s1351 = scalar_lea.vmem [#allocation2], 144
      %1352 = vst [vmem:[%s1351] sm:$0xf] %v1333
      %1353 = vst [vmem:[%s1351 + $0x4] sm:$0xf] %v1334
      %1354 = vst [vmem:[%s1351 + $0x8] sm:$0xf] %v1335
      %1355 = vst [vmem:[%s1351 + $0xc] sm:$0xf] %v1336
      %1356 = vst [vmem:[%s1351 + $0x10] sm:$0xf] %v1337
      %1357 = vst [vmem:[%s1351 + $0x14] sm:$0xf] %v1338
      %1358 = vst [vmem:[%s1351 + $0x18] sm:$0xf] %v1339
      %1359 = vst [vmem:[%s1351 + $0x1c] sm:$0xf] %v1340
      %1360 = vst [vmem:[%s1351 + $0x20] sm:$0xf] %v1341
      %1361 = vst [vmem:[%s1351 + $0x24] sm:$0xf] %v1342
      %1362 = vst [vmem:[%s1351 + $0x28] sm:$0xf] %v1343
      %1363 = vst [vmem:[%s1351 + $0x2c] sm:$0xf] %v1344
      %1364 = vst [vmem:[%s1351 + $0x30] sm:$0xf] %v1345
      %1365 = vst [vmem:[%s1351 + $0x34] sm:$0xf] %v1346
      %1366 = vst [vmem:[%s1351 + $0x38] sm:$0xf] %v1347
      %1367 = vst [vmem:[%s1351 + $0x3c] sm:$0xf] %v1348
      %1368 = vst [vmem:[%s1351 + $0x40] sm:$0xf] %v1349
      %1369 = vst [vmem:[%s1351 + $0x44] sm:$0xf] %v1350
      %s1370 = scalar_lea.vmem %s358, 216
      %v1371 = vld [vmem:[%s1370] sm:$0xf]
      %v1372 = vld [vmem:[%s1370 + $0x4] sm:$0xf]
      %v1373 = vld [vmem:[%s1370 + $0x8] sm:$0xf]
      %v1374 = vld [vmem:[%s1370 + $0xc] sm:$0xf]
      %v1375 = vld [vmem:[%s1370 + $0x10] sm:$0xf]
      %v1376 = vld [vmem:[%s1370 + $0x14] sm:$0xf]
      %v1377 = vld [vmem:[%s1370 + $0x18] sm:$0xf]
      %v1378 = vld [vmem:[%s1370 + $0x1c] sm:$0xf]
      %v1379 = vld [vmem:[%s1370 + $0x20] sm:$0xf]
      %v1380 = vld [vmem:[%s1370 + $0x24] sm:$0xf]
      %v1381 = vld [vmem:[%s1370 + $0x28] sm:$0xf]
      %v1382 = vld [vmem:[%s1370 + $0x2c] sm:$0xf]
      %v1383 = vld [vmem:[%s1370 + $0x30] sm:$0xf]
      %v1384 = vld [vmem:[%s1370 + $0x34] sm:$0xf]
      %v1385 = vld [vmem:[%s1370 + $0x38] sm:$0xf]
      %v1386 = vld [vmem:[%s1370 + $0x3c] sm:$0xf]
      %v1387 = vld [vmem:[%s1370 + $0x40] sm:$0xf]
      %v1388 = vld [vmem:[%s1370 + $0x44] sm:$0xf]
      %v1389 = vld [vmem:[%s2] sm:$0xf]
      %v1390 = vld [vmem:[%s3] sm:$0x1]
      %v1392 = vperm.slane %v1390, 0
      %v1412 = vunpack.c.l.b16 %v1371
      %v1413 = vunpack.c.l.b16 %v1372
      %v1414 = vunpack.c.l.b16 %v1373
      %v1415 = vunpack.c.l.b16 %v1374
      %v1416 = vunpack.c.l.b16 %v1375
      %v1417 = vunpack.c.l.b16 %v1376
      %v1418 = vunpack.c.l.b16 %v1377
      %v1419 = vunpack.c.l.b16 %v1378
      %v1420 = vunpack.c.l.b16 %v1379
      %v1421 = vunpack.c.l.b16 %v1380
      %v1422 = vunpack.c.l.b16 %v1381
      %v1423 = vunpack.c.l.b16 %v1382
      %v1424 = vunpack.c.l.b16 %v1383
      %v1425 = vunpack.c.l.b16 %v1384
      %v1426 = vunpack.c.l.b16 %v1385
      %v1427 = vunpack.c.l.b16 %v1386
      %v1428 = vunpack.c.l.b16 %v1387
      %v1429 = vunpack.c.l.b16 %v1388
      %v1430 = vpack.c.b16 %v1413, %v1412
      %v1431 = vpack.c.b16 %v1415, %v1414
      %v1432 = vpack.c.b16 %v1417, %v1416
      %v1433 = vpack.c.b16 %v1419, %v1418
      %v1434 = vpack.c.b16 %v1421, %v1420
      %v1435 = vpack.c.b16 %v1423, %v1422
      %v1436 = vpack.c.b16 %v1425, %v1424
      %v1437 = vpack.c.b16 %v1427, %v1426
      %v1438 = vpack.c.b16 %v1429, %v1428
      %v1440 = vsel %vm434, %v1430, 0
      %v1443 = vsel %vm434, %v1431, 0
      %v1446 = vsel %vm434, %v1432, 0
      %v1449 = vsel %vm434, %v1433, 0
      %v1452 = vsel %vm434, %v1434, 0
      %v1455 = vsel %vm434, %v1435, 0
      %v1458 = vsel %vm434, %v1436, 0
      %v1461 = vsel %vm434, %v1437, 0
      %v1464 = vsel %vm434, %v1438, 0
      %v1467 = vsel %vm462, %v1389, 0
      %1469 = vmatpush.bf16.msra.mxu0 0
      %1470 = vmatpush.bf16.msra.mxu0 0
      %1471 = vmatpush.bf16.msra.mxu0 0
      %1472 = vmatpush.bf16.msra.mxu0 0
      %1473 = vmatpush.bf16.msra.mxu0 0
      %1474 = vmatpush.bf16.msra.mxu0 0
      %1475 = vmatpush.bf16.msra.mxu0 0
      %1476 = vmatpush.bf16.msra.mxu0 %v1467
      %1477 = vmatmul.bf16.gmra.mxu0 %v1440
      %v1478 = vpop.f32.mrf.mxu0
      %v1479 = vadd.f32 %v1392, %v1478
      %v1480 = vpop.f32.mrf.mxu0
      %v1481 = vadd.f32 %v1392, %v1480
      %1482 = vmatmul.bf16.gmra.mxu0 %v1443
      %v1483 = vpop.f32.mrf.mxu0
      %v1484 = vadd.f32 %v1392, %v1483
      %v1485 = vpop.f32.mrf.mxu0
      %v1486 = vadd.f32 %v1392, %v1485
      %1487 = vmatmul.bf16.gmra.mxu0 %v1446
      %v1488 = vpop.f32.mrf.mxu0
      %v1489 = vadd.f32 %v1392, %v1488
      %v1490 = vpop.f32.mrf.mxu0
      %v1491 = vadd.f32 %v1392, %v1490
      %1492 = vmatmul.bf16.gmra.mxu0 %v1449
      %v1493 = vpop.f32.mrf.mxu0
      %v1494 = vadd.f32 %v1392, %v1493
      %v1495 = vpop.f32.mrf.mxu0
      %v1496 = vadd.f32 %v1392, %v1495
      %1497 = vmatmul.bf16.gmra.mxu0 %v1452
      %v1498 = vpop.f32.mrf.mxu0
      %v1499 = vadd.f32 %v1392, %v1498
      %v1500 = vpop.f32.mrf.mxu0
      %v1501 = vadd.f32 %v1392, %v1500
      %1502 = vmatmul.bf16.gmra.mxu0 %v1455
      %v1503 = vpop.f32.mrf.mxu0
      %v1504 = vadd.f32 %v1392, %v1503
      %v1505 = vpop.f32.mrf.mxu0
      %v1506 = vadd.f32 %v1392, %v1505
      %1507 = vmatmul.bf16.gmra.mxu0 %v1458
      %v1508 = vpop.f32.mrf.mxu0
      %v1509 = vadd.f32 %v1392, %v1508
      %v1510 = vpop.f32.mrf.mxu0
      %v1511 = vadd.f32 %v1392, %v1510
      %1512 = vmatmul.bf16.gmra.mxu0 %v1461
      %v1513 = vpop.f32.mrf.mxu0
      %v1514 = vadd.f32 %v1392, %v1513
      %v1515 = vpop.f32.mrf.mxu0
      %v1516 = vadd.f32 %v1392, %v1515
      %1517 = vmatmul.bf16.gmra.mxu0 %v1464
      %v1518 = vpop.f32.mrf.mxu0
      %v1519 = vadd.f32 %v1392, %v1518
      %v1520 = vpop.f32.mrf.mxu0
      %v1521 = vadd.f32 %v1392, %v1520
      %1522 = vdwg.mxu0
      %v1523 = vmax.f32 %v1479, 0.0
      %v1524 = vmax.f32 %v1481, 0.0
      %v1525 = vmax.f32 %v1484, 0.0
      %v1526 = vmax.f32 %v1486, 0.0
      %v1527 = vmax.f32 %v1489, 0.0
      %v1528 = vmax.f32 %v1491, 0.0
      %v1529 = vmax.f32 %v1494, 0.0
      %v1530 = vmax.f32 %v1496, 0.0
      %v1531 = vmax.f32 %v1499, 0.0
      %v1532 = vmax.f32 %v1501, 0.0
      %v1533 = vmax.f32 %v1504, 0.0
      %v1534 = vmax.f32 %v1506, 0.0
      %v1535 = vmax.f32 %v1509, 0.0
      %v1536 = vmax.f32 %v1511, 0.0
      %v1537 = vmax.f32 %v1514, 0.0
      %v1538 = vmax.f32 %v1516, 0.0
      %v1539 = vmax.f32 %v1519, 0.0
      %v1540 = vmax.f32 %v1521, 0.0
      %s1541 = scalar_lea.vmem %s1, 432
      %v1542 = vld [vmem:[%s1541] sm:$0xff]
      %v1543 = vld [vmem:[%s1541 + $0x8] sm:$0xff]
      %v1544 = vld [vmem:[%s1541 + $0x10] sm:$0xff]
      %v1545 = vld [vmem:[%s1541 + $0x18] sm:$0xff]
      %v1546 = vld [vmem:[%s1541 + $0x20] sm:$0xff]
      %v1547 = vld [vmem:[%s1541 + $0x28] sm:$0xff]
      %v1548 = vld [vmem:[%s1541 + $0x30] sm:$0xff]
      %v1549 = vld [vmem:[%s1541 + $0x38] sm:$0xff]
      %v1550 = vld [vmem:[%s1541 + $0x40] sm:$0xff]
      %v1551 = vld [vmem:[%s1541 + $0x48] sm:$0xff]
      %v1552 = vld [vmem:[%s1541 + $0x50] sm:$0xff]
      %v1553 = vld [vmem:[%s1541 + $0x58] sm:$0xff]
      %v1554 = vld [vmem:[%s1541 + $0x60] sm:$0xff]
      %v1555 = vld [vmem:[%s1541 + $0x68] sm:$0xff]
      %v1556 = vld [vmem:[%s1541 + $0x70] sm:$0xff]
      %v1557 = vld [vmem:[%s1541 + $0x78] sm:$0xff]
      %v1558 = vld [vmem:[%s1541 + $0x80] sm:$0xff]
      %v1559 = vld [vmem:[%s1541 + $0x88] sm:$0xff]
      %1561 = vset.pattern.permute.xlu0 0
      %1562 = vperm.xlu0 %1561, %v1542
      %v1563 = vpop.permute.xlu0 %1562
      %1566 = vset.pattern.permute.xlu0 0
      %1567 = vperm.xlu0 %1566, %v1543
      %v1568 = vpop.permute.xlu0 %1567
      %1571 = vset.pattern.permute.xlu0 0
      %1572 = vperm.xlu0 %1571, %v1544
      %v1573 = vpop.permute.xlu0 %1572
      %1576 = vset.pattern.permute.xlu0 0
      %1577 = vperm.xlu0 %1576, %v1545
      %v1578 = vpop.permute.xlu0 %1577
      %1581 = vset.pattern.permute.xlu0 0
      %1582 = vperm.xlu0 %1581, %v1546
      %v1583 = vpop.permute.xlu0 %1582
      %1586 = vset.pattern.permute.xlu0 0
      %1587 = vperm.xlu0 %1586, %v1547
      %v1588 = vpop.permute.xlu0 %1587
      %1591 = vset.pattern.permute.xlu0 0
      %1592 = vperm.xlu0 %1591, %v1548
      %v1593 = vpop.permute.xlu0 %1592
      %1596 = vset.pattern.permute.xlu0 0
      %1597 = vperm.xlu0 %1596, %v1549
      %v1598 = vpop.permute.xlu0 %1597
      %1601 = vset.pattern.permute.xlu0 0
      %1602 = vperm.xlu0 %1601, %v1550
      %v1603 = vpop.permute.xlu0 %1602
      %1606 = vset.pattern.permute.xlu0 0
      %1607 = vperm.xlu0 %1606, %v1551
      %v1608 = vpop.permute.xlu0 %1607
      %1611 = vset.pattern.permute.xlu0 0
      %1612 = vperm.xlu0 %1611, %v1552
      %v1613 = vpop.permute.xlu0 %1612
      %1616 = vset.pattern.permute.xlu0 0
      %1617 = vperm.xlu0 %1616, %v1553
      %v1618 = vpop.permute.xlu0 %1617
      %1621 = vset.pattern.permute.xlu0 0
      %1622 = vperm.xlu0 %1621, %v1554
      %v1623 = vpop.permute.xlu0 %1622
      %1626 = vset.pattern.permute.xlu0 0
      %1627 = vperm.xlu0 %1626, %v1555
      %v1628 = vpop.permute.xlu0 %1627
      %1631 = vset.pattern.permute.xlu0 0
      %1632 = vperm.xlu0 %1631, %v1556
      %v1633 = vpop.permute.xlu0 %1632
      %1636 = vset.pattern.permute.xlu0 0
      %1637 = vperm.xlu0 %1636, %v1557
      %v1638 = vpop.permute.xlu0 %1637
      %1641 = vset.pattern.permute.xlu0 0
      %1642 = vperm.xlu0 %1641, %v1558
      %v1643 = vpop.permute.xlu0 %1642
      %1646 = vset.pattern.permute.xlu0 0
      %1647 = vperm.xlu0 %1646, %v1559
      %v1648 = vpop.permute.xlu0 %1647
      %v1650 = vmul.f32 %v1523, %v1563
      %v1651 = vmul.f32 %v1524, %v1568
      %v1652 = vmul.f32 %v1525, %v1573
      %v1653 = vmul.f32 %v1526, %v1578
      %v1654 = vmul.f32 %v1527, %v1583
      %v1655 = vmul.f32 %v1528, %v1588
      %v1656 = vmul.f32 %v1529, %v1593
      %v1657 = vmul.f32 %v1530, %v1598
      %v1658 = vmul.f32 %v1531, %v1603
      %v1659 = vmul.f32 %v1532, %v1608
      %v1660 = vmul.f32 %v1533, %v1613
      %v1661 = vmul.f32 %v1534, %v1618
      %v1662 = vmul.f32 %v1535, %v1623
      %v1663 = vmul.f32 %v1536, %v1628
      %v1664 = vmul.f32 %v1537, %v1633
      %v1665 = vmul.f32 %v1538, %v1638
      %v1666 = vmul.f32 %v1539, %v1643
      %v1667 = vmul.f32 %v1540, %v1648
      %v1668 = vpack.c.bf16 %v1650, %v1650
      %v1669 = vpack.c.bf16 %v1651, %v1651
      %v1670 = vpack.c.bf16 %v1652, %v1652
      %v1671 = vpack.c.bf16 %v1653, %v1653
      %v1672 = vpack.c.bf16 %v1654, %v1654
      %v1673 = vpack.c.bf16 %v1655, %v1655
      %v1674 = vpack.c.bf16 %v1656, %v1656
      %v1675 = vpack.c.bf16 %v1657, %v1657
      %v1676 = vpack.c.bf16 %v1658, %v1658
      %v1677 = vpack.c.bf16 %v1659, %v1659
      %v1678 = vpack.c.bf16 %v1660, %v1660
      %v1679 = vpack.c.bf16 %v1661, %v1661
      %v1680 = vpack.c.bf16 %v1662, %v1662
      %v1681 = vpack.c.bf16 %v1663, %v1663
      %v1682 = vpack.c.bf16 %v1664, %v1664
      %v1683 = vpack.c.bf16 %v1665, %v1665
      %v1684 = vpack.c.bf16 %v1666, %v1666
      %v1685 = vpack.c.bf16 %v1667, %v1667
      %s1686 = scalar_lea.vmem [#allocation2], 216
      %1687 = vst [vmem:[%s1686] sm:$0xf] %v1668
      %1688 = vst [vmem:[%s1686 + $0x4] sm:$0xf] %v1669
      %1689 = vst [vmem:[%s1686 + $0x8] sm:$0xf] %v1670
      %1690 = vst [vmem:[%s1686 + $0xc] sm:$0xf] %v1671
      %1691 = vst [vmem:[%s1686 + $0x10] sm:$0xf] %v1672
      %1692 = vst [vmem:[%s1686 + $0x14] sm:$0xf] %v1673
      %1693 = vst [vmem:[%s1686 + $0x18] sm:$0xf] %v1674
      %1694 = vst [vmem:[%s1686 + $0x1c] sm:$0xf] %v1675
      %1695 = vst [vmem:[%s1686 + $0x20] sm:$0xf] %v1676
      %1696 = vst [vmem:[%s1686 + $0x24] sm:$0xf] %v1677
      %1697 = vst [vmem:[%s1686 + $0x28] sm:$0xf] %v1678
      %1698 = vst [vmem:[%s1686 + $0x2c] sm:$0xf] %v1679
      %1699 = vst [vmem:[%s1686 + $0x30] sm:$0xf] %v1680
      %1700 = vst [vmem:[%s1686 + $0x34] sm:$0xf] %v1681
      %1701 = vst [vmem:[%s1686 + $0x38] sm:$0xf] %v1682
      %1702 = vst [vmem:[%s1686 + $0x3c] sm:$0xf] %v1683
      %1703 = vst [vmem:[%s1686 + $0x40] sm:$0xf] %v1684
      %1704 = vst [vmem:[%s1686 + $0x44] sm:$0xf] %v1685
      %v1705 = vld [vmem:[#allocation2] sm:$0xf]
      %v1706 = vld [vmem:[#allocation2 + $0x8] sm:$0xf]
      %v1707 = vld [vmem:[#allocation2 + $0x10] sm:$0xf]
      %v1708 = vld [vmem:[#allocation2 + $0x18] sm:$0xf]
      %v1709 = vld [vmem:[#allocation2 + $0x20] sm:$0xf]
      %v1710 = vld [vmem:[#allocation2 + $0x28] sm:$0xf]
      %v1711 = vld [vmem:[#allocation2 + $0x30] sm:$0xf]
      %v1712 = vld [vmem:[#allocation2 + $0x38] sm:$0xf]
      %v1713 = vld [vmem:[%s4] sm:$0xf]
      %v1714 = vld [vmem:[%s4 + $0x4] sm:$0xf]
      %v1715 = vld [vmem:[%s4 + $0x8] sm:$0xf]
      %v1716 = vld [vmem:[%s4 + $0xc] sm:$0xf]
      %v1717 = vld [vmem:[%s4 + $0x10] sm:$0xf]
      %v1718 = vld [vmem:[%s4 + $0x14] sm:$0xf]
      %v1719 = vld [vmem:[%s4 + $0x18] sm:$0xf]
      %v1720 = vld [vmem:[%s4 + $0x1c] sm:$0xf]
      %v1721 = vld [vmem:[%s4 + $0x20] sm:$0xf]
      %v1722 = vld [vmem:[%s4 + $0x24] sm:$0xf]
      %v1723 = vld [vmem:[%s4 + $0x28] sm:$0xf]
      %v1724 = vld [vmem:[%s4 + $0x2c] sm:$0xf]
      %v1725 = vld [vmem:[%s4 + $0x30] sm:$0xf]
      %v1726 = vld [vmem:[%s4 + $0x34] sm:$0xf]
      %v1727 = vld [vmem:[%s4 + $0x38] sm:$0xf]
      %v1728 = vld [vmem:[%s4 + $0x3c] sm:$0xf]
      %v1729 = vld [vmem:[%s1016] sm:$0xf]
      %v1730 = vld [vmem:[%s1016 + $0x8] sm:$0xf]
      %v1731 = vld [vmem:[%s1016 + $0x10] sm:$0xf]
      %v1732 = vld [vmem:[%s1016 + $0x18] sm:$0xf]
      %v1733 = vld [vmem:[%s1016 + $0x20] sm:$0xf]
      %v1734 = vld [vmem:[%s1016 + $0x28] sm:$0xf]
      %v1735 = vld [vmem:[%s1016 + $0x30] sm:$0xf]
      %v1736 = vld [vmem:[%s1016 + $0x38] sm:$0xf]
      %s1737 = scalar_lea.vmem %s4, 64
      %v1738 = vld [vmem:[%s1737] sm:$0xf]
      %v1739 = vld [vmem:[%s1737 + $0x4] sm:$0xf]
      %v1740 = vld [vmem:[%s1737 + $0x8] sm:$0xf]
      %v1741 = vld [vmem:[%s1737 + $0xc] sm:$0xf]
      %v1742 = vld [vmem:[%s1737 + $0x10] sm:$0xf]
      %v1743 = vld [vmem:[%s1737 + $0x14] sm:$0xf]
      %v1744 = vld [vmem:[%s1737 + $0x18] sm:$0xf]
      %v1745 = vld [vmem:[%s1737 + $0x1c] sm:$0xf]
      %v1746 = vld [vmem:[%s1737 + $0x20] sm:$0xf]
      %v1747 = vld [vmem:[%s1737 + $0x24] sm:$0xf]
      %v1748 = vld [vmem:[%s1737 + $0x28] sm:$0xf]
      %v1749 = vld [vmem:[%s1737 + $0x2c] sm:$0xf]
      %v1750 = vld [vmem:[%s1737 + $0x30] sm:$0xf]
      %v1751 = vld [vmem:[%s1737 + $0x34] sm:$0xf]
      %v1752 = vld [vmem:[%s1737 + $0x38] sm:$0xf]
      %v1753 = vld [vmem:[%s1737 + $0x3c] sm:$0xf]
      %v1762 = vunpack.c.l.b16 %v1729
      %v1763 = vunpack.c.l.b16 %v1730
      %v1764 = vunpack.c.l.b16 %v1731
      %v1765 = vunpack.c.l.b16 %v1732
      %v1766 = vunpack.c.l.b16 %v1733
      %v1767 = vunpack.c.l.b16 %v1734
      %v1768 = vunpack.c.l.b16 %v1735
      %v1769 = vunpack.c.l.b16 %v1736
      %v1770 = vpack.c.b16 %v1763, %v1762
      %v1771 = vpack.c.b16 %v1765, %v1764
      %v1772 = vpack.c.b16 %v1767, %v1766
      %v1773 = vpack.c.b16 %v1769, %v1768
      %v1794 = vunpack.c.l.b16 %v1738
      %v1795 = vunpack.c.l.b16 %v1739
      %v1796 = vunpack.c.l.b16 %v1740
      %v1797 = vunpack.c.l.b16 %v1741
      %v1798 = vunpack.c.l.b16 %v1742
      %v1799 = vunpack.c.l.b16 %v1743
      %v1800 = vunpack.c.l.b16 %v1744
      %v1801 = vunpack.c.l.b16 %v1745
      %v1802 = vunpack.c.l.b16 %v1746
      %v1803 = vunpack.c.l.b16 %v1747
      %v1804 = vunpack.c.l.b16 %v1748
      %v1805 = vunpack.c.l.b16 %v1749
      %v1806 = vunpack.c.l.b16 %v1750
      %v1807 = vunpack.c.l.b16 %v1751
      %v1808 = vunpack.c.l.b16 %v1752
      %v1809 = vunpack.c.l.b16 %v1753
      %v1810 = vpack.c.b16 %v1795, %v1794
      %v1811 = vpack.c.b16 %v1797, %v1796
      %v1812 = vpack.c.b16 %v1799, %v1798
      %v1813 = vpack.c.b16 %v1801, %v1800
      %v1814 = vpack.c.b16 %v1803, %v1802
      %v1815 = vpack.c.b16 %v1805, %v1804
      %v1816 = vpack.c.b16 %v1807, %v1806
      %v1817 = vpack.c.b16 %v1809, %v1808
      %1826 = vmatpush.bf16.msra.mxu0 %v1817
      %1827 = vmatpush.bf16.msra.mxu0 %v1816
      %1828 = vmatpush.bf16.msra.mxu0 %v1815
      %1829 = vmatpush.bf16.msra.mxu0 %v1814
      %1830 = vmatpush.bf16.msra.mxu0 %v1813
      %1831 = vmatpush.bf16.msra.mxu0 %v1812
      %1832 = vmatpush.bf16.msra.mxu0 %v1811
      %1833 = vmatpush.bf16.msra.mxu0 %v1810
      %1834 = vmatmul.bf16.gmra.mxu0 %v1770
      %v1835 = vpop.f32.mrf.mxu0
      %v1836 = vadd.f32 0.0, %v1835
      %v1837 = vpop.f32.mrf.mxu0
      %v1838 = vadd.f32 0.0, %v1837
      %1839 = vmatmul.bf16.gmra.mxu0 %v1771
      %v1840 = vpop.f32.mrf.mxu0
      %v1841 = vadd.f32 0.0, %v1840
      %v1842 = vpop.f32.mrf.mxu0
      %v1843 = vadd.f32 0.0, %v1842
      %1844 = vmatmul.bf16.gmra.mxu0 %v1772
      %v1845 = vpop.f32.mrf.mxu0
      %v1846 = vadd.f32 0.0, %v1845
      %v1847 = vpop.f32.mrf.mxu0
      %v1848 = vadd.f32 0.0, %v1847
      %1849 = vmatmul.bf16.gmra.mxu0 %v1773
      %v1850 = vpop.f32.mrf.mxu0
      %v1851 = vadd.f32 0.0, %v1850
      %v1852 = vpop.f32.mrf.mxu0
      %v1853 = vadd.f32 0.0, %v1852
      %1854 = vdwg.mxu0
      %v1863 = vunpack.c.l.b16 %v1705
      %v1864 = vunpack.c.l.b16 %v1706
      %v1865 = vunpack.c.l.b16 %v1707
      %v1866 = vunpack.c.l.b16 %v1708
      %v1867 = vunpack.c.l.b16 %v1709
      %v1868 = vunpack.c.l.b16 %v1710
      %v1869 = vunpack.c.l.b16 %v1711
      %v1870 = vunpack.c.l.b16 %v1712
      %v1871 = vpack.c.b16 %v1864, %v1863
      %v1872 = vpack.c.b16 %v1866, %v1865
      %v1873 = vpack.c.b16 %v1868, %v1867
      %v1874 = vpack.c.b16 %v1870, %v1869
      %v1895 = vunpack.c.l.b16 %v1713
      %v1896 = vunpack.c.l.b16 %v1714
      %v1897 = vunpack.c.l.b16 %v1715
      %v1898 = vunpack.c.l.b16 %v1716
      %v1899 = vunpack.c.l.b16 %v1717
      %v1900 = vunpack.c.l.b16 %v1718
      %v1901 = vunpack.c.l.b16 %v1719
      %v1902 = vunpack.c.l.b16 %v1720
      %v1903 = vunpack.c.l.b16 %v1721
      %v1904 = vunpack.c.l.b16 %v1722
      %v1905 = vunpack.c.l.b16 %v1723
      %v1906 = vunpack.c.l.b16 %v1724
      %v1907 = vunpack.c.l.b16 %v1725
      %v1908 = vunpack.c.l.b16 %v1726
      %v1909 = vunpack.c.l.b16 %v1727
      %v1910 = vunpack.c.l.b16 %v1728
      %v1911 = vpack.c.b16 %v1896, %v1895
      %v1912 = vpack.c.b16 %v1898, %v1897
      %v1913 = vpack.c.b16 %v1900, %v1899
      %v1914 = vpack.c.b16 %v1902, %v1901
      %v1915 = vpack.c.b16 %v1904, %v1903
      %v1916 = vpack.c.b16 %v1906, %v1905
      %v1917 = vpack.c.b16 %v1908, %v1907
      %v1918 = vpack.c.b16 %v1910, %v1909
      %1927 = vmatpush.bf16.msra.mxu0 %v1918
      %1928 = vmatpush.bf16.msra.mxu0 %v1917
      %1929 = vmatpush.bf16.msra.mxu0 %v1916
      %1930 = vmatpush.bf16.msra.mxu0 %v1915
      %1931 = vmatpush.bf16.msra.mxu0 %v1914
      %1932 = vmatpush.bf16.msra.mxu0 %v1913
      %1933 = vmatpush.bf16.msra.mxu0 %v1912
      %1934 = vmatpush.bf16.msra.mxu0 %v1911
      %1935 = vmatmul.bf16.gmra.mxu0 %v1871
      %v1936 = vpop.f32.mrf.mxu0
      %v1937 = vadd.f32 %v1836, %v1936
      %v1938 = vpop.f32.mrf.mxu0
      %v1939 = vadd.f32 %v1838, %v1938
      %1940 = vmatmul.bf16.gmra.mxu0 %v1872
      %v1941 = vpop.f32.mrf.mxu0
      %v1942 = vadd.f32 %v1841, %v1941
      %v1943 = vpop.f32.mrf.mxu0
      %v1944 = vadd.f32 %v1843, %v1943
      %1945 = vmatmul.bf16.gmra.mxu0 %v1873
      %v1946 = vpop.f32.mrf.mxu0
      %v1947 = vadd.f32 %v1846, %v1946
      %v1948 = vpop.f32.mrf.mxu0
      %v1949 = vadd.f32 %v1848, %v1948
      %1950 = vmatmul.bf16.gmra.mxu0 %v1874
      %v1951 = vpop.f32.mrf.mxu0
      %v1952 = vadd.f32 %v1851, %v1951
      %v1953 = vpop.f32.mrf.mxu0
      %v1954 = vadd.f32 %v1853, %v1953
      %1955 = vdwg.mxu0
      %v1956 = vld [vmem:[#allocation2] sm:$0xf]
      %v1957 = vld [vmem:[#allocation2 + $0x4] sm:$0x1]
      %v1958 = vld [vmem:[#allocation2 + $0x8] sm:$0xf]
      %v1959 = vld [vmem:[#allocation2 + $0xc] sm:$0x1]
      %v1960 = vld [vmem:[#allocation2 + $0x10] sm:$0xf]
      %v1961 = vld [vmem:[#allocation2 + $0x14] sm:$0x1]
      %v1962 = vld [vmem:[#allocation2 + $0x18] sm:$0xf]
      %v1963 = vld [vmem:[#allocation2 + $0x1c] sm:$0x1]
      %v1964 = vld [vmem:[#allocation2 + $0x20] sm:$0xf]
      %v1965 = vld [vmem:[#allocation2 + $0x24] sm:$0x1]
      %v1966 = vld [vmem:[#allocation2 + $0x28] sm:$0xf]
      %v1967 = vld [vmem:[#allocation2 + $0x2c] sm:$0x1]
      %v1968 = vld [vmem:[#allocation2 + $0x30] sm:$0xf]
      %v1969 = vld [vmem:[#allocation2 + $0x34] sm:$0x1]
      %v1970 = vld [vmem:[#allocation2 + $0x38] sm:$0xf]
      %v1971 = vld [vmem:[#allocation2 + $0x3c] sm:$0x1]
      %vm1972 = vsmask.f32 3328
      %vm1973 = vsmask.f32 7440
      %vm1974 = vmor %vm1972, %vm1973
      %v1976 = vshrl.u32 %v1956, 16
      %v1978 = vrot.slane %v1976, 4
      %v1979 = vshll.u32 %v1956, 16
      %v1981 = vrot.slane %v1979, 5
      %v1982 = vor.u32 %v1978, %v1981
      %v1983 = vrot.slane %v1982, 4
      %v1985 = vshll.u32 %v1957, 16
      %v1987 = vrot.slane %v1985, 5
      %v1988 = vsel %vm1974, %v1983, %v1987
      %v1990 = vshrl.u32 %v1958, 16
      %v1992 = vrot.slane %v1990, 4
      %v1993 = vshll.u32 %v1958, 16
      %v1995 = vrot.slane %v1993, 5
      %v1996 = vor.u32 %v1992, %v1995
      %v1997 = vrot.slane %v1996, 4
      %v1999 = vshll.u32 %v1959, 16
      %v2001 = vrot.slane %v1999, 5
      %v2002 = vsel %vm1974, %v1997, %v2001
      %v2004 = vshrl.u32 %v1960, 16
      %v2006 = vrot.slane %v2004, 4
      %v2007 = vshll.u32 %v1960, 16
      %v2009 = vrot.slane %v2007, 5
      %v2010 = vor.u32 %v2006, %v2009
      %v2011 = vrot.slane %v2010, 4
      %v2013 = vshll.u32 %v1961, 16
      %v2015 = vrot.slane %v2013, 5
      %v2016 = vsel %vm1974, %v2011, %v2015
      %v2018 = vshrl.u32 %v1962, 16
      %v2020 = vrot.slane %v2018, 4
      %v2021 = vshll.u32 %v1962, 16
      %v2023 = vrot.slane %v2021, 5
      %v2024 = vor.u32 %v2020, %v2023
      %v2025 = vrot.slane %v2024, 4
      %v2027 = vshll.u32 %v1963, 16
      %v2029 = vrot.slane %v2027, 5
      %v2030 = vsel %vm1974, %v2025, %v2029
      %v2032 = vshrl.u32 %v1964, 16
      %v2034 = vrot.slane %v2032, 4
      %v2035 = vshll.u32 %v1964, 16
      %v2037 = vrot.slane %v2035, 5
      %v2038 = vor.u32 %v2034, %v2037
      %v2039 = vrot.slane %v2038, 4
      %v2041 = vshll.u32 %v1965, 16
      %v2043 = vrot.slane %v2041, 5
      %v2044 = vsel %vm1974, %v2039, %v2043
      %v2046 = vshrl.u32 %v1966, 16
      %v2048 = vrot.slane %v2046, 4
      %v2049 = vshll.u32 %v1966, 16
      %v2051 = vrot.slane %v2049, 5
      %v2052 = vor.u32 %v2048, %v2051
      %v2053 = vrot.slane %v2052, 4
      %v2055 = vshll.u32 %v1967, 16
      %v2057 = vrot.slane %v2055, 5
      %v2058 = vsel %vm1974, %v2053, %v2057
      %v2060 = vshrl.u32 %v1968, 16
      %v2062 = vrot.slane %v2060, 4
      %v2063 = vshll.u32 %v1968, 16
      %v2065 = vrot.slane %v2063, 5
      %v2066 = vor.u32 %v2062, %v2065
      %v2067 = vrot.slane %v2066, 4
      %v2069 = vshll.u32 %v1969, 16
      %v2071 = vrot.slane %v2069, 5
      %v2072 = vsel %vm1974, %v2067, %v2071
      %v2074 = vshrl.u32 %v1970, 16
      %v2076 = vrot.slane %v2074, 4
      %v2077 = vshll.u32 %v1970, 16
      %v2079 = vrot.slane %v2077, 5
      %v2080 = vor.u32 %v2076, %v2079
      %v2081 = vrot.slane %v2080, 4
      %v2083 = vshll.u32 %v1971, 16
      %v2085 = vrot.slane %v2083, 5
      %v2086 = vsel %vm1974, %v2081, %v2085
      %s2087 = scalar_lea.vmem %s4, 128
      %v2088 = vld [vmem:[%s2087] sm:$0xf]
      %v2089 = vld [vmem:[%s2087 + $0x4] sm:$0xf]
      %v2090 = vld [vmem:[%s2087 + $0x8] sm:$0xf]
      %v2091 = vld [vmem:[%s2087 + $0xc] sm:$0xf]
      %v2092 = vld [vmem:[%s2087 + $0x10] sm:$0xf]
      %v2093 = vld [vmem:[%s2087 + $0x14] sm:$0xf]
      %v2094 = vld [vmem:[%s2087 + $0x18] sm:$0xf]
      %v2095 = vld [vmem:[%s2087 + $0x1c] sm:$0xf]
      %v2096 = vld [vmem:[%s2087 + $0x20] sm:$0xf]
      %v2097 = vld [vmem:[%s2087 + $0x24] sm:$0xf]
      %v2098 = vld [vmem:[%s2087 + $0x28] sm:$0xf]
      %v2099 = vld [vmem:[%s2087 + $0x2c] sm:$0xf]
      %v2100 = vld [vmem:[%s2087 + $0x30] sm:$0xf]
      %v2101 = vld [vmem:[%s2087 + $0x34] sm:$0xf]
      %v2102 = vld [vmem:[%s2087 + $0x38] sm:$0xf]
      %v2103 = vld [vmem:[%s2087 + $0x3c] sm:$0xf]
      %v2104 = vunpack.c.l.b16 %v1988
      %v2105 = vunpack.c.l.b16 %v2002
      %v2106 = vunpack.c.l.b16 %v2016
      %v2107 = vunpack.c.l.b16 %v2030
      %v2108 = vunpack.c.l.b16 %v2044
      %v2109 = vunpack.c.l.b16 %v2058
      %v2110 = vunpack.c.l.b16 %v2072
      %v2111 = vunpack.c.l.b16 %v2086
      %v2112 = vpack.c.b16 %v2105, %v2104
      %v2113 = vpack.c.b16 %v2107, %v2106
      %v2114 = vpack.c.b16 %v2109, %v2108
      %v2115 = vpack.c.b16 %v2111, %v2110
      %v2136 = vunpack.c.l.b16 %v2088
      %v2137 = vunpack.c.l.b16 %v2089
      %v2138 = vunpack.c.l.b16 %v2090
      %v2139 = vunpack.c.l.b16 %v2091
      %v2140 = vunpack.c.l.b16 %v2092
      %v2141 = vunpack.c.l.b16 %v2093
      %v2142 = vunpack.c.l.b16 %v2094
      %v2143 = vunpack.c.l.b16 %v2095
      %v2144 = vunpack.c.l.b16 %v2096
      %v2145 = vunpack.c.l.b16 %v2097
      %v2146 = vunpack.c.l.b16 %v2098
      %v2147 = vunpack.c.l.b16 %v2099
      %v2148 = vunpack.c.l.b16 %v2100
      %v2149 = vunpack.c.l.b16 %v2101
      %v2150 = vunpack.c.l.b16 %v2102
      %v2151 = vunpack.c.l.b16 %v2103
      %v2152 = vpack.c.b16 %v2137, %v2136
      %v2153 = vpack.c.b16 %v2139, %v2138
      %v2154 = vpack.c.b16 %v2141, %v2140
      %v2155 = vpack.c.b16 %v2143, %v2142
      %v2156 = vpack.c.b16 %v2145, %v2144
      %v2157 = vpack.c.b16 %v2147, %v2146
      %v2158 = vpack.c.b16 %v2149, %v2148
      %v2159 = vpack.c.b16 %v2151, %v2150
      %2168 = vmatpush.bf16.msra.mxu0 %v2159
      %2169 = vmatpush.bf16.msra.mxu0 %v2158
      %2170 = vmatpush.bf16.msra.mxu0 %v2157
      %2171 = vmatpush.bf16.msra.mxu0 %v2156
      %2172 = vmatpush.bf16.msra.mxu0 %v2155
      %2173 = vmatpush.bf16.msra.mxu0 %v2154
      %2174 = vmatpush.bf16.msra.mxu0 %v2153
      %2175 = vmatpush.bf16.msra.mxu0 %v2152
      %2176 = vmatmul.bf16.gmra.mxu0 %v2112
      %v2177 = vpop.f32.mrf.mxu0
      %v2178 = vadd.f32 0.0, %v2177
      %v2179 = vpop.f32.mrf.mxu0
      %v2180 = vadd.f32 0.0, %v2179
      %2181 = vmatmul.bf16.gmra.mxu0 %v2113
      %v2182 = vpop.f32.mrf.mxu0
      %v2183 = vadd.f32 0.0, %v2182
      %v2184 = vpop.f32.mrf.mxu0
      %v2185 = vadd.f32 0.0, %v2184
      %2186 = vmatmul.bf16.gmra.mxu0 %v2114
      %v2187 = vpop.f32.mrf.mxu0
      %v2188 = vadd.f32 0.0, %v2187
      %v2189 = vpop.f32.mrf.mxu0
      %v2190 = vadd.f32 0.0, %v2189
      %2191 = vmatmul.bf16.gmra.mxu0 %v2115
      %v2192 = vpop.f32.mrf.mxu0
      %v2193 = vadd.f32 0.0, %v2192
      %v2194 = vpop.f32.mrf.mxu0
      %v2195 = vadd.f32 0.0, %v2194
      %2196 = vdwg.mxu0
      %v2197 = vadd.f32 %v1937, %v2178
      %v2198 = vadd.f32 %v1939, %v2180
      %v2199 = vadd.f32 %v1942, %v2183
      %v2200 = vadd.f32 %v1944, %v2185
      %v2201 = vadd.f32 %v1947, %v2188
      %v2202 = vadd.f32 %v1949, %v2190
      %v2203 = vadd.f32 %v1952, %v2193
      %v2204 = vadd.f32 %v1954, %v2195
      %v2205 = vld [vmem:[%s1351] sm:$0xf]
      %v2206 = vld [vmem:[%s1351 + $0x8] sm:$0xf]
      %v2207 = vld [vmem:[%s1351 + $0x10] sm:$0xf]
      %v2208 = vld [vmem:[%s1351 + $0x18] sm:$0xf]
      %v2209 = vld [vmem:[%s1351 + $0x20] sm:$0xf]
      %v2210 = vld [vmem:[%s1351 + $0x28] sm:$0xf]
      %v2211 = vld [vmem:[%s1351 + $0x30] sm:$0xf]
      %v2212 = vld [vmem:[%s1351 + $0x38] sm:$0xf]
      %s2213 = scalar_lea.vmem %s4, 192
      %v2214 = vld [vmem:[%s2213] sm:$0xf]
      %v2215 = vld [vmem:[%s2213 + $0x4] sm:$0xf]
      %v2216 = vld [vmem:[%s2213 + $0x8] sm:$0xf]
      %v2217 = vld [vmem:[%s2213 + $0xc] sm:$0xf]
      %v2218 = vld [vmem:[%s2213 + $0x10] sm:$0xf]
      %v2219 = vld [vmem:[%s2213 + $0x14] sm:$0xf]
      %v2220 = vld [vmem:[%s2213 + $0x18] sm:$0xf]
      %v2221 = vld [vmem:[%s2213 + $0x1c] sm:$0xf]
      %v2222 = vld [vmem:[%s2213 + $0x20] sm:$0xf]
      %v2223 = vld [vmem:[%s2213 + $0x24] sm:$0xf]
      %v2224 = vld [vmem:[%s2213 + $0x28] sm:$0xf]
      %v2225 = vld [vmem:[%s2213 + $0x2c] sm:$0xf]
      %v2226 = vld [vmem:[%s2213 + $0x30] sm:$0xf]
      %v2227 = vld [vmem:[%s2213 + $0x34] sm:$0xf]
      %v2228 = vld [vmem:[%s2213 + $0x38] sm:$0xf]
      %v2229 = vld [vmem:[%s2213 + $0x3c] sm:$0xf]
      %v2238 = vunpack.c.l.b16 %v2205
      %v2239 = vunpack.c.l.b16 %v2206
      %v2240 = vunpack.c.l.b16 %v2207
      %v2241 = vunpack.c.l.b16 %v2208
      %v2242 = vunpack.c.l.b16 %v2209
      %v2243 = vunpack.c.l.b16 %v2210
      %v2244 = vunpack.c.l.b16 %v2211
      %v2245 = vunpack.c.l.b16 %v2212
      %v2246 = vpack.c.b16 %v2239, %v2238
      %v2247 = vpack.c.b16 %v2241, %v2240
      %v2248 = vpack.c.b16 %v2243, %v2242
      %v2249 = vpack.c.b16 %v2245, %v2244
      %v2270 = vunpack.c.l.b16 %v2214
      %v2271 = vunpack.c.l.b16 %v2215
      %v2272 = vunpack.c.l.b16 %v2216
      %v2273 = vunpack.c.l.b16 %v2217
      %v2274 = vunpack.c.l.b16 %v2218
      %v2275 = vunpack.c.l.b16 %v2219
      %v2276 = vunpack.c.l.b16 %v2220
      %v2277 = vunpack.c.l.b16 %v2221
      %v2278 = vunpack.c.l.b16 %v2222
      %v2279 = vunpack.c.l.b16 %v2223
      %v2280 = vunpack.c.l.b16 %v2224
      %v2281 = vunpack.c.l.b16 %v2225
      %v2282 = vunpack.c.l.b16 %v2226
      %v2283 = vunpack.c.l.b16 %v2227
      %v2284 = vunpack.c.l.b16 %v2228
      %v2285 = vunpack.c.l.b16 %v2229
      %v2286 = vpack.c.b16 %v2271, %v2270
      %v2287 = vpack.c.b16 %v2273, %v2272
      %v2288 = vpack.c.b16 %v2275, %v2274
      %v2289 = vpack.c.b16 %v2277, %v2276
      %v2290 = vpack.c.b16 %v2279, %v2278
      %v2291 = vpack.c.b16 %v2281, %v2280
      %v2292 = vpack.c.b16 %v2283, %v2282
      %v2293 = vpack.c.b16 %v2285, %v2284
      %2302 = vmatpush.bf16.msra.mxu0 %v2293
      %2303 = vmatpush.bf16.msra.mxu0 %v2292
      %2304 = vmatpush.bf16.msra.mxu0 %v2291
      %2305 = vmatpush.bf16.msra.mxu0 %v2290
      %2306 = vmatpush.bf16.msra.mxu0 %v2289
      %2307 = vmatpush.bf16.msra.mxu0 %v2288
      %2308 = vmatpush.bf16.msra.mxu0 %v2287
      %2309 = vmatpush.bf16.msra.mxu0 %v2286
      %2310 = vmatmul.bf16.gmra.mxu0 %v2246
      %v2311 = vpop.f32.mrf.mxu0
      %v2312 = vadd.f32 0.0, %v2311
      %v2313 = vpop.f32.mrf.mxu0
      %v2314 = vadd.f32 0.0, %v2313
      %2315 = vmatmul.bf16.gmra.mxu0 %v2247
      %v2316 = vpop.f32.mrf.mxu0
      %v2317 = vadd.f32 0.0, %v2316
      %v2318 = vpop.f32.mrf.mxu0
      %v2319 = vadd.f32 0.0, %v2318
      %2320 = vmatmul.bf16.gmra.mxu0 %v2248
      %v2321 = vpop.f32.mrf.mxu0
      %v2322 = vadd.f32 0.0, %v2321
      %v2323 = vpop.f32.mrf.mxu0
      %v2324 = vadd.f32 0.0, %v2323
      %2325 = vmatmul.bf16.gmra.mxu0 %v2249
      %v2326 = vpop.f32.mrf.mxu0
      %v2327 = vadd.f32 0.0, %v2326
      %v2328 = vpop.f32.mrf.mxu0
      %v2329 = vadd.f32 0.0, %v2328
      %2330 = vdwg.mxu0
      %v2331 = vadd.f32 %v2197, %v2312
      %v2332 = vadd.f32 %v2198, %v2314
      %v2333 = vadd.f32 %v2199, %v2317
      %v2334 = vadd.f32 %v2200, %v2319
      %v2335 = vadd.f32 %v2201, %v2322
      %v2336 = vadd.f32 %v2202, %v2324
      %v2337 = vadd.f32 %v2203, %v2327
      %v2338 = vadd.f32 %v2204, %v2329
      %v2339 = vld [vmem:[%s1686] sm:$0xf]
      %v2340 = vld [vmem:[%s1686 + $0x8] sm:$0xf]
      %v2341 = vld [vmem:[%s1686 + $0x10] sm:$0xf]
      %v2342 = vld [vmem:[%s1686 + $0x18] sm:$0xf]
      %v2343 = vld [vmem:[%s1686 + $0x20] sm:$0xf]
      %v2344 = vld [vmem:[%s1686 + $0x28] sm:$0xf]
      %v2345 = vld [vmem:[%s1686 + $0x30] sm:$0xf]
      %v2346 = vld [vmem:[%s1686 + $0x38] sm:$0xf]
      %s2347 = scalar_lea.vmem %s4, 256
      %v2348 = vld [vmem:[%s2347] sm:$0xf]
      %v2349 = vld [vmem:[%s2347 + $0x4] sm:$0xf]
      %v2350 = vld [vmem:[%s2347 + $0x8] sm:$0xf]
      %v2351 = vld [vmem:[%s2347 + $0xc] sm:$0xf]
      %v2352 = vld [vmem:[%s2347 + $0x10] sm:$0xf]
      %v2353 = vld [vmem:[%s2347 + $0x14] sm:$0xf]
      %v2354 = vld [vmem:[%s2347 + $0x18] sm:$0xf]
      %v2355 = vld [vmem:[%s2347 + $0x1c] sm:$0xf]
      %v2356 = vld [vmem:[%s2347 + $0x20] sm:$0xf]
      %v2357 = vld [vmem:[%s2347 + $0x24] sm:$0xf]
      %v2358 = vld [vmem:[%s2347 + $0x28] sm:$0xf]
      %v2359 = vld [vmem:[%s2347 + $0x2c] sm:$0xf]
      %v2360 = vld [vmem:[%s2347 + $0x30] sm:$0xf]
      %v2361 = vld [vmem:[%s2347 + $0x34] sm:$0xf]
      %v2362 = vld [vmem:[%s2347 + $0x38] sm:$0xf]
      %v2363 = vld [vmem:[%s2347 + $0x3c] sm:$0xf]
      %v2372 = vunpack.c.l.b16 %v2339
      %v2373 = vunpack.c.l.b16 %v2340
      %v2374 = vunpack.c.l.b16 %v2341
      %v2375 = vunpack.c.l.b16 %v2342
      %v2376 = vunpack.c.l.b16 %v2343
      %v2377 = vunpack.c.l.b16 %v2344
      %v2378 = vunpack.c.l.b16 %v2345
      %v2379 = vunpack.c.l.b16 %v2346
      %v2380 = vpack.c.b16 %v2373, %v2372
      %v2381 = vpack.c.b16 %v2375, %v2374
      %v2382 = vpack.c.b16 %v2377, %v2376
      %v2383 = vpack.c.b16 %v2379, %v2378
      %v2404 = vunpack.c.l.b16 %v2348
      %v2405 = vunpack.c.l.b16 %v2349
      %v2406 = vunpack.c.l.b16 %v2350
      %v2407 = vunpack.c.l.b16 %v2351
      %v2408 = vunpack.c.l.b16 %v2352
      %v2409 = vunpack.c.l.b16 %v2353
      %v2410 = vunpack.c.l.b16 %v2354
      %v2411 = vunpack.c.l.b16 %v2355
      %v2412 = vunpack.c.l.b16 %v2356
      %v2413 = vunpack.c.l.b16 %v2357
      %v2414 = vunpack.c.l.b16 %v2358
      %v2415 = vunpack.c.l.b16 %v2359
      %v2416 = vunpack.c.l.b16 %v2360
      %v2417 = vunpack.c.l.b16 %v2361
      %v2418 = vunpack.c.l.b16 %v2362
      %v2419 = vunpack.c.l.b16 %v2363
      %v2420 = vpack.c.b16 %v2405, %v2404
      %v2421 = vpack.c.b16 %v2407, %v2406
      %v2422 = vpack.c.b16 %v2409, %v2408
      %v2423 = vpack.c.b16 %v2411, %v2410
      %v2424 = vpack.c.b16 %v2413, %v2412
      %v2425 = vpack.c.b16 %v2415, %v2414
      %v2426 = vpack.c.b16 %v2417, %v2416
      %v2427 = vpack.c.b16 %v2419, %v2418
      %2436 = vmatpush.bf16.msra.mxu0 %v2427
      %2437 = vmatpush.bf16.msra.mxu0 %v2426
      %2438 = vmatpush.bf16.msra.mxu0 %v2425
      %2439 = vmatpush.bf16.msra.mxu0 %v2424
      %2440 = vmatpush.bf16.msra.mxu0 %v2423
      %2441 = vmatpush.bf16.msra.mxu0 %v2422
      %2442 = vmatpush.bf16.msra.mxu0 %v2421
      %2443 = vmatpush.bf16.msra.mxu0 %v2420
      %2444 = vmatmul.bf16.gmra.mxu0 %v2380
      %v2445 = vpop.f32.mrf.mxu0
      %v2446 = vadd.f32 0.0, %v2445
      %v2447 = vpop.f32.mrf.mxu0
      %v2448 = vadd.f32 0.0, %v2447
      %2449 = vmatmul.bf16.gmra.mxu0 %v2381
      %v2450 = vpop.f32.mrf.mxu0
      %v2451 = vadd.f32 0.0, %v2450
      %v2452 = vpop.f32.mrf.mxu0
      %v2453 = vadd.f32 0.0, %v2452
      %2454 = vmatmul.bf16.gmra.mxu0 %v2382
      %v2455 = vpop.f32.mrf.mxu0
      %v2456 = vadd.f32 0.0, %v2455
      %v2457 = vpop.f32.mrf.mxu0
      %v2458 = vadd.f32 0.0, %v2457
      %2459 = vmatmul.bf16.gmra.mxu0 %v2383
      %v2460 = vpop.f32.mrf.mxu0
      %v2461 = vadd.f32 0.0, %v2460
      %v2462 = vpop.f32.mrf.mxu0
      %v2463 = vadd.f32 0.0, %v2462
      %2464 = vdwg.mxu0
      %v2465 = vadd.f32 %v2331, %v2446
      %v2466 = vadd.f32 %v2332, %v2448
      %v2467 = vadd.f32 %v2333, %v2451
      %v2468 = vadd.f32 %v2334, %v2453
      %v2469 = vadd.f32 %v2335, %v2456
      %v2470 = vadd.f32 %v2336, %v2458
      %v2471 = vadd.f32 %v2337, %v2461
      %v2472 = vadd.f32 %v2338, %v2463
      %v2473 = vld [vmem:[%s1351] sm:$0xf]
      %v2474 = vld [vmem:[%s1351 + $0x4] sm:$0x1]
      %v2475 = vld [vmem:[%s1351 + $0x8] sm:$0xf]
      %v2476 = vld [vmem:[%s1351 + $0xc] sm:$0x1]
      %v2477 = vld [vmem:[%s1351 + $0x10] sm:$0xf]
      %v2478 = vld [vmem:[%s1351 + $0x14] sm:$0x1]
      %v2479 = vld [vmem:[%s1351 + $0x18] sm:$0xf]
      %v2480 = vld [vmem:[%s1351 + $0x1c] sm:$0x1]
      %v2481 = vld [vmem:[%s1351 + $0x20] sm:$0xf]
      %v2482 = vld [vmem:[%s1351 + $0x24] sm:$0x1]
      %v2483 = vld [vmem:[%s1351 + $0x28] sm:$0xf]
      %v2484 = vld [vmem:[%s1351 + $0x2c] sm:$0x1]
      %v2485 = vld [vmem:[%s1351 + $0x30] sm:$0xf]
      %v2486 = vld [vmem:[%s1351 + $0x34] sm:$0x1]
      %v2487 = vld [vmem:[%s1351 + $0x38] sm:$0xf]
      %v2488 = vld [vmem:[%s1351 + $0x3c] sm:$0x1]
      %v2490 = vshrl.u32 %v2473, 16
      %v2492 = vrot.slane %v2490, 4
      %v2493 = vshll.u32 %v2473, 16
      %v2495 = vrot.slane %v2493, 5
      %v2496 = vor.u32 %v2492, %v2495
      %v2497 = vrot.slane %v2496, 4
      %v2499 = vshll.u32 %v2474, 16
      %v2501 = vrot.slane %v2499, 5
      %v2502 = vsel %vm1974, %v2497, %v2501
      %v2504 = vshrl.u32 %v2475, 16
      %v2506 = vrot.slane %v2504, 4
      %v2507 = vshll.u32 %v2475, 16
      %v2509 = vrot.slane %v2507, 5
      %v2510 = vor.u32 %v2506, %v2509
      %v2511 = vrot.slane %v2510, 4
      %v2513 = vshll.u32 %v2476, 16
      %v2515 = vrot.slane %v2513, 5
      %v2516 = vsel %vm1974, %v2511, %v2515
      %v2518 = vshrl.u32 %v2477, 16
      %v2520 = vrot.slane %v2518, 4
      %v2521 = vshll.u32 %v2477, 16
      %v2523 = vrot.slane %v2521, 5
      %v2524 = vor.u32 %v2520, %v2523
      %v2525 = vrot.slane %v2524, 4
      %v2527 = vshll.u32 %v2478, 16
      %v2529 = vrot.slane %v2527, 5
      %v2530 = vsel %vm1974, %v2525, %v2529
      %v2532 = vshrl.u32 %v2479, 16
      %v2534 = vrot.slane %v2532, 4
      %v2535 = vshll.u32 %v2479, 16
      %v2537 = vrot.slane %v2535, 5
      %v2538 = vor.u32 %v2534, %v2537
      %v2539 = vrot.slane %v2538, 4
      %v2541 = vshll.u32 %v2480, 16
      %v2543 = vrot.slane %v2541, 5
      %v2544 = vsel %vm1974, %v2539, %v2543
      %v2546 = vshrl.u32 %v2481, 16
      %v2548 = vrot.slane %v2546, 4
      %v2549 = vshll.u32 %v2481, 16
      %v2551 = vrot.slane %v2549, 5
      %v2552 = vor.u32 %v2548, %v2551
      %v2553 = vrot.slane %v2552, 4
      %v2555 = vshll.u32 %v2482, 16
      %v2557 = vrot.slane %v2555, 5
      %v2558 = vsel %vm1974, %v2553, %v2557
      %v2560 = vshrl.u32 %v2483, 16
      %v2562 = vrot.slane %v2560, 4
      %v2563 = vshll.u32 %v2483, 16
      %v2565 = vrot.slane %v2563, 5
      %v2566 = vor.u32 %v2562, %v2565
      %v2567 = vrot.slane %v2566, 4
      %v2569 = vshll.u32 %v2484, 16
      %v2571 = vrot.slane %v2569, 5
      %v2572 = vsel %vm1974, %v2567, %v2571
      %v2574 = vshrl.u32 %v2485, 16
      %v2576 = vrot.slane %v2574, 4
      %v2577 = vshll.u32 %v2485, 16
      %v2579 = vrot.slane %v2577, 5
      %v2580 = vor.u32 %v2576, %v2579
      %v2581 = vrot.slane %v2580, 4
      %v2583 = vshll.u32 %v2486, 16
      %v2585 = vrot.slane %v2583, 5
      %v2586 = vsel %vm1974, %v2581, %v2585
      %v2588 = vshrl.u32 %v2487, 16
      %v2590 = vrot.slane %v2588, 4
      %v2591 = vshll.u32 %v2487, 16
      %v2593 = vrot.slane %v2591, 5
      %v2594 = vor.u32 %v2590, %v2593
      %v2595 = vrot.slane %v2594, 4
      %v2597 = vshll.u32 %v2488, 16
      %v2599 = vrot.slane %v2597, 5
      %v2600 = vsel %vm1974, %v2595, %v2599
      %s2601 = scalar_lea.vmem %s4, 320
      %v2602 = vld [vmem:[%s2601] sm:$0xf]
      %v2603 = vld [vmem:[%s2601 + $0x4] sm:$0xf]
      %v2604 = vld [vmem:[%s2601 + $0x8] sm:$0xf]
      %v2605 = vld [vmem:[%s2601 + $0xc] sm:$0xf]
      %v2606 = vld [vmem:[%s2601 + $0x10] sm:$0xf]
      %v2607 = vld [vmem:[%s2601 + $0x14] sm:$0xf]
      %v2608 = vld [vmem:[%s2601 + $0x18] sm:$0xf]
      %v2609 = vld [vmem:[%s2601 + $0x1c] sm:$0xf]
      %v2610 = vld [vmem:[%s2601 + $0x20] sm:$0xf]
      %v2611 = vld [vmem:[%s2601 + $0x24] sm:$0xf]
      %v2612 = vld [vmem:[%s2601 + $0x28] sm:$0xf]
      %v2613 = vld [vmem:[%s2601 + $0x2c] sm:$0xf]
      %v2614 = vld [vmem:[%s2601 + $0x30] sm:$0xf]
      %v2615 = vld [vmem:[%s2601 + $0x34] sm:$0xf]
      %v2616 = vld [vmem:[%s2601 + $0x38] sm:$0xf]
      %v2617 = vld [vmem:[%s2601 + $0x3c] sm:$0xf]
      %v2618 = vunpack.c.l.b16 %v2502
      %v2619 = vunpack.c.l.b16 %v2516
      %v2620 = vunpack.c.l.b16 %v2530
      %v2621 = vunpack.c.l.b16 %v2544
      %v2622 = vunpack.c.l.b16 %v2558
      %v2623 = vunpack.c.l.b16 %v2572
      %v2624 = vunpack.c.l.b16 %v2586
      %v2625 = vunpack.c.l.b16 %v2600
      %v2626 = vpack.c.b16 %v2619, %v2618
      %v2627 = vpack.c.b16 %v2621, %v2620
      %v2628 = vpack.c.b16 %v2623, %v2622
      %v2629 = vpack.c.b16 %v2625, %v2624
      %v2650 = vunpack.c.l.b16 %v2602
      %v2651 = vunpack.c.l.b16 %v2603
      %v2652 = vunpack.c.l.b16 %v2604
      %v2653 = vunpack.c.l.b16 %v2605
      %v2654 = vunpack.c.l.b16 %v2606
      %v2655 = vunpack.c.l.b16 %v2607
      %v2656 = vunpack.c.l.b16 %v2608
      %v2657 = vunpack.c.l.b16 %v2609
      %v2658 = vunpack.c.l.b16 %v2610
      %v2659 = vunpack.c.l.b16 %v2611
      %v2660 = vunpack.c.l.b16 %v2612
      %v2661 = vunpack.c.l.b16 %v2613
      %v2662 = vunpack.c.l.b16 %v2614
      %v2663 = vunpack.c.l.b16 %v2615
      %v2664 = vunpack.c.l.b16 %v2616
      %v2665 = vunpack.c.l.b16 %v2617
      %v2666 = vpack.c.b16 %v2651, %v2650
      %v2667 = vpack.c.b16 %v2653, %v2652
      %v2668 = vpack.c.b16 %v2655, %v2654
      %v2669 = vpack.c.b16 %v2657, %v2656
      %v2670 = vpack.c.b16 %v2659, %v2658
      %v2671 = vpack.c.b16 %v2661, %v2660
      %v2672 = vpack.c.b16 %v2663, %v2662
      %v2673 = vpack.c.b16 %v2665, %v2664
      %2682 = vmatpush.bf16.msra.mxu0 %v2673
      %2683 = vmatpush.bf16.msra.mxu0 %v2672
      %2684 = vmatpush.bf16.msra.mxu0 %v2671
      %2685 = vmatpush.bf16.msra.mxu0 %v2670
      %2686 = vmatpush.bf16.msra.mxu0 %v2669
      %2687 = vmatpush.bf16.msra.mxu0 %v2668
      %2688 = vmatpush.bf16.msra.mxu0 %v2667
      %2689 = vmatpush.bf16.msra.mxu0 %v2666
      %2690 = vmatmul.bf16.gmra.mxu0 %v2626
      %v2691 = vpop.f32.mrf.mxu0
      %v2692 = vadd.f32 0.0, %v2691
      %v2693 = vpop.f32.mrf.mxu0
      %v2694 = vadd.f32 0.0, %v2693
      %2695 = vmatmul.bf16.gmra.mxu0 %v2627
      %v2696 = vpop.f32.mrf.mxu0
      %v2697 = vadd.f32 0.0, %v2696
      %v2698 = vpop.f32.mrf.mxu0
      %v2699 = vadd.f32 0.0, %v2698
      %2700 = vmatmul.bf16.gmra.mxu0 %v2628
      %v2701 = vpop.f32.mrf.mxu0
      %v2702 = vadd.f32 0.0, %v2701
      %v2703 = vpop.f32.mrf.mxu0
      %v2704 = vadd.f32 0.0, %v2703
      %2705 = vmatmul.bf16.gmra.mxu0 %v2629
      %v2706 = vpop.f32.mrf.mxu0
      %v2707 = vadd.f32 0.0, %v2706
      %v2708 = vpop.f32.mrf.mxu0
      %v2709 = vadd.f32 0.0, %v2708
      %2710 = vdwg.mxu0
      %v2711 = vadd.f32 %v2465, %v2692
      %v2712 = vadd.f32 %v2466, %v2694
      %v2713 = vadd.f32 %v2467, %v2697
      %v2714 = vadd.f32 %v2468, %v2699
      %v2715 = vadd.f32 %v2469, %v2702
      %v2716 = vadd.f32 %v2470, %v2704
      %v2717 = vadd.f32 %v2471, %v2707
      %v2718 = vadd.f32 %v2472, %v2709
      %s2719 = scalar_lea.vmem [#allocation2], 8
      %v2720 = vld [vmem:[%s2719] sm:$0xf]
      %v2721 = vld [vmem:[%s2719 + $0x8] sm:$0xf]
      %v2722 = vld [vmem:[%s2719 + $0x10] sm:$0xf]
      %v2723 = vld [vmem:[%s2719 + $0x18] sm:$0xf]
      %v2724 = vld [vmem:[%s2719 + $0x20] sm:$0xf]
      %v2725 = vld [vmem:[%s2719 + $0x28] sm:$0xf]
      %v2726 = vld [vmem:[%s2719 + $0x30] sm:$0xf]
      %v2727 = vld [vmem:[%s2719 + $0x38] sm:$0xf]
      %s2728 = scalar_lea.vmem %s4, 384
      %v2729 = vld [vmem:[%s2728] sm:$0xf]
      %v2730 = vld [vmem:[%s2728 + $0x4] sm:$0xf]
      %v2731 = vld [vmem:[%s2728 + $0x8] sm:$0xf]
      %v2732 = vld [vmem:[%s2728 + $0xc] sm:$0xf]
      %v2733 = vld [vmem:[%s2728 + $0x10] sm:$0xf]
      %v2734 = vld [vmem:[%s2728 + $0x14] sm:$0xf]
      %v2735 = vld [vmem:[%s2728 + $0x18] sm:$0xf]
      %v2736 = vld [vmem:[%s2728 + $0x1c] sm:$0xf]
      %v2737 = vld [vmem:[%s2728 + $0x20] sm:$0xf]
      %v2738 = vld [vmem:[%s2728 + $0x24] sm:$0xf]
      %v2739 = vld [vmem:[%s2728 + $0x28] sm:$0xf]
      %v2740 = vld [vmem:[%s2728 + $0x2c] sm:$0xf]
      %v2741 = vld [vmem:[%s2728 + $0x30] sm:$0xf]
      %v2742 = vld [vmem:[%s2728 + $0x34] sm:$0xf]
      %v2743 = vld [vmem:[%s2728 + $0x38] sm:$0xf]
      %v2744 = vld [vmem:[%s2728 + $0x3c] sm:$0xf]
      %v2753 = vunpack.c.l.b16 %v2720
      %v2754 = vunpack.c.l.b16 %v2721
      %v2755 = vunpack.c.l.b16 %v2722
      %v2756 = vunpack.c.l.b16 %v2723
      %v2757 = vunpack.c.l.b16 %v2724
      %v2758 = vunpack.c.l.b16 %v2725
      %v2759 = vunpack.c.l.b16 %v2726
      %v2760 = vunpack.c.l.b16 %v2727
      %v2761 = vpack.c.b16 %v2754, %v2753
      %v2762 = vpack.c.b16 %v2756, %v2755
      %v2763 = vpack.c.b16 %v2758, %v2757
      %v2764 = vpack.c.b16 %v2760, %v2759
      %v2785 = vunpack.c.l.b16 %v2729
      %v2786 = vunpack.c.l.b16 %v2730
      %v2787 = vunpack.c.l.b16 %v2731
      %v2788 = vunpack.c.l.b16 %v2732
      %v2789 = vunpack.c.l.b16 %v2733
      %v2790 = vunpack.c.l.b16 %v2734
      %v2791 = vunpack.c.l.b16 %v2735
      %v2792 = vunpack.c.l.b16 %v2736
      %v2793 = vunpack.c.l.b16 %v2737
      %v2794 = vunpack.c.l.b16 %v2738
      %v2795 = vunpack.c.l.b16 %v2739
      %v2796 = vunpack.c.l.b16 %v2740
      %v2797 = vunpack.c.l.b16 %v2741
      %v2798 = vunpack.c.l.b16 %v2742
      %v2799 = vunpack.c.l.b16 %v2743
      %v2800 = vunpack.c.l.b16 %v2744
      %v2801 = vpack.c.b16 %v2786, %v2785
      %v2802 = vpack.c.b16 %v2788, %v2787
      %v2803 = vpack.c.b16 %v2790, %v2789
      %v2804 = vpack.c.b16 %v2792, %v2791
      %v2805 = vpack.c.b16 %v2794, %v2793
      %v2806 = vpack.c.b16 %v2796, %v2795
      %v2807 = vpack.c.b16 %v2798, %v2797
      %v2808 = vpack.c.b16 %v2800, %v2799
      %2817 = vmatpush.bf16.msra.mxu0 %v2808
      %2818 = vmatpush.bf16.msra.mxu0 %v2807
      %2819 = vmatpush.bf16.msra.mxu0 %v2806
      %2820 = vmatpush.bf16.msra.mxu0 %v2805
      %2821 = vmatpush.bf16.msra.mxu0 %v2804
      %2822 = vmatpush.bf16.msra.mxu0 %v2803
      %2823 = vmatpush.bf16.msra.mxu0 %v2802
      %2824 = vmatpush.bf16.msra.mxu0 %v2801
      %2825 = vmatmul.bf16.gmra.mxu0 %v2761
      %v2826 = vpop.f32.mrf.mxu0
      %v2827 = vadd.f32 0.0, %v2826
      %v2828 = vpop.f32.mrf.mxu0
      %v2829 = vadd.f32 0.0, %v2828
      %2830 = vmatmul.bf16.gmra.mxu0 %v2762
      %v2831 = vpop.f32.mrf.mxu0
      %v2832 = vadd.f32 0.0, %v2831
      %v2833 = vpop.f32.mrf.mxu0
      %v2834 = vadd.f32 0.0, %v2833
      %2835 = vmatmul.bf16.gmra.mxu0 %v2763
      %v2836 = vpop.f32.mrf.mxu0
      %v2837 = vadd.f32 0.0, %v2836
      %v2838 = vpop.f32.mrf.mxu0
      %v2839 = vadd.f32 0.0, %v2838
      %2840 = vmatmul.bf16.gmra.mxu0 %v2764
      %v2841 = vpop.f32.mrf.mxu0
      %v2842 = vadd.f32 0.0, %v2841
      %v2843 = vpop.f32.mrf.mxu0
      %v2844 = vadd.f32 0.0, %v2843
      %2845 = vdwg.mxu0
      %v2846 = vadd.f32 %v2711, %v2827
      %v2847 = vadd.f32 %v2712, %v2829
      %v2848 = vadd.f32 %v2713, %v2832
      %v2849 = vadd.f32 %v2714, %v2834
      %v2850 = vadd.f32 %v2715, %v2837
      %v2851 = vadd.f32 %v2716, %v2839
      %v2852 = vadd.f32 %v2717, %v2842
      %v2853 = vadd.f32 %v2718, %v2844
      %s2854 = scalar_lea.vmem [#allocation2], 80
      %v2855 = vld [vmem:[%s2854] sm:$0xf]
      %v2856 = vld [vmem:[%s2854 + $0x8] sm:$0xf]
      %v2857 = vld [vmem:[%s2854 + $0x10] sm:$0xf]
      %v2858 = vld [vmem:[%s2854 + $0x18] sm:$0xf]
      %v2859 = vld [vmem:[%s2854 + $0x20] sm:$0xf]
      %v2860 = vld [vmem:[%s2854 + $0x28] sm:$0xf]
      %v2861 = vld [vmem:[%s2854 + $0x30] sm:$0xf]
      %v2862 = vld [vmem:[%s2854 + $0x38] sm:$0xf]
      %s2863 = scalar_lea.vmem %s4, 448
      %v2864 = vld [vmem:[%s2863] sm:$0xf]
      %v2865 = vld [vmem:[%s2863 + $0x4] sm:$0xf]
      %v2866 = vld [vmem:[%s2863 + $0x8] sm:$0xf]
      %v2867 = vld [vmem:[%s2863 + $0xc] sm:$0xf]
      %v2868 = vld [vmem:[%s2863 + $0x10] sm:$0xf]
      %v2869 = vld [vmem:[%s2863 + $0x14] sm:$0xf]
      %v2870 = vld [vmem:[%s2863 + $0x18] sm:$0xf]
      %v2871 = vld [vmem:[%s2863 + $0x1c] sm:$0xf]
      %v2872 = vld [vmem:[%s2863 + $0x20] sm:$0xf]
      %v2873 = vld [vmem:[%s2863 + $0x24] sm:$0xf]
      %v2874 = vld [vmem:[%s2863 + $0x28] sm:$0xf]
      %v2875 = vld [vmem:[%s2863 + $0x2c] sm:$0xf]
      %v2876 = vld [vmem:[%s2863 + $0x30] sm:$0xf]
      %v2877 = vld [vmem:[%s2863 + $0x34] sm:$0xf]
      %v2878 = vld [vmem:[%s2863 + $0x38] sm:$0xf]
      %v2879 = vld [vmem:[%s2863 + $0x3c] sm:$0xf]
      %v2888 = vunpack.c.l.b16 %v2855
      %v2889 = vunpack.c.l.b16 %v2856
      %v2890 = vunpack.c.l.b16 %v2857
      %v2891 = vunpack.c.l.b16 %v2858
      %v2892 = vunpack.c.l.b16 %v2859
      %v2893 = vunpack.c.l.b16 %v2860
      %v2894 = vunpack.c.l.b16 %v2861
      %v2895 = vunpack.c.l.b16 %v2862
      %v2896 = vpack.c.b16 %v2889, %v2888
      %v2897 = vpack.c.b16 %v2891, %v2890
      %v2898 = vpack.c.b16 %v2893, %v2892
      %v2899 = vpack.c.b16 %v2895, %v2894
      %v2920 = vunpack.c.l.b16 %v2864
      %v2921 = vunpack.c.l.b16 %v2865
      %v2922 = vunpack.c.l.b16 %v2866
      %v2923 = vunpack.c.l.b16 %v2867
      %v2924 = vunpack.c.l.b16 %v2868
      %v2925 = vunpack.c.l.b16 %v2869
      %v2926 = vunpack.c.l.b16 %v2870
      %v2927 = vunpack.c.l.b16 %v2871
      %v2928 = vunpack.c.l.b16 %v2872
      %v2929 = vunpack.c.l.b16 %v2873
      %v2930 = vunpack.c.l.b16 %v2874
      %v2931 = vunpack.c.l.b16 %v2875
      %v2932 = vunpack.c.l.b16 %v2876
      %v2933 = vunpack.c.l.b16 %v2877
      %v2934 = vunpack.c.l.b16 %v2878
      %v2935 = vunpack.c.l.b16 %v2879
      %v2936 = vpack.c.b16 %v2921, %v2920
      %v2937 = vpack.c.b16 %v2923, %v2922
      %v2938 = vpack.c.b16 %v2925, %v2924
      %v2939 = vpack.c.b16 %v2927, %v2926
      %v2940 = vpack.c.b16 %v2929, %v2928
      %v2941 = vpack.c.b16 %v2931, %v2930
      %v2942 = vpack.c.b16 %v2933, %v2932
      %v2943 = vpack.c.b16 %v2935, %v2934
      %2952 = vmatpush.bf16.msra.mxu0 %v2943
      %2953 = vmatpush.bf16.msra.mxu0 %v2942
      %2954 = vmatpush.bf16.msra.mxu0 %v2941
      %2955 = vmatpush.bf16.msra.mxu0 %v2940
      %2956 = vmatpush.bf16.msra.mxu0 %v2939
      %2957 = vmatpush.bf16.msra.mxu0 %v2938
      %2958 = vmatpush.bf16.msra.mxu0 %v2937
      %2959 = vmatpush.bf16.msra.mxu0 %v2936
      %2960 = vmatmul.bf16.gmra.mxu0 %v2896
      %v2961 = vpop.f32.mrf.mxu0
      %v2962 = vadd.f32 0.0, %v2961
      %v2963 = vpop.f32.mrf.mxu0
      %v2964 = vadd.f32 0.0, %v2963
      %2965 = vmatmul.bf16.gmra.mxu0 %v2897
      %v2966 = vpop.f32.mrf.mxu0
      %v2967 = vadd.f32 0.0, %v2966
      %v2968 = vpop.f32.mrf.mxu0
      %v2969 = vadd.f32 0.0, %v2968
      %2970 = vmatmul.bf16.gmra.mxu0 %v2898
      %v2971 = vpop.f32.mrf.mxu0
      %v2972 = vadd.f32 0.0, %v2971
      %v2973 = vpop.f32.mrf.mxu0
      %v2974 = vadd.f32 0.0, %v2973
      %2975 = vmatmul.bf16.gmra.mxu0 %v2899
      %v2976 = vpop.f32.mrf.mxu0
      %v2977 = vadd.f32 0.0, %v2976
      %v2978 = vpop.f32.mrf.mxu0
      %v2979 = vadd.f32 0.0, %v2978
      %2980 = vdwg.mxu0
      %v2981 = vadd.f32 %v2846, %v2962
      %v2982 = vadd.f32 %v2847, %v2964
      %v2983 = vadd.f32 %v2848, %v2967
      %v2984 = vadd.f32 %v2849, %v2969
      %v2985 = vadd.f32 %v2850, %v2972
      %v2986 = vadd.f32 %v2851, %v2974
      %v2987 = vadd.f32 %v2852, %v2977
      %v2988 = vadd.f32 %v2853, %v2979
      %v2989 = vld [vmem:[%s2719] sm:$0xf]
      %v2990 = vld [vmem:[%s2719 + $0x4] sm:$0x1]
      %v2991 = vld [vmem:[%s2719 + $0x8] sm:$0xf]
      %v2992 = vld [vmem:[%s2719 + $0xc] sm:$0x1]
      %v2993 = vld [vmem:[%s2719 + $0x10] sm:$0xf]
      %v2994 = vld [vmem:[%s2719 + $0x14] sm:$0x1]
      %v2995 = vld [vmem:[%s2719 + $0x18] sm:$0xf]
      %v2996 = vld [vmem:[%s2719 + $0x1c] sm:$0x1]
      %v2997 = vld [vmem:[%s2719 + $0x20] sm:$0xf]
      %v2998 = vld [vmem:[%s2719 + $0x24] sm:$0x1]
      %v2999 = vld [vmem:[%s2719 + $0x28] sm:$0xf]
      %v3000 = vld [vmem:[%s2719 + $0x2c] sm:$0x1]
      %v3001 = vld [vmem:[%s2719 + $0x30] sm:$0xf]
      %v3002 = vld [vmem:[%s2719 + $0x34] sm:$0x1]
      %v3003 = vld [vmem:[%s2719 + $0x38] sm:$0xf]
      %v3004 = vld [vmem:[%s2719 + $0x3c] sm:$0x1]
      %v3006 = vshrl.u32 %v2989, 16
      %v3008 = vrot.slane %v3006, 4
      %v3009 = vshll.u32 %v2989, 16
      %v3011 = vrot.slane %v3009, 5
      %v3012 = vor.u32 %v3008, %v3011
      %v3013 = vrot.slane %v3012, 4
      %v3015 = vshll.u32 %v2990, 16
      %v3017 = vrot.slane %v3015, 5
      %v3018 = vsel %vm1974, %v3013, %v3017
      %v3020 = vshrl.u32 %v2991, 16
      %v3022 = vrot.slane %v3020, 4
      %v3023 = vshll.u32 %v2991, 16
      %v3025 = vrot.slane %v3023, 5
      %v3026 = vor.u32 %v3022, %v3025
      %v3027 = vrot.slane %v3026, 4
      %v3029 = vshll.u32 %v2992, 16
      %v3031 = vrot.slane %v3029, 5
      %v3032 = vsel %vm1974, %v3027, %v3031
      %v3034 = vshrl.u32 %v2993, 16
      %v3036 = vrot.slane %v3034, 4
      %v3037 = vshll.u32 %v2993, 16
      %v3039 = vrot.slane %v3037, 5
      %v3040 = vor.u32 %v3036, %v3039
      %v3041 = vrot.slane %v3040, 4
      %v3043 = vshll.u32 %v2994, 16
      %v3045 = vrot.slane %v3043, 5
      %v3046 = vsel %vm1974, %v3041, %v3045
      %v3048 = vshrl.u32 %v2995, 16
      %v3050 = vrot.slane %v3048, 4
      %v3051 = vshll.u32 %v2995, 16
      %v3053 = vrot.slane %v3051, 5
      %v3054 = vor.u32 %v3050, %v3053
      %v3055 = vrot.slane %v3054, 4
      %v3057 = vshll.u32 %v2996, 16
      %v3059 = vrot.slane %v3057, 5
      %v3060 = vsel %vm1974, %v3055, %v3059
      %v3062 = vshrl.u32 %v2997, 16
      %v3064 = vrot.slane %v3062, 4
      %v3065 = vshll.u32 %v2997, 16
      %v3067 = vrot.slane %v3065, 5
      %v3068 = vor.u32 %v3064, %v3067
      %v3069 = vrot.slane %v3068, 4
      %v3071 = vshll.u32 %v2998, 16
      %v3073 = vrot.slane %v3071, 5
      %v3074 = vsel %vm1974, %v3069, %v3073
      %v3076 = vshrl.u32 %v2999, 16
      %v3078 = vrot.slane %v3076, 4
      %v3079 = vshll.u32 %v2999, 16
      %v3081 = vrot.slane %v3079, 5
      %v3082 = vor.u32 %v3078, %v3081
      %v3083 = vrot.slane %v3082, 4
      %v3085 = vshll.u32 %v3000, 16
      %v3087 = vrot.slane %v3085, 5
      %v3088 = vsel %vm1974, %v3083, %v3087
      %v3090 = vshrl.u32 %v3001, 16
      %v3092 = vrot.slane %v3090, 4
      %v3093 = vshll.u32 %v3001, 16
      %v3095 = vrot.slane %v3093, 5
      %v3096 = vor.u32 %v3092, %v3095
      %v3097 = vrot.slane %v3096, 4
      %v3099 = vshll.u32 %v3002, 16
      %v3101 = vrot.slane %v3099, 5
      %v3102 = vsel %vm1974, %v3097, %v3101
      %v3104 = vshrl.u32 %v3003, 16
      %v3106 = vrot.slane %v3104, 4
      %v3107 = vshll.u32 %v3003, 16
      %v3109 = vrot.slane %v3107, 5
      %v3110 = vor.u32 %v3106, %v3109
      %v3111 = vrot.slane %v3110, 4
      %v3113 = vshll.u32 %v3004, 16
      %v3115 = vrot.slane %v3113, 5
      %v3116 = vsel %vm1974, %v3111, %v3115
      %s3117 = scalar_lea.vmem %s4, 512
      %v3118 = vld [vmem:[%s3117] sm:$0xf]
      %v3119 = vld [vmem:[%s3117 + $0x4] sm:$0xf]
      %v3120 = vld [vmem:[%s3117 + $0x8] sm:$0xf]
      %v3121 = vld [vmem:[%s3117 + $0xc] sm:$0xf]
      %v3122 = vld [vmem:[%s3117 + $0x10] sm:$0xf]
      %v3123 = vld [vmem:[%s3117 + $0x14] sm:$0xf]
      %v3124 = vld [vmem:[%s3117 + $0x18] sm:$0xf]
      %v3125 = vld [vmem:[%s3117 + $0x1c] sm:$0xf]
      %v3126 = vld [vmem:[%s3117 + $0x20] sm:$0xf]
      %v3127 = vld [vmem:[%s3117 + $0x24] sm:$0xf]
      %v3128 = vld [vmem:[%s3117 + $0x28] sm:$0xf]
      %v3129 = vld [vmem:[%s3117 + $0x2c] sm:$0xf]
      %v3130 = vld [vmem:[%s3117 + $0x30] sm:$0xf]
      %v3131 = vld [vmem:[%s3117 + $0x34] sm:$0xf]
      %v3132 = vld [vmem:[%s3117 + $0x38] sm:$0xf]
      %v3133 = vld [vmem:[%s3117 + $0x3c] sm:$0xf]
      %v3134 = vunpack.c.l.b16 %v3018
      %v3135 = vunpack.c.l.b16 %v3032
      %v3136 = vunpack.c.l.b16 %v3046
      %v3137 = vunpack.c.l.b16 %v3060
      %v3138 = vunpack.c.l.b16 %v3074
      %v3139 = vunpack.c.l.b16 %v3088
      %v3140 = vunpack.c.l.b16 %v3102
      %v3141 = vunpack.c.l.b16 %v3116
      %v3142 = vpack.c.b16 %v3135, %v3134
      %v3143 = vpack.c.b16 %v3137, %v3136
      %v3144 = vpack.c.b16 %v3139, %v3138
      %v3145 = vpack.c.b16 %v3141, %v3140
      %v3166 = vunpack.c.l.b16 %v3118
      %v3167 = vunpack.c.l.b16 %v3119
      %v3168 = vunpack.c.l.b16 %v3120
      %v3169 = vunpack.c.l.b16 %v3121
      %v3170 = vunpack.c.l.b16 %v3122
      %v3171 = vunpack.c.l.b16 %v3123
      %v3172 = vunpack.c.l.b16 %v3124
      %v3173 = vunpack.c.l.b16 %v3125
      %v3174 = vunpack.c.l.b16 %v3126
      %v3175 = vunpack.c.l.b16 %v3127
      %v3176 = vunpack.c.l.b16 %v3128
      %v3177 = vunpack.c.l.b16 %v3129
      %v3178 = vunpack.c.l.b16 %v3130
      %v3179 = vunpack.c.l.b16 %v3131
      %v3180 = vunpack.c.l.b16 %v3132
      %v3181 = vunpack.c.l.b16 %v3133
      %v3182 = vpack.c.b16 %v3167, %v3166
      %v3183 = vpack.c.b16 %v3169, %v3168
      %v3184 = vpack.c.b16 %v3171, %v3170
      %v3185 = vpack.c.b16 %v3173, %v3172
      %v3186 = vpack.c.b16 %v3175, %v3174
      %v3187 = vpack.c.b16 %v3177, %v3176
      %v3188 = vpack.c.b16 %v3179, %v3178
      %v3189 = vpack.c.b16 %v3181, %v3180
      %3198 = vmatpush.bf16.msra.mxu0 %v3189
      %3199 = vmatpush.bf16.msra.mxu0 %v3188
      %3200 = vmatpush.bf16.msra.mxu0 %v3187
      %3201 = vmatpush.bf16.msra.mxu0 %v3186
      %3202 = vmatpush.bf16.msra.mxu0 %v3185
      %3203 = vmatpush.bf16.msra.mxu0 %v3184
      %3204 = vmatpush.bf16.msra.mxu0 %v3183
      %3205 = vmatpush.bf16.msra.mxu0 %v3182
      %3206 = vmatmul.bf16.gmra.mxu0 %v3142
      %v3207 = vpop.f32.mrf.mxu0
      %v3208 = vadd.f32 0.0, %v3207
      %v3209 = vpop.f32.mrf.mxu0
      %v3210 = vadd.f32 0.0, %v3209
      %3211 = vmatmul.bf16.gmra.mxu0 %v3143
      %v3212 = vpop.f32.mrf.mxu0
      %v3213 = vadd.f32 0.0, %v3212
      %v3214 = vpop.f32.mrf.mxu0
      %v3215 = vadd.f32 0.0, %v3214
      %3216 = vmatmul.bf16.gmra.mxu0 %v3144
      %v3217 = vpop.f32.mrf.mxu0
      %v3218 = vadd.f32 0.0, %v3217
      %v3219 = vpop.f32.mrf.mxu0
      %v3220 = vadd.f32 0.0, %v3219
      %3221 = vmatmul.bf16.gmra.mxu0 %v3145
      %v3222 = vpop.f32.mrf.mxu0
      %v3223 = vadd.f32 0.0, %v3222
      %v3224 = vpop.f32.mrf.mxu0
      %v3225 = vadd.f32 0.0, %v3224
      %3226 = vdwg.mxu0
      %v3227 = vadd.f32 %v2981, %v3208
      %v3228 = vadd.f32 %v2982, %v3210
      %v3229 = vadd.f32 %v2983, %v3213
      %v3230 = vadd.f32 %v2984, %v3215
      %v3231 = vadd.f32 %v2985, %v3218
      %v3232 = vadd.f32 %v2986, %v3220
      %v3233 = vadd.f32 %v2987, %v3223
      %v3234 = vadd.f32 %v2988, %v3225
      %v3235 = vld [vmem:[%s5] sm:$0x1]
      %v3237 = vperm.slane %v3235, 0
      %v3239 = vadd.f32 %v3227, %v3237
      %v3240 = vadd.f32 %v3228, %v3237
      %v3241 = vadd.f32 %v3229, %v3237
      %v3242 = vadd.f32 %v3230, %v3237
      %v3243 = vadd.f32 %v3231, %v3237
      %v3244 = vadd.f32 %v3232, %v3237
      %v3245 = vadd.f32 %v3233, %v3237
      %v3246 = vadd.f32 %v3234, %v3237
      %v3247 = vmax.f32 %v3239, 0.0
      %v3248 = vmax.f32 %v3240, 0.0
      %v3249 = vmax.f32 %v3241, 0.0
      %v3250 = vmax.f32 %v3242, 0.0
      %v3251 = vmax.f32 %v3243, 0.0
      %v3252 = vmax.f32 %v3244, 0.0
      %v3253 = vmax.f32 %v3245, 0.0
      %v3254 = vmax.f32 %v3246, 0.0
      %v3255 = vpack.c.bf16 %v3248, %v3247
      %v3256 = vpack.c.bf16 %v3250, %v3249
      %v3257 = vpack.c.bf16 %v3252, %v3251
      %v3258 = vpack.c.bf16 %v3254, %v3253
      %v3259 = vld [vmem:[%s6] sm:$0xf]
      %v3260 = vld [vmem:[%s6 + $0x4] sm:$0xf]
      %v3261 = vld [vmem:[%s6 + $0x8] sm:$0xf]
      %v3262 = vld [vmem:[%s6 + $0xc] sm:$0xf]
      %v3263 = vld [vmem:[%s6 + $0x10] sm:$0xf]
      %v3264 = vld [vmem:[%s6 + $0x14] sm:$0xf]
      %v3265 = vld [vmem:[%s6 + $0x18] sm:$0xf]
      %v3266 = vld [vmem:[%s6 + $0x1c] sm:$0xf]
      %v3267 = vld [vmem:[%s6 + $0x20] sm:$0xf]
      %v3268 = vld [vmem:[%s6 + $0x24] sm:$0xf]
      %v3269 = vld [vmem:[%s6 + $0x28] sm:$0xf]
      %v3270 = vld [vmem:[%s6 + $0x2c] sm:$0xf]
      %v3271 = vld [vmem:[%s6 + $0x30] sm:$0xf]
      %v3272 = vld [vmem:[%s6 + $0x34] sm:$0xf]
      %v3273 = vld [vmem:[%s6 + $0x38] sm:$0xf]
      %v3274 = vld [vmem:[%s6 + $0x3c] sm:$0xf]
      %v3275 = vld [vmem:[%s7] sm:$0x1]
      %v3277 = vperm.slane %v3275, 0
      %v3295 = vunpack.c.l.b16 %v3259
      %v3296 = vunpack.c.l.b16 %v3260
      %v3297 = vunpack.c.l.b16 %v3261
      %v3298 = vunpack.c.l.b16 %v3262
      %v3299 = vunpack.c.l.b16 %v3263
      %v3300 = vunpack.c.l.b16 %v3264
      %v3301 = vunpack.c.l.b16 %v3265
      %v3302 = vunpack.c.l.b16 %v3266
      %v3303 = vunpack.c.l.b16 %v3267
      %v3304 = vunpack.c.l.b16 %v3268
      %v3305 = vunpack.c.l.b16 %v3269
      %v3306 = vunpack.c.l.b16 %v3270
      %v3307 = vunpack.c.l.b16 %v3271
      %v3308 = vunpack.c.l.b16 %v3272
      %v3309 = vunpack.c.l.b16 %v3273
      %v3310 = vunpack.c.l.b16 %v3274
      %v3311 = vpack.c.b16 %v3296, %v3295
      %v3312 = vpack.c.b16 %v3298, %v3297
      %v3313 = vpack.c.b16 %v3300, %v3299
      %v3314 = vpack.c.b16 %v3302, %v3301
      %v3315 = vpack.c.b16 %v3304, %v3303
      %v3316 = vpack.c.b16 %v3306, %v3305
      %v3317 = vpack.c.b16 %v3308, %v3307
      %v3318 = vpack.c.b16 %v3310, %v3309
      %3327 = vmatpush.bf16.msra.mxu0 %v3318
      %3328 = vmatpush.bf16.msra.mxu0 %v3317
      %3329 = vmatpush.bf16.msra.mxu0 %v3316
      %3330 = vmatpush.bf16.msra.mxu0 %v3315
      %3331 = vmatpush.bf16.msra.mxu0 %v3314
      %3332 = vmatpush.bf16.msra.mxu0 %v3313
      %3333 = vmatpush.bf16.msra.mxu0 %v3312
      %3334 = vmatpush.bf16.msra.mxu0 %v3311
      %3335 = vmatmul.bf16.gmra.mxu0 %v3255
      %v3336 = vpop.f32.mrf.mxu0
      %v3337 = vadd.f32 %v3277, %v3336
      %v3338 = vpop.f32.mrf.mxu0
      %v3339 = vadd.f32 %v3277, %v3338
      %3340 = vmatmul.bf16.gmra.mxu0 %v3256
      %v3341 = vpop.f32.mrf.mxu0
      %v3342 = vadd.f32 %v3277, %v3341
      %v3343 = vpop.f32.mrf.mxu0
      %v3344 = vadd.f32 %v3277, %v3343
      %3345 = vmatmul.bf16.gmra.mxu0 %v3257
      %v3346 = vpop.f32.mrf.mxu0
      %v3347 = vadd.f32 %v3277, %v3346
      %v3348 = vpop.f32.mrf.mxu0
      %v3349 = vadd.f32 %v3277, %v3348
      %3350 = vmatmul.bf16.gmra.mxu0 %v3258
      %v3351 = vpop.f32.mrf.mxu0
      %v3352 = vadd.f32 %v3277, %v3351
      %v3353 = vpop.f32.mrf.mxu0
      %v3354 = vadd.f32 %v3277, %v3353
      %3355 = vdwg.mxu0
      %v3356 = vld [vmem:[%s1370] sm:$0xf]
      %v3357 = vld [vmem:[%s1370 + $0x8] sm:$0xf]
      %v3358 = vld [vmem:[%s1370 + $0x10] sm:$0xf]
      %v3359 = vld [vmem:[%s1370 + $0x18] sm:$0xf]
      %v3360 = vld [vmem:[%s1370 + $0x20] sm:$0xf]
      %v3361 = vld [vmem:[%s1370 + $0x28] sm:$0xf]
      %v3362 = vld [vmem:[%s1370 + $0x30] sm:$0xf]
      %v3363 = vld [vmem:[%s1370 + $0x38] sm:$0xf]
      %v3364 = vld [vmem:[%s8] sm:$0xf]
      %v3365 = vld [vmem:[%s9] sm:$0x1]
      %v3367 = vperm.slane %v3365, 0
      %v3377 = vunpack.c.l.b16 %v3356
      %v3378 = vunpack.c.l.b16 %v3357
      %v3379 = vunpack.c.l.b16 %v3358
      %v3380 = vunpack.c.l.b16 %v3359
      %v3381 = vunpack.c.l.b16 %v3360
      %v3382 = vunpack.c.l.b16 %v3361
      %v3383 = vunpack.c.l.b16 %v3362
      %v3384 = vunpack.c.l.b16 %v3363
      %v3385 = vpack.c.b16 %v3378, %v3377
      %v3386 = vpack.c.b16 %v3380, %v3379
      %v3387 = vpack.c.b16 %v3382, %v3381
      %v3388 = vpack.c.b16 %v3384, %v3383
      %v3390 = vsel %vm434, %v3385, 0
      %v3393 = vsel %vm434, %v3386, 0
      %v3396 = vsel %vm434, %v3387, 0
      %v3399 = vsel %vm434, %v3388, 0
      %v3402 = vsel %vm462, %v3364, 0
      %3404 = vmatpush.bf16.msra.mxu0 0
      %3405 = vmatpush.bf16.msra.mxu0 0
      %3406 = vmatpush.bf16.msra.mxu0 0
      %3407 = vmatpush.bf16.msra.mxu0 0
      %3408 = vmatpush.bf16.msra.mxu0 0
      %3409 = vmatpush.bf16.msra.mxu0 0
      %3410 = vmatpush.bf16.msra.mxu0 0
      %3411 = vmatpush.bf16.msra.mxu0 %v3402
      %3412 = vmatmul.bf16.gmra.mxu0 %v3390
      %v3413 = vpop.f32.mrf.mxu0
      %v3414 = vadd.f32 %v3367, %v3413
      %v3415 = vpop.f32.mrf.mxu0
      %v3416 = vadd.f32 %v3367, %v3415
      %3417 = vmatmul.bf16.gmra.mxu0 %v3393
      %v3418 = vpop.f32.mrf.mxu0
      %v3419 = vadd.f32 %v3367, %v3418
      %v3420 = vpop.f32.mrf.mxu0
      %v3421 = vadd.f32 %v3367, %v3420
      %3422 = vmatmul.bf16.gmra.mxu0 %v3396
      %v3423 = vpop.f32.mrf.mxu0
      %v3424 = vadd.f32 %v3367, %v3423
      %v3425 = vpop.f32.mrf.mxu0
      %v3426 = vadd.f32 %v3367, %v3425
      %3427 = vmatmul.bf16.gmra.mxu0 %v3399
      %v3428 = vpop.f32.mrf.mxu0
      %v3429 = vadd.f32 %v3367, %v3428
      %v3430 = vpop.f32.mrf.mxu0
      %v3431 = vadd.f32 %v3367, %v3430
      %3432 = vdwg.mxu0
      %v3433 = vadd.f32 %v3337, %v3414
      %v3434 = vadd.f32 %v3339, %v3416
      %v3435 = vadd.f32 %v3342, %v3419
      %v3436 = vadd.f32 %v3344, %v3421
      %v3437 = vadd.f32 %v3347, %v3424
      %v3438 = vadd.f32 %v3349, %v3426
      %v3439 = vadd.f32 %v3352, %v3429
      %v3440 = vadd.f32 %v3354, %v3431
      %v3441 = vmax.f32 %v3433, 0.0
      %v3442 = vmax.f32 %v3434, 0.0
      %v3443 = vmax.f32 %v3435, 0.0
      %v3444 = vmax.f32 %v3436, 0.0
      %v3445 = vmax.f32 %v3437, 0.0
      %v3446 = vmax.f32 %v3438, 0.0
      %v3447 = vmax.f32 %v3439, 0.0
      %v3448 = vmax.f32 %v3440, 0.0
      %3449 = vst [vmem:[%s364] sm:$0xff] %v3441
      %3450 = vst [vmem:[%s364 + $0x8] sm:$0xff] %v3442
      %3451 = vst [vmem:[%s364 + $0x10] sm:$0xff] %v3443
      %3452 = vst [vmem:[%s364 + $0x18] sm:$0xff] %v3444
      %3453 = vst [vmem:[%s364 + $0x20] sm:$0xff] %v3445
      %3454 = vst [vmem:[%s364 + $0x28] sm:$0xff] %v3446
      %3455 = vst [vmem:[%s364 + $0x30] sm:$0xff] %v3447
      %3456 = vst [vmem:[%s364 + $0x38] sm:$0xff] %v3448
      %p3457 = scmp.lt.s32.totalorder %s21, 1
      %s3458 = scalar_select %p3457, %s21, 1
      %s3459 = smul.addr %s3458, 8
      %s3460 = smul.addr %s3459, 8
      %s3461 = scalar_lea.vmem %s10, %s3460
      // Predicated region
      $region61: #{bottleneck_forward.1} parent=59 // pred_check
        %p3462 = pneg %p254
      $region62: #{bottleneck_forward.1} parent=59 // pred_check_branch
        %3464 = sbr.rel (%p3462) target = $region64
      $region63: #{bottleneck_forward.1} parent=59 // pred_region
        _
      $region64: #{bottleneck_forward.1} parent=59 // pred_fallthru
        _
    $region60: #{bottleneck_forward.1} parent=5 // pred_fallthru
      _
    %p3465 = scmp.le.s32.totalorder 2, %s16
    // Predicated region
    $region65: #{bottleneck_forward.1} parent=5 // pred_check
      %p3466 = pneg %p3465
    $region66: #{bottleneck_forward.1} parent=5 // pred_check_branch
      %3468 = sbr.rel (%p3466) target = $region68
    $region67: #{bottleneck_forward.1} parent=5 // pred_region
      %s3469 = ssub.s32 %s16, 2
      // Predicated region
      $region69: #{bottleneck_forward.1} parent=67 // pred_check
        %p3470 = pneg %p260
      $region70: #{bottleneck_forward.1} parent=67 // pred_check_branch
        %3472 = sbr.rel (%p3470) target = $region72
      $region71: #{bottleneck_forward.1} parent=67 // pred_region
        %p3473 = scmp.lt.s32.totalorder %s22, 1
        %s3474 = scalar_select %p3473, %s22, 1
        %s3475 = smul.addr %s3474, 8
        %s3476 = smul.addr %s3475, 8
        %s3477 = scalar_lea.vmem %s10, %s3476
      $region72: #{bottleneck_forward.1} parent=67 // pred_fallthru
        _
    $region68: #{bottleneck_forward.1} parent=5 // pred_fallthru
      _
  $region6: #{bottleneck_forward.1} parent=0 // loop_footer
    %s20 = sadd.s32 1, %s16
  $region7: #{bottleneck_forward.1} parent=0 // loop_footer_branch
    %15 = sbr.rel target = $region3
  $region8: #{bottleneck_forward.1} parent=0 // loop_exit
    _

</llo_original>
